<compile_context>
chip_gen: v6e
topology: v6e:2x2x1
jax: 0.10.0
libtpu: 0.0.40
codegen_flags: <defaults>
</compile_context>

<pallas_src>
import math
import functools

import jax
import jax.numpy as jnp
from jax.experimental import pallas as pl
from jax.experimental.pallas import tpu as pltpu


# --------------------------------------------------------------------------
# Small synthetic config (field names consistent with AlbertConfig)
# --------------------------------------------------------------------------
class SmallAlbertConfig:
    embedding_size = 64
    hidden_size = 128
    num_attention_heads = 4
    intermediate_size = 256
    num_hidden_layers = 2
    num_hidden_groups = 1
    inner_group_num = 1
    layer_norm_eps = 1e-12
    hidden_act = "gelu_new"


CFG = SmallAlbertConfig()

# TODO(synk): only the ALBERT weight-sharing case num_hidden_groups == 1,
# inner_group_num == 1 is implemented (matches albert_chinese_base).


def _gelu_new(x):
    # HF "gelu_new" (tanh approximation); x*x*x instead of jnp.power (VPU, not EUP).
    c = math.sqrt(2.0 / math.pi)
    return 0.5 * x * (1.0 + jnp.tanh(c * (x + 0.044715 * (x * x * x))))


def _layer_norm(x, gamma, beta, eps):
    mean = jnp.mean(x, axis=-1, keepdims=True)
    var = jnp.mean(jnp.square(x - mean), axis=-1, keepdims=True)
    return (x - mean) * jax.lax.rsqrt(var + eps) * gamma + beta


def _mm(a_f32, w_bf16):
    """a @ w with bf16 operands, f32 accumulation."""
    return jax.lax.dot_general(
        a_f32.astype(jnp.bfloat16), w_bf16.astype(jnp.bfloat16),
        (((a_f32.ndim - 1,), (0,)), ((), ())),
        preferred_element_type=jnp.float32)


# --------------------------------------------------------------------------
# Fused kernel: embedding mapping + all shared Albert layers
# --------------------------------------------------------------------------
def fused_albert_kernel(x_ref, mask_ref, emb_w_ref, emb_b_ref,
                        wqkv_ref, bqkv_ref,
                        wo_ref, bo_ref, g1_ref, be1_ref,
                        wf_ref, bf_ref, wfo_ref, bfo_ref, g2_ref, be2_ref,
                        out_ref, *, num_layers, num_heads, head_dim, eps):
    S = x_ref.shape[1]
    H = wo_ref.shape[1]
    scale = 1.0 / math.sqrt(head_dim)

    x = x_ref[0]          # [S, E] f32
    mask = mask_ref[0]    # [1, S] additive mask, broadcasts over query rows

    # Load all shared weights once; reused (VMEM-resident) across every layer.
    emb_w = emb_w_ref[...]
    wqkv, bqkv = wqkv_ref[...], bqkv_ref[...]
    wo, bo = wo_ref[...], bo_ref[...]
    wf, bf = wf_ref[...], bf_ref[...]
    wfo, bfo = wfo_ref[...], bfo_ref[...]
    g1, be1 = g1_ref[...], be1_ref[...]
    g2, be2 = g2_ref[...], be2_ref[...]
    emb_b = emb_b_ref[...]

    # ---- embedding_hidden_mapping_in: [S,E] @ [E,H] + b ----
    h = _mm(x, emb_w) + emb_b        # [S, H] f32

    def layer_body(_, h):
        # ---- self attention ----
        # Fused Q/K/V projection: one [S,H] @ [H,3H] MXU pass (lane-dense 3H output).
        qkv = _mm(h, wqkv) + bqkv                     # [S, 3H] f32
        # Fold 1/sqrt(head_dim) into q (one [S,H] pass, not per-score-block).
        q = qkv[:, 0:H] * scale
        k = qkv[:, H:2 * H]
        v = qkv[:, 2 * H:3 * H]

        # Heads unrolled with static lane slices; per-head output projection
        # folded in, so no [S,nh,hd] transposes / relayouts are needed.
        proj = jnp.zeros((S, H), jnp.float32)
        for hh in range(num_heads):
            sl = slice(hh * head_dim, (hh + 1) * head_dim)
            qh = q[:, sl].astype(jnp.bfloat16)        # [S, hd]
            kh = k[:, sl].astype(jnp.bfloat16)
            vh = v[:, sl].astype(jnp.bfloat16)

            # scores = qh @ kh.T  (contraction on last dims, no materialized T)
            s = jax.lax.dot_general(qh, kh, (((1,), (1,)), ((), ())),
                                    preferred_element_type=jnp.float32)
            s = s + mask                              # [S,S] + [1,S]
            m = jnp.max(s, axis=-1, keepdims=True)
            p = jnp.exp(s - m)
            denom = jnp.sum(p, axis=-1, keepdims=True)
            probs = p * pl.reciprocal(denom, approx=True)

            ctx = jax.lax.dot_general(probs.astype(jnp.bfloat16), vh,
                                      (((1,), (0,)), ((), ())),
                                      preferred_element_type=jnp.float32)
            # projected_context_layer contribution of this head:
            # ctx_h @ Wo[h*hd:(h+1)*hd, :]  (== einsum('fd,dh->fh'))
            proj = proj + _mm(ctx, wo[sl, :])

        proj = proj + bo
        attn = _layer_norm(h + proj, g1, be1, eps)

        # ---- feed forward ----
        ff = _gelu_new(_mm(attn, wf) + bf)
        ffo = _mm(ff, wfo) + bfo
        return _layer_norm(ffo + attn, g2, be2, eps)

    h = jax.lax.fori_loop(0, num_layers, layer_body, h, unroll=True)
    out_ref[0] = h


# --------------------------------------------------------------------------
# Wrapper: one pallas_call for the whole AlbertTransformer forward
# --------------------------------------------------------------------------
def albert_transformer_forward(hidden_states, attention_mask, params, cfg):
    B, S, E = hidden_states.shape
    H = cfg.hidden_size
    I = cfg.intermediate_size
    nh = cfg.num_attention_heads
    p = params['layer']

    # Fuse Q/K/V weights host-side into a single (H, 3H) matrix + (1, 3H) bias.
    wqkv = jnp.concatenate([p['wq'], p['wk'], p['wv']], axis=1)
    bqkv = jnp.concatenate([p['bq'], p['bk'], p['bv']], axis=1)

    kern = functools.partial(fused_albert_kernel,
                             num_layers=cfg.num_hidden_layers,
                             num_heads=nh,
                             head_dim=H // nh,
                             eps=cfg.layer_norm_eps)

    def full(shape):
        return pl.BlockSpec(shape, lambda b: (0,) * len(shape))

    # NOTE: at real ALBERT-base sizes (H=768, I=3072, long S) on v7x (64 MiB
    # VMEM) set pltpu.CompilerParams(vmem_limit_bytes=...) and/or tile S; the
    # toy config here uses < 1 MiB of VMEM.
    return pl.pallas_call(
        kern,
        out_shape=jax.ShapeDtypeStruct((B, S, H), jnp.float32),
        grid_spec=pltpu.PrefetchScalarGridSpec(
            num_scalar_prefetch=0,
            grid=(B,),                                   # megacore axis (v7x)
            in_specs=[
                pl.BlockSpec((1, S, E), lambda b: (b, 0, 0)),   # hidden_states
                pl.BlockSpec((1, 1, S), lambda b: (b, 0, 0)),   # additive mask
                full((E, H)), full((1, H)),                     # emb mapping
                full((H, 3 * H)), full((1, 3 * H)),             # fused Wqkv, bqkv
                full((H, H)), full((1, H)),                     # Wo, bo
                full((1, H)), full((1, H)),                     # LN1 gamma/beta
                full((H, I)), full((1, I)),                     # ffn
                full((I, H)), full((1, H)),                     # ffn_output
                full((1, H)), full((1, H)),                     # LN2 gamma/beta
            ],
            out_specs=pl.BlockSpec((1, S, H), lambda b: (b, 0, 0)),
        ),
        compiler_params=pltpu.CompilerParams(
            dimension_semantics=("parallel",)),
    )(hidden_states, attention_mask,
      params['emb_w'], params['emb_b'],
      wqkv, bqkv,
      p['wo'], p['bo'], p['g1'], p['be1'],
      p['wf'], p['bf'], p['wfo'], p['bfo'], p['g2'], p['be2'])


# --------------------------------------------------------------------------
# Pure-JAX reference (matmul dtype selectable for a numerics-matched check)
# --------------------------------------------------------------------------
def reference_forward(x, mask, params, cfg, matmul_dtype=jnp.float32):
    md = matmul_dtype

    def mm(a, b):
        return jnp.einsum('...ij,jk->...ik', a.astype(md), b.astype(md),
                          preferred_element_type=jnp.float32)

    p = params['layer']
    nh = cfg.num_attention_heads
    hd = cfg.hidden_size // nh
    scale = 1.0 / math.sqrt(hd)

    h = mm(x, params['emb_w']) + params['emb_b']
    for _ in range(cfg.num_hidden_layers):
        B, S, H = h.shape
        # (scaling q first is mathematically identical to scaling the scores)
        q = (mm(h, p['wq']) + p['bq']) * scale
        k = mm(h, p['wk']) + p['bk']
        v = mm(h, p['wv']) + p['bv']
        q = q.reshape(B, S, nh, hd).transpose(0, 2, 1, 3)
        k = k.reshape(B, S, nh, hd).transpose(0, 2, 1, 3)
        v = v.reshape(B, S, nh, hd).transpose(0, 2, 1, 3)
        s = jnp.einsum('bnqd,bnkd->bnqk', q.astype(md), k.astype(md),
                       preferred_element_type=jnp.float32)
        s = s + mask[:, None, :, :]
        a = jax.nn.softmax(s, axis=-1)
        ctx = jnp.einsum('bnqk,bnkd->bnqd', a.astype(md), v.astype(md),
                         preferred_element_type=jnp.float32)
        ctx = ctx.transpose(0, 2, 1, 3).reshape(B, S, H)
        proj = mm(ctx, p['wo']) + p['bo']
        attn = _layer_norm(h + proj, p['g1'], p['be1'], cfg.layer_norm_eps)
        ff = _gelu_new(mm(attn, p['wf']) + p['bf'])
        ffo = mm(ff, p['wfo']) + p['bfo']
        h = _layer_norm(ffo + attn, p['g2'], p['be2'], cfg.layer_norm_eps)
    return h


# --------------------------------------------------------------------------
# Deterministic parameter init (weights bf16, biases/LN params 2-D f32)
# --------------------------------------------------------------------------
def init_params(key, cfg):
    E, H, I = cfg.embedding_size, cfg.hidden_size, cfg.intermediate_size
    ks = jax.random.split(key, 16)
    std = 0.02
    w = lambda k, shape: (std * jax.random.normal(k, shape, jnp.float32)
                          ).astype(jnp.bfloat16)
    b = lambda k, n: std * jax.random.normal(k, (1, n), jnp.float32)
    layer = dict(
        wq=w(ks[0], (H, H)), bq=b(ks[7], H),
        wk=w(ks[1], (H, H)), bk=b(ks[8], H),
        wv=w(ks[2], (H, H)), bv=b(ks[9], H),
        wo=w(ks[3], (H, H)), bo=b(ks[10], H),
        g1=1.0 + 0.1 * jax.random.normal(ks[11], (1, H), jnp.float32),
        be1=b(ks[12], H),
        wf=w(ks[4], (H, I)), bf=b(ks[13], I),
        wfo=w(ks[5], (I, H)), bfo=b(ks[14], H),
        g2=1.0 + 0.1 * jax.random.normal(ks[15], (1, H), jnp.float32),
        be2=jnp.zeros((1, H), jnp.float32),
    )
    return dict(
        emb_w=w(ks[6], (E, H)),
        emb_b=jnp.zeros((1, H), jnp.float32),
        layer=layer,
    )


if __name__ == "__main__":
    B, S = 2, 8
    cfg = CFG
    key = jax.random.PRNGKey(0)
    k_x, k_p = jax.random.split(key)

    x = jax.random.normal(k_x, (B, S, cfg.embedding_size), dtype=jnp.float32)
    # additive attention mask, [B, 1, S] (0 = attend, -1e9 = masked); mask the
    # last position of batch 1 to exercise the masking path.
    mask = jnp.zeros((B, 1, S), dtype=jnp.float32)
    mask = mask.at[1, 0, S - 1].set(-1e9)

    params = init_params(k_p, cfg)

    out = albert_transformer_forward(x, mask, params, cfg)
    out = jax.block_until_ready(out)
    assert out.shape == (B, S, cfg.hidden_size)

    # 1) numerics-matched reference (bf16 matmul operands, f32 accumulation):
    #    validates kernel structure/logic.
    ref_bf16 = reference_forward(x, mask, params, cfg, matmul_dtype=jnp.bfloat16)
    assert jnp.allclose(out, ref_bf16, rtol=1e-2, atol=1e-2), \
        "mismatch vs bf16-matmul reference"

    # 2) full-f32 reference: sanity bound on bf16 quantization drift.
    ref_f32 = reference_forward(x, mask, params, cfg, matmul_dtype=jnp.float32)
    assert jnp.allclose(out, ref_f32, rtol=5e-2, atol=5e-2), \
        "mismatch vs f32 reference"

    print("KERNEL_OK")
</pallas_src>

<mosaic_0001>
module attributes {stable_mosaic.version = 11 : i64} {
  func.func @fused_albert_kernel(%arg0: i32, %arg1: memref<1x8x64xf32, #tpu.memory_space<vmem>>, %arg2: memref<1x1x8xf32, #tpu.memory_space<vmem>>, %arg3: memref<64x128xbf16, #tpu.memory_space<vmem>>, %arg4: memref<1x128xf32, #tpu.memory_space<vmem>>, %arg5: memref<128x384xbf16, #tpu.memory_space<vmem>>, %arg6: memref<1x384xf32, #tpu.memory_space<vmem>>, %arg7: memref<128x128xbf16, #tpu.memory_space<vmem>>, %arg8: memref<1x128xf32, #tpu.memory_space<vmem>>, %arg9: memref<1x128xf32, #tpu.memory_space<vmem>>, %arg10: memref<1x128xf32, #tpu.memory_space<vmem>>, %arg11: memref<128x256xbf16, #tpu.memory_space<vmem>>, %arg12: memref<1x256xf32, #tpu.memory_space<vmem>>, %arg13: memref<256x128xbf16, #tpu.memory_space<vmem>>, %arg14: memref<1x128xf32, #tpu.memory_space<vmem>>, %arg15: memref<1x128xf32, #tpu.memory_space<vmem>>, %arg16: memref<1x128xf32, #tpu.memory_space<vmem>>, %arg17: memref<1x8x128xf32, #tpu.memory_space<vmem>>) attributes {dimension_semantics = [#tpu.dimension_semantics<parallel>], iteration_bounds = array<i64: 2>, scalar_prefetch = 0 : i64, scratch_operands = 0 : i64, tpu.core_type = #tpu.core_type<tc>, window_params = [{transform_indices = @transform_0, window_bounds = array<i64: 1, 8, 64>}, {transform_indices = @transform_1, window_bounds = array<i64: 1, 1, 8>}, {pipeline_mode = #tpu.pipeline_mode<synchronous>, transform_indices = @transform_2, window_bounds = array<i64: 64, 128>}, {pipeline_mode = #tpu.pipeline_mode<synchronous>, transform_indices = @transform_3, window_bounds = array<i64: 1, 128>}, {pipeline_mode = #tpu.pipeline_mode<synchronous>, transform_indices = @transform_4, window_bounds = array<i64: 128, 384>}, {pipeline_mode = #tpu.pipeline_mode<synchronous>, transform_indices = @transform_5, window_bounds = array<i64: 1, 384>}, {pipeline_mode = #tpu.pipeline_mode<synchronous>, transform_indices = @transform_6, window_bounds = array<i64: 128, 128>}, {pipeline_mode = #tpu.pipeline_mode<synchronous>, transform_indices = @transform_7, window_bounds = array<i64: 1, 128>}, {pipeline_mode = #tpu.pipeline_mode<synchronous>, transform_indices = @transform_8, window_bounds = array<i64: 1, 128>}, {pipeline_mode = #tpu.pipeline_mode<synchronous>, transform_indices = @transform_9, window_bounds = array<i64: 1, 128>}, {pipeline_mode = #tpu.pipeline_mode<synchronous>, transform_indices = @transform_10, window_bounds = array<i64: 128, 256>}, {pipeline_mode = #tpu.pipeline_mode<synchronous>, transform_indices = @transform_11, window_bounds = array<i64: 1, 256>}, {pipeline_mode = #tpu.pipeline_mode<synchronous>, transform_indices = @transform_12, window_bounds = array<i64: 256, 128>}, {pipeline_mode = #tpu.pipeline_mode<synchronous>, transform_indices = @transform_13, window_bounds = array<i64: 1, 128>}, {pipeline_mode = #tpu.pipeline_mode<synchronous>, transform_indices = @transform_14, window_bounds = array<i64: 1, 128>}, {pipeline_mode = #tpu.pipeline_mode<synchronous>, transform_indices = @transform_15, window_bounds = array<i64: 1, 128>}, {transform_indices = @transform_16, window_bounds = array<i64: 1, 8, 128>}]} {
    %c0 = arith.constant 0 : index
    %c0_0 = arith.constant 0 : index
    %c0_1 = arith.constant 0 : index
    %0 = vector.load %arg1[%c0, %c0_0, %c0_1] : memref<1x8x64xf32, #tpu.memory_space<vmem>>, vector<1x8x64xf32>
    %1 = vector.shape_cast %0 : vector<1x8x64xf32> to vector<8x64xf32>
    %c0_2 = arith.constant 0 : index
    %c0_3 = arith.constant 0 : index
    %c0_4 = arith.constant 0 : index
    %2 = vector.load %arg2[%c0_2, %c0_3, %c0_4] : memref<1x1x8xf32, #tpu.memory_space<vmem>>, vector<1x1x8xf32>
    %3 = vector.shape_cast %2 : vector<1x1x8xf32> to vector<1x8xf32>
    %c0_5 = arith.constant 0 : index
    %c0_6 = arith.constant 0 : index
    %4 = vector.load %arg3[%c0_5, %c0_6] : memref<64x128xbf16, #tpu.memory_space<vmem>>, vector<64x128xbf16>
    %c0_7 = arith.constant 0 : index
    %c0_8 = arith.constant 0 : index
    %5 = vector.load %arg5[%c0_7, %c0_8] : memref<128x384xbf16, #tpu.memory_space<vmem>>, vector<128x384xbf16>
    %c0_9 = arith.constant 0 : index
    %c0_10 = arith.constant 0 : index
    %6 = vector.load %arg6[%c0_9, %c0_10] : memref<1x384xf32, #tpu.memory_space<vmem>>, vector<1x384xf32>
    %c0_11 = arith.constant 0 : index
    %c0_12 = arith.constant 0 : index
    %7 = vector.load %arg7[%c0_11, %c0_12] : memref<128x128xbf16, #tpu.memory_space<vmem>>, vector<128x128xbf16>
    %c0_13 = arith.constant 0 : index
    %c0_14 = arith.constant 0 : index
    %8 = vector.load %arg8[%c0_13, %c0_14] : memref<1x128xf32, #tpu.memory_space<vmem>>, vector<1x128xf32>
    %c0_15 = arith.constant 0 : index
    %c0_16 = arith.constant 0 : index
    %9 = vector.load %arg11[%c0_15, %c0_16] : memref<128x256xbf16, #tpu.memory_space<vmem>>, vector<128x256xbf16>
    %c0_17 = arith.constant 0 : index
    %c0_18 = arith.constant 0 : index
    %10 = vector.load %arg12[%c0_17, %c0_18] : memref<1x256xf32, #tpu.memory_space<vmem>>, vector<1x256xf32>
    %c0_19 = arith.constant 0 : index
    %c0_20 = arith.constant 0 : index
    %11 = vector.load %arg13[%c0_19, %c0_20] : memref<256x128xbf16, #tpu.memory_space<vmem>>, vector<256x128xbf16>
    %c0_21 = arith.constant 0 : index
    %c0_22 = arith.constant 0 : index
    %12 = vector.load %arg14[%c0_21, %c0_22] : memref<1x128xf32, #tpu.memory_space<vmem>>, vector<1x128xf32>
    %c0_23 = arith.constant 0 : index
    %c0_24 = arith.constant 0 : index
    %13 = vector.load %arg9[%c0_23, %c0_24] : memref<1x128xf32, #tpu.memory_space<vmem>>, vector<1x128xf32>
    %c0_25 = arith.constant 0 : index
    %c0_26 = arith.constant 0 : index
    %14 = vector.load %arg10[%c0_25, %c0_26] : memref<1x128xf32, #tpu.memory_space<vmem>>, vector<1x128xf32>
    %c0_27 = arith.constant 0 : index
    %c0_28 = arith.constant 0 : index
    %15 = vector.load %arg15[%c0_27, %c0_28] : memref<1x128xf32, #tpu.memory_space<vmem>>, vector<1x128xf32>
    %c0_29 = arith.constant 0 : index
    %c0_30 = arith.constant 0 : index
    %16 = vector.load %arg16[%c0_29, %c0_30] : memref<1x128xf32, #tpu.memory_space<vmem>>, vector<1x128xf32>
    %c0_31 = arith.constant 0 : index
    %c0_32 = arith.constant 0 : index
    %17 = vector.load %arg4[%c0_31, %c0_32] : memref<1x128xf32, #tpu.memory_space<vmem>>, vector<1x128xf32>
    %18 = arith.truncf %1 : vector<8x64xf32> to vector<8x64xbf16>
    %cst = arith.constant dense<0.000000e+00> : vector<8x128xf32>
    %19 = tpu.matmul %18, %4, %cst {dimension_numbers = #tpu.dot_dimension_numbers<[1], [0], [0], [1], [0, 0, 1, 1], [], []>} : vector<8x64xbf16>, vector<64x128xbf16>, vector<8x128xf32> -> vector<8x128xf32>
    %20 = vector.broadcast %17 : vector<1x128xf32> to vector<8x128xf32>
    %21 = arith.addf %19, %20 : vector<8x128xf32>
    %c0_i32 = arith.constant 0 : i32
    %22 = arith.truncf %21 : vector<8x128xf32> to vector<8x128xbf16>
    %cst_33 = arith.constant dense<0.000000e+00> : vector<8x384xf32>
    %23 = tpu.matmul %22, %5, %cst_33 {dimension_numbers = #tpu.dot_dimension_numbers<[1], [0], [0], [1], [0, 0, 1, 1], [], []>} : vector<8x128xbf16>, vector<128x384xbf16>, vector<8x384xf32> -> vector<8x384xf32>
    %24 = vector.broadcast %6 : vector<1x384xf32> to vector<8x384xf32>
    %25 = arith.addf %23, %24 : vector<8x384xf32>
    %26 = vector.extract_strided_slice %25 {offsets = [0, 0], sizes = [8, 128], strides = [1, 1]} : vector<8x384xf32> to vector<8x128xf32>
    %cst_34 = arith.constant 0.176776692 : f32
    %27 = vector.broadcast %cst_34 : f32 to vector<8x128xf32>
    %28 = arith.mulf %26, %27 : vector<8x128xf32>
    %29 = vector.extract_strided_slice %25 {offsets = [0, 128], sizes = [8, 128], strides = [1, 1]} : vector<8x384xf32> to vector<8x128xf32>
    %30 = vector.extract_strided_slice %25 {offsets = [0, 256], sizes = [8, 128], strides = [1, 1]} : vector<8x384xf32> to vector<8x128xf32>
    %cst_35 = arith.constant 0.000000e+00 : f32
    %31 = vector.broadcast %cst_35 : f32 to vector<8x128xf32>
    %32 = vector.extract_strided_slice %28 {offsets = [0, 0], sizes = [8, 32], strides = [1, 1]} : vector<8x128xf32> to vector<8x32xf32>
    %33 = arith.truncf %32 : vector<8x32xf32> to vector<8x32xbf16>
    %34 = vector.extract_strided_slice %29 {offsets = [0, 0], sizes = [8, 32], strides = [1, 1]} : vector<8x128xf32> to vector<8x32xf32>
    %35 = arith.truncf %34 : vector<8x32xf32> to vector<8x32xbf16>
    %36 = vector.extract_strided_slice %30 {offsets = [0, 0], sizes = [8, 32], strides = [1, 1]} : vector<8x128xf32> to vector<8x32xf32>
    %37 = arith.truncf %36 : vector<8x32xf32> to vector<8x32xbf16>
    %cst_36 = arith.constant dense<0.000000e+00> : vector<8x8xf32>
    %38 = tpu.matmul %33, %35, %cst_36 {dimension_numbers = #tpu.dot_dimension_numbers<[1], [1], [0], [0], [0, 0, 1, 0], [], []>} : vector<8x32xbf16>, vector<8x32xbf16>, vector<8x8xf32> -> vector<8x8xf32>
    %39 = vector.broadcast %3 : vector<1x8xf32> to vector<8x8xf32>
    %40 = arith.addf %38, %39 : vector<8x8xf32>
    %cst_37 = arith.constant dense<0xFF800000> : vector<8xf32>
    %41 = vector.multi_reduction <maximumf>, %40, %cst_37 [1] : vector<8x8xf32> to vector<8xf32>
    %42 = vector.shape_cast %41 : vector<8xf32> to vector<8x1xf32>
    %43 = vector.broadcast %42 : vector<8x1xf32> to vector<8x8xf32>
    %44 = arith.subf %40, %43 : vector<8x8xf32>
    %45 = math.exp %44 : vector<8x8xf32>
    %cst_38 = arith.constant dense<0.000000e+00> : vector<8xf32>
    %46 = vector.multi_reduction <add>, %45, %cst_38 [1] : vector<8x8xf32> to vector<8xf32>
    %47 = vector.shape_cast %46 : vector<8xf32> to vector<8x1xf32>
    %48 = tpu.reciprocal %47 {approx = true} : vector<8x1xf32> -> vector<8x1xf32>
    %49 = vector.broadcast %48 : vector<8x1xf32> to vector<8x8xf32>
    %50 = arith.mulf %45, %49 : vector<8x8xf32>
    %51 = arith.truncf %50 : vector<8x8xf32> to vector<8x8xbf16>
    %cst_39 = arith.constant dense<0.000000e+00> : vector<8x32xf32>
    %52 = tpu.matmul %51, %37, %cst_39 {dimension_numbers = #tpu.dot_dimension_numbers<[1], [0], [0], [1], [0, 0, 1, 1], [], []>} : vector<8x8xbf16>, vector<8x32xbf16>, vector<8x32xf32> -> vector<8x32xf32>
    %53 = vector.extract_strided_slice %7 {offsets = [0, 0], sizes = [32, 128], strides = [1, 1]} : vector<128x128xbf16> to vector<32x128xbf16>
    %54 = arith.truncf %52 : vector<8x32xf32> to vector<8x32xbf16>
    %cst_40 = arith.constant dense<0.000000e+00> : vector<8x128xf32>
    %55 = tpu.matmul %54, %53, %cst_40 {dimension_numbers = #tpu.dot_dimension_numbers<[1], [0], [0], [1], [0, 0, 1, 1], [], []>} : vector<8x32xbf16>, vector<32x128xbf16>, vector<8x128xf32> -> vector<8x128xf32>
    %56 = arith.addf %31, %55 : vector<8x128xf32>
    %57 = vector.extract_strided_slice %28 {offsets = [0, 32], sizes = [8, 32], strides = [1, 1]} : vector<8x128xf32> to vector<8x32xf32>
    %58 = arith.truncf %57 : vector<8x32xf32> to vector<8x32xbf16>
    %59 = vector.extract_strided_slice %29 {offsets = [0, 32], sizes = [8, 32], strides = [1, 1]} : vector<8x128xf32> to vector<8x32xf32>
    %60 = arith.truncf %59 : vector<8x32xf32> to vector<8x32xbf16>
    %61 = vector.extract_strided_slice %30 {offsets = [0, 32], sizes = [8, 32], strides = [1, 1]} : vector<8x128xf32> to vector<8x32xf32>
    %62 = arith.truncf %61 : vector<8x32xf32> to vector<8x32xbf16>
    %cst_41 = arith.constant dense<0.000000e+00> : vector<8x8xf32>
    %63 = tpu.matmul %58, %60, %cst_41 {dimension_numbers = #tpu.dot_dimension_numbers<[1], [1], [0], [0], [0, 0, 1, 0], [], []>} : vector<8x32xbf16>, vector<8x32xbf16>, vector<8x8xf32> -> vector<8x8xf32>
    %64 = vector.broadcast %3 : vector<1x8xf32> to vector<8x8xf32>
    %65 = arith.addf %63, %64 : vector<8x8xf32>
    %cst_42 = arith.constant dense<0xFF800000> : vector<8xf32>
    %66 = vector.multi_reduction <maximumf>, %65, %cst_42 [1] : vector<8x8xf32> to vector<8xf32>
    %67 = vector.shape_cast %66 : vector<8xf32> to vector<8x1xf32>
    %68 = vector.broadcast %67 : vector<8x1xf32> to vector<8x8xf32>
    %69 = arith.subf %65, %68 : vector<8x8xf32>
    %70 = math.exp %69 : vector<8x8xf32>
    %cst_43 = arith.constant dense<0.000000e+00> : vector<8xf32>
    %71 = vector.multi_reduction <add>, %70, %cst_43 [1] : vector<8x8xf32> to vector<8xf32>
    %72 = vector.shape_cast %71 : vector<8xf32> to vector<8x1xf32>
    %73 = tpu.reciprocal %72 {approx = true} : vector<8x1xf32> -> vector<8x1xf32>
    %74 = vector.broadcast %73 : vector<8x1xf32> to vector<8x8xf32>
    %75 = arith.mulf %70, %74 : vector<8x8xf32>
    %76 = arith.truncf %75 : vector<8x8xf32> to vector<8x8xbf16>
    %cst_44 = arith.constant dense<0.000000e+00> : vector<8x32xf32>
    %77 = tpu.matmul %76, %62, %cst_44 {dimension_numbers = #tpu.dot_dimension_numbers<[1], [0], [0], [1], [0, 0, 1, 1], [], []>} : vector<8x8xbf16>, vector<8x32xbf16>, vector<8x32xf32> -> vector<8x32xf32>
    %78 = vector.extract_strided_slice %7 {offsets = [32, 0], sizes = [32, 128], strides = [1, 1]} : vector<128x128xbf16> to vector<32x128xbf16>
    %79 = arith.truncf %77 : vector<8x32xf32> to vector<8x32xbf16>
    %cst_45 = arith.constant dense<0.000000e+00> : vector<8x128xf32>
    %80 = tpu.matmul %79, %78, %cst_45 {dimension_numbers = #tpu.dot_dimension_numbers<[1], [0], [0], [1], [0, 0, 1, 1], [], []>} : vector<8x32xbf16>, vector<32x128xbf16>, vector<8x128xf32> -> vector<8x128xf32>
    %81 = arith.addf %56, %80 : vector<8x128xf32>
    %82 = vector.extract_strided_slice %28 {offsets = [0, 64], sizes = [8, 32], strides = [1, 1]} : vector<8x128xf32> to vector<8x32xf32>
    %83 = arith.truncf %82 : vector<8x32xf32> to vector<8x32xbf16>
    %84 = vector.extract_strided_slice %29 {offsets = [0, 64], sizes = [8, 32], strides = [1, 1]} : vector<8x128xf32> to vector<8x32xf32>
    %85 = arith.truncf %84 : vector<8x32xf32> to vector<8x32xbf16>
    %86 = vector.extract_strided_slice %30 {offsets = [0, 64], sizes = [8, 32], strides = [1, 1]} : vector<8x128xf32> to vector<8x32xf32>
    %87 = arith.truncf %86 : vector<8x32xf32> to vector<8x32xbf16>
    %cst_46 = arith.constant dense<0.000000e+00> : vector<8x8xf32>
    %88 = tpu.matmul %83, %85, %cst_46 {dimension_numbers = #tpu.dot_dimension_numbers<[1], [1], [0], [0], [0, 0, 1, 0], [], []>} : vector<8x32xbf16>, vector<8x32xbf16>, vector<8x8xf32> -> vector<8x8xf32>
    %89 = vector.broadcast %3 : vector<1x8xf32> to vector<8x8xf32>
    %90 = arith.addf %88, %89 : vector<8x8xf32>
    %cst_47 = arith.constant dense<0xFF800000> : vector<8xf32>
    %91 = vector.multi_reduction <maximumf>, %90, %cst_47 [1] : vector<8x8xf32> to vector<8xf32>
    %92 = vector.shape_cast %91 : vector<8xf32> to vector<8x1xf32>
    %93 = vector.broadcast %92 : vector<8x1xf32> to vector<8x8xf32>
    %94 = arith.subf %90, %93 : vector<8x8xf32>
    %95 = math.exp %94 : vector<8x8xf32>
    %cst_48 = arith.constant dense<0.000000e+00> : vector<8xf32>
    %96 = vector.multi_reduction <add>, %95, %cst_48 [1] : vector<8x8xf32> to vector<8xf32>
    %97 = vector.shape_cast %96 : vector<8xf32> to vector<8x1xf32>
    %98 = tpu.reciprocal %97 {approx = true} : vector<8x1xf32> -> vector<8x1xf32>
    %99 = vector.broadcast %98 : vector<8x1xf32> to vector<8x8xf32>
    %100 = arith.mulf %95, %99 : vector<8x8xf32>
    %101 = arith.truncf %100 : vector<8x8xf32> to vector<8x8xbf16>
    %cst_49 = arith.constant dense<0.000000e+00> : vector<8x32xf32>
    %102 = tpu.matmul %101, %87, %cst_49 {dimension_numbers = #tpu.dot_dimension_numbers<[1], [0], [0], [1], [0, 0, 1, 1], [], []>} : vector<8x8xbf16>, vector<8x32xbf16>, vector<8x32xf32> -> vector<8x32xf32>
    %103 = vector.extract_strided_slice %7 {offsets = [64, 0], sizes = [32, 128], strides = [1, 1]} : vector<128x128xbf16> to vector<32x128xbf16>
    %104 = arith.truncf %102 : vector<8x32xf32> to vector<8x32xbf16>
    %cst_50 = arith.constant dense<0.000000e+00> : vector<8x128xf32>
    %105 = tpu.matmul %104, %103, %cst_50 {dimension_numbers = #tpu.dot_dimension_numbers<[1], [0], [0], [1], [0, 0, 1, 1], [], []>} : vector<8x32xbf16>, vector<32x128xbf16>, vector<8x128xf32> -> vector<8x128xf32>
    %106 = arith.addf %81, %105 : vector<8x128xf32>
    %107 = vector.extract_strided_slice %28 {offsets = [0, 96], sizes = [8, 32], strides = [1, 1]} : vector<8x128xf32> to vector<8x32xf32>
    %108 = arith.truncf %107 : vector<8x32xf32> to vector<8x32xbf16>
    %109 = vector.extract_strided_slice %29 {offsets = [0, 96], sizes = [8, 32], strides = [1, 1]} : vector<8x128xf32> to vector<8x32xf32>
    %110 = arith.truncf %109 : vector<8x32xf32> to vector<8x32xbf16>
    %111 = vector.extract_strided_slice %30 {offsets = [0, 96], sizes = [8, 32], strides = [1, 1]} : vector<8x128xf32> to vector<8x32xf32>
    %112 = arith.truncf %111 : vector<8x32xf32> to vector<8x32xbf16>
    %cst_51 = arith.constant dense<0.000000e+00> : vector<8x8xf32>
    %113 = tpu.matmul %108, %110, %cst_51 {dimension_numbers = #tpu.dot_dimension_numbers<[1], [1], [0], [0], [0, 0, 1, 0], [], []>} : vector<8x32xbf16>, vector<8x32xbf16>, vector<8x8xf32> -> vector<8x8xf32>
    %114 = vector.broadcast %3 : vector<1x8xf32> to vector<8x8xf32>
    %115 = arith.addf %113, %114 : vector<8x8xf32>
    %cst_52 = arith.constant dense<0xFF800000> : vector<8xf32>
    %116 = vector.multi_reduction <maximumf>, %115, %cst_52 [1] : vector<8x8xf32> to vector<8xf32>
    %117 = vector.shape_cast %116 : vector<8xf32> to vector<8x1xf32>
    %118 = vector.broadcast %117 : vector<8x1xf32> to vector<8x8xf32>
    %119 = arith.subf %115, %118 : vector<8x8xf32>
    %120 = math.exp %119 : vector<8x8xf32>
    %cst_53 = arith.constant dense<0.000000e+00> : vector<8xf32>
    %121 = vector.multi_reduction <add>, %120, %cst_53 [1] : vector<8x8xf32> to vector<8xf32>
    %122 = vector.shape_cast %121 : vector<8xf32> to vector<8x1xf32>
    %123 = tpu.reciprocal %122 {approx = true} : vector<8x1xf32> -> vector<8x1xf32>
    %124 = vector.broadcast %123 : vector<8x1xf32> to vector<8x8xf32>
    %125 = arith.mulf %120, %124 : vector<8x8xf32>
    %126 = arith.truncf %125 : vector<8x8xf32> to vector<8x8xbf16>
    %cst_54 = arith.constant dense<0.000000e+00> : vector<8x32xf32>
    %127 = tpu.matmul %126, %112, %cst_54 {dimension_numbers = #tpu.dot_dimension_numbers<[1], [0], [0], [1], [0, 0, 1, 1], [], []>} : vector<8x8xbf16>, vector<8x32xbf16>, vector<8x32xf32> -> vector<8x32xf32>
    %128 = vector.extract_strided_slice %7 {offsets = [96, 0], sizes = [32, 128], strides = [1, 1]} : vector<128x128xbf16> to vector<32x128xbf16>
    %129 = arith.truncf %127 : vector<8x32xf32> to vector<8x32xbf16>
    %cst_55 = arith.constant dense<0.000000e+00> : vector<8x128xf32>
    %130 = tpu.matmul %129, %128, %cst_55 {dimension_numbers = #tpu.dot_dimension_numbers<[1], [0], [0], [1], [0, 0, 1, 1], [], []>} : vector<8x32xbf16>, vector<32x128xbf16>, vector<8x128xf32> -> vector<8x128xf32>
    %131 = arith.addf %106, %130 : vector<8x128xf32>
    %132 = vector.broadcast %8 : vector<1x128xf32> to vector<8x128xf32>
    %133 = arith.addf %131, %132 : vector<8x128xf32>
    %134 = arith.addf %21, %133 : vector<8x128xf32>
    %cst_56 = arith.constant dense<0.000000e+00> : vector<8xf32>
    %135 = vector.multi_reduction <add>, %134, %cst_56 [1] : vector<8x128xf32> to vector<8xf32>
    %136 = vector.shape_cast %135 : vector<8xf32> to vector<8x1xf32>
    %cst_57 = arith.constant 1.280000e+02 : f32
    %137 = vector.broadcast %cst_57 : f32 to vector<8x1xf32>
    %138 = arith.divf %136, %137 : vector<8x1xf32>
    %139 = vector.broadcast %138 : vector<8x1xf32> to vector<8x128xf32>
    %140 = arith.subf %134, %139 : vector<8x128xf32>
    %141 = arith.mulf %140, %140 : vector<8x128xf32>
    %cst_58 = arith.constant dense<0.000000e+00> : vector<8xf32>
    %142 = vector.multi_reduction <add>, %141, %cst_58 [1] : vector<8x128xf32> to vector<8xf32>
    %143 = vector.shape_cast %142 : vector<8xf32> to vector<8x1xf32>
    %cst_59 = arith.constant 1.280000e+02 : f32
    %144 = vector.broadcast %cst_59 : f32 to vector<8x1xf32>
    %145 = arith.divf %143, %144 : vector<8x1xf32>
    %146 = vector.broadcast %138 : vector<8x1xf32> to vector<8x128xf32>
    %147 = arith.subf %134, %146 : vector<8x128xf32>
    %cst_60 = arith.constant 9.99999996E-13 : f32
    %148 = vector.broadcast %cst_60 : f32 to vector<8x1xf32>
    %149 = arith.addf %145, %148 : vector<8x1xf32>
    %150 = math.rsqrt %149 : vector<8x1xf32>
    %151 = vector.broadcast %150 : vector<8x1xf32> to vector<8x128xf32>
    %152 = arith.mulf %147, %151 : vector<8x128xf32>
    %153 = vector.broadcast %13 : vector<1x128xf32> to vector<8x128xf32>
    %154 = arith.mulf %152, %153 : vector<8x128xf32>
    %155 = vector.broadcast %14 : vector<1x128xf32> to vector<8x128xf32>
    %156 = arith.addf %154, %155 : vector<8x128xf32>
    %157 = arith.truncf %156 : vector<8x128xf32> to vector<8x128xbf16>
    %cst_61 = arith.constant dense<0.000000e+00> : vector<8x256xf32>
    %158 = tpu.matmul %157, %9, %cst_61 {dimension_numbers = #tpu.dot_dimension_numbers<[1], [0], [0], [1], [0, 0, 1, 1], [], []>} : vector<8x128xbf16>, vector<128x256xbf16>, vector<8x256xf32> -> vector<8x256xf32>
    %159 = vector.broadcast %10 : vector<1x256xf32> to vector<8x256xf32>
    %160 = arith.addf %158, %159 : vector<8x256xf32>
    %cst_62 = arith.constant 5.000000e-01 : f32
    %161 = vector.broadcast %cst_62 : f32 to vector<8x256xf32>
    %162 = arith.mulf %161, %160 : vector<8x256xf32>
    %163 = arith.mulf %160, %160 : vector<8x256xf32>
    %164 = arith.mulf %163, %160 : vector<8x256xf32>
    %cst_63 = arith.constant 4.471500e-02 : f32
    %165 = vector.broadcast %cst_63 : f32 to vector<8x256xf32>
    %166 = arith.mulf %165, %164 : vector<8x256xf32>
    %167 = arith.addf %160, %166 : vector<8x256xf32>
    %cst_64 = arith.constant 0.797884583 : f32
    %168 = vector.broadcast %cst_64 : f32 to vector<8x256xf32>
    %169 = arith.mulf %168, %167 : vector<8x256xf32>
    %170 = math.tanh %169 : vector<8x256xf32>
    %cst_65 = arith.constant 1.000000e+00 : f32
    %171 = vector.broadcast %cst_65 : f32 to vector<8x256xf32>
    %172 = arith.addf %171, %170 : vector<8x256xf32>
    %173 = arith.mulf %162, %172 : vector<8x256xf32>
    %174 = arith.truncf %173 : vector<8x256xf32> to vector<8x256xbf16>
    %cst_66 = arith.constant dense<0.000000e+00> : vector<8x128xf32>
    %175 = tpu.matmul %174, %11, %cst_66 {dimension_numbers = #tpu.dot_dimension_numbers<[1], [0], [0], [1], [0, 0, 1, 1], [], []>} : vector<8x256xbf16>, vector<256x128xbf16>, vector<8x128xf32> -> vector<8x128xf32>
    %176 = vector.broadcast %12 : vector<1x128xf32> to vector<8x128xf32>
    %177 = arith.addf %175, %176 : vector<8x128xf32>
    %178 = arith.addf %177, %156 : vector<8x128xf32>
    %cst_67 = arith.constant dense<0.000000e+00> : vector<8xf32>
    %179 = vector.multi_reduction <add>, %178, %cst_67 [1] : vector<8x128xf32> to vector<8xf32>
    %180 = vector.shape_cast %179 : vector<8xf32> to vector<8x1xf32>
    %cst_68 = arith.constant 1.280000e+02 : f32
    %181 = vector.broadcast %cst_68 : f32 to vector<8x1xf32>
    %182 = arith.divf %180, %181 : vector<8x1xf32>
    %183 = vector.broadcast %182 : vector<8x1xf32> to vector<8x128xf32>
    %184 = arith.subf %178, %183 : vector<8x128xf32>
    %185 = arith.mulf %184, %184 : vector<8x128xf32>
    %cst_69 = arith.constant dense<0.000000e+00> : vector<8xf32>
    %186 = vector.multi_reduction <add>, %185, %cst_69 [1] : vector<8x128xf32> to vector<8xf32>
    %187 = vector.shape_cast %186 : vector<8xf32> to vector<8x1xf32>
    %cst_70 = arith.constant 1.280000e+02 : f32
    %188 = vector.broadcast %cst_70 : f32 to vector<8x1xf32>
    %189 = arith.divf %187, %188 : vector<8x1xf32>
    %190 = vector.broadcast %182 : vector<8x1xf32> to vector<8x128xf32>
    %191 = arith.subf %178, %190 : vector<8x128xf32>
    %cst_71 = arith.constant 9.99999996E-13 : f32
    %192 = vector.broadcast %cst_71 : f32 to vector<8x1xf32>
    %193 = arith.addf %189, %192 : vector<8x1xf32>
    %194 = math.rsqrt %193 : vector<8x1xf32>
    %195 = vector.broadcast %194 : vector<8x1xf32> to vector<8x128xf32>
    %196 = arith.mulf %191, %195 : vector<8x128xf32>
    %197 = vector.broadcast %15 : vector<1x128xf32> to vector<8x128xf32>
    %198 = arith.mulf %196, %197 : vector<8x128xf32>
    %199 = vector.broadcast %16 : vector<1x128xf32> to vector<8x128xf32>
    %200 = arith.addf %198, %199 : vector<8x128xf32>
    %c1_i32 = arith.constant 1 : i32
    %201 = arith.truncf %200 : vector<8x128xf32> to vector<8x128xbf16>
    %cst_72 = arith.constant dense<0.000000e+00> : vector<8x384xf32>
    %202 = tpu.matmul %201, %5, %cst_72 {dimension_numbers = #tpu.dot_dimension_numbers<[1], [0], [0], [1], [0, 0, 1, 1], [], []>} : vector<8x128xbf16>, vector<128x384xbf16>, vector<8x384xf32> -> vector<8x384xf32>
    %203 = vector.broadcast %6 : vector<1x384xf32> to vector<8x384xf32>
    %204 = arith.addf %202, %203 : vector<8x384xf32>
    %205 = vector.extract_strided_slice %204 {offsets = [0, 0], sizes = [8, 128], strides = [1, 1]} : vector<8x384xf32> to vector<8x128xf32>
    %cst_73 = arith.constant 0.176776692 : f32
    %206 = vector.broadcast %cst_73 : f32 to vector<8x128xf32>
    %207 = arith.mulf %205, %206 : vector<8x128xf32>
    %208 = vector.extract_strided_slice %204 {offsets = [0, 128], sizes = [8, 128], strides = [1, 1]} : vector<8x384xf32> to vector<8x128xf32>
    %209 = vector.extract_strided_slice %204 {offsets = [0, 256], sizes = [8, 128], strides = [1, 1]} : vector<8x384xf32> to vector<8x128xf32>
    %cst_74 = arith.constant 0.000000e+00 : f32
    %210 = vector.broadcast %cst_74 : f32 to vector<8x128xf32>
    %211 = vector.extract_strided_slice %207 {offsets = [0, 0], sizes = [8, 32], strides = [1, 1]} : vector<8x128xf32> to vector<8x32xf32>
    %212 = arith.truncf %211 : vector<8x32xf32> to vector<8x32xbf16>
    %213 = vector.extract_strided_slice %208 {offsets = [0, 0], sizes = [8, 32], strides = [1, 1]} : vector<8x128xf32> to vector<8x32xf32>
    %214 = arith.truncf %213 : vector<8x32xf32> to vector<8x32xbf16>
    %215 = vector.extract_strided_slice %209 {offsets = [0, 0], sizes = [8, 32], strides = [1, 1]} : vector<8x128xf32> to vector<8x32xf32>
    %216 = arith.truncf %215 : vector<8x32xf32> to vector<8x32xbf16>
    %cst_75 = arith.constant dense<0.000000e+00> : vector<8x8xf32>
    %217 = tpu.matmul %212, %214, %cst_75 {dimension_numbers = #tpu.dot_dimension_numbers<[1], [1], [0], [0], [0, 0, 1, 0], [], []>} : vector<8x32xbf16>, vector<8x32xbf16>, vector<8x8xf32> -> vector<8x8xf32>
    %218 = vector.broadcast %3 : vector<1x8xf32> to vector<8x8xf32>
    %219 = arith.addf %217, %218 : vector<8x8xf32>
    %cst_76 = arith.constant dense<0xFF800000> : vector<8xf32>
    %220 = vector.multi_reduction <maximumf>, %219, %cst_76 [1] : vector<8x8xf32> to vector<8xf32>
    %221 = vector.shape_cast %220 : vector<8xf32> to vector<8x1xf32>
    %222 = vector.broadcast %221 : vector<8x1xf32> to vector<8x8xf32>
    %223 = arith.subf %219, %222 : vector<8x8xf32>
    %224 = math.exp %223 : vector<8x8xf32>
    %cst_77 = arith.constant dense<0.000000e+00> : vector<8xf32>
    %225 = vector.multi_reduction <add>, %224, %cst_77 [1] : vector<8x8xf32> to vector<8xf32>
    %226 = vector.shape_cast %225 : vector<8xf32> to vector<8x1xf32>
    %227 = tpu.reciprocal %226 {approx = true} : vector<8x1xf32> -> vector<8x1xf32>
    %228 = vector.broadcast %227 : vector<8x1xf32> to vector<8x8xf32>
    %229 = arith.mulf %224, %228 : vector<8x8xf32>
    %230 = arith.truncf %229 : vector<8x8xf32> to vector<8x8xbf16>
    %cst_78 = arith.constant dense<0.000000e+00> : vector<8x32xf32>
    %231 = tpu.matmul %230, %216, %cst_78 {dimension_numbers = #tpu.dot_dimension_numbers<[1], [0], [0], [1], [0, 0, 1, 1], [], []>} : vector<8x8xbf16>, vector<8x32xbf16>, vector<8x32xf32> -> vector<8x32xf32>
    %232 = vector.extract_strided_slice %7 {offsets = [0, 0], sizes = [32, 128], strides = [1, 1]} : vector<128x128xbf16> to vector<32x128xbf16>
    %233 = arith.truncf %231 : vector<8x32xf32> to vector<8x32xbf16>
    %cst_79 = arith.constant dense<0.000000e+00> : vector<8x128xf32>
    %234 = tpu.matmul %233, %232, %cst_79 {dimension_numbers = #tpu.dot_dimension_numbers<[1], [0], [0], [1], [0, 0, 1, 1], [], []>} : vector<8x32xbf16>, vector<32x128xbf16>, vector<8x128xf32> -> vector<8x128xf32>
    %235 = arith.addf %210, %234 : vector<8x128xf32>
    %236 = vector.extract_strided_slice %207 {offsets = [0, 32], sizes = [8, 32], strides = [1, 1]} : vector<8x128xf32> to vector<8x32xf32>
    %237 = arith.truncf %236 : vector<8x32xf32> to vector<8x32xbf16>
    %238 = vector.extract_strided_slice %208 {offsets = [0, 32], sizes = [8, 32], strides = [1, 1]} : vector<8x128xf32> to vector<8x32xf32>
    %239 = arith.truncf %238 : vector<8x32xf32> to vector<8x32xbf16>
    %240 = vector.extract_strided_slice %209 {offsets = [0, 32], sizes = [8, 32], strides = [1, 1]} : vector<8x128xf32> to vector<8x32xf32>
    %241 = arith.truncf %240 : vector<8x32xf32> to vector<8x32xbf16>
    %cst_80 = arith.constant dense<0.000000e+00> : vector<8x8xf32>
    %242 = tpu.matmul %237, %239, %cst_80 {dimension_numbers = #tpu.dot_dimension_numbers<[1], [1], [0], [0], [0, 0, 1, 0], [], []>} : vector<8x32xbf16>, vector<8x32xbf16>, vector<8x8xf32> -> vector<8x8xf32>
    %243 = vector.broadcast %3 : vector<1x8xf32> to vector<8x8xf32>
    %244 = arith.addf %242, %243 : vector<8x8xf32>
    %cst_81 = arith.constant dense<0xFF800000> : vector<8xf32>
    %245 = vector.multi_reduction <maximumf>, %244, %cst_81 [1] : vector<8x8xf32> to vector<8xf32>
    %246 = vector.shape_cast %245 : vector<8xf32> to vector<8x1xf32>
    %247 = vector.broadcast %246 : vector<8x1xf32> to vector<8x8xf32>
    %248 = arith.subf %244, %247 : vector<8x8xf32>
    %249 = math.exp %248 : vector<8x8xf32>
    %cst_82 = arith.constant dense<0.000000e+00> : vector<8xf32>
    %250 = vector.multi_reduction <add>, %249, %cst_82 [1] : vector<8x8xf32> to vector<8xf32>
    %251 = vector.shape_cast %250 : vector<8xf32> to vector<8x1xf32>
    %252 = tpu.reciprocal %251 {approx = true} : vector<8x1xf32> -> vector<8x1xf32>
    %253 = vector.broadcast %252 : vector<8x1xf32> to vector<8x8xf32>
    %254 = arith.mulf %249, %253 : vector<8x8xf32>
    %255 = arith.truncf %254 : vector<8x8xf32> to vector<8x8xbf16>
    %cst_83 = arith.constant dense<0.000000e+00> : vector<8x32xf32>
    %256 = tpu.matmul %255, %241, %cst_83 {dimension_numbers = #tpu.dot_dimension_numbers<[1], [0], [0], [1], [0, 0, 1, 1], [], []>} : vector<8x8xbf16>, vector<8x32xbf16>, vector<8x32xf32> -> vector<8x32xf32>
    %257 = vector.extract_strided_slice %7 {offsets = [32, 0], sizes = [32, 128], strides = [1, 1]} : vector<128x128xbf16> to vector<32x128xbf16>
    %258 = arith.truncf %256 : vector<8x32xf32> to vector<8x32xbf16>
    %cst_84 = arith.constant dense<0.000000e+00> : vector<8x128xf32>
    %259 = tpu.matmul %258, %257, %cst_84 {dimension_numbers = #tpu.dot_dimension_numbers<[1], [0], [0], [1], [0, 0, 1, 1], [], []>} : vector<8x32xbf16>, vector<32x128xbf16>, vector<8x128xf32> -> vector<8x128xf32>
    %260 = arith.addf %235, %259 : vector<8x128xf32>
    %261 = vector.extract_strided_slice %207 {offsets = [0, 64], sizes = [8, 32], strides = [1, 1]} : vector<8x128xf32> to vector<8x32xf32>
    %262 = arith.truncf %261 : vector<8x32xf32> to vector<8x32xbf16>
    %263 = vector.extract_strided_slice %208 {offsets = [0, 64], sizes = [8, 32], strides = [1, 1]} : vector<8x128xf32> to vector<8x32xf32>
    %264 = arith.truncf %263 : vector<8x32xf32> to vector<8x32xbf16>
    %265 = vector.extract_strided_slice %209 {offsets = [0, 64], sizes = [8, 32], strides = [1, 1]} : vector<8x128xf32> to vector<8x32xf32>
    %266 = arith.truncf %265 : vector<8x32xf32> to vector<8x32xbf16>
    %cst_85 = arith.constant dense<0.000000e+00> : vector<8x8xf32>
    %267 = tpu.matmul %262, %264, %cst_85 {dimension_numbers = #tpu.dot_dimension_numbers<[1], [1], [0], [0], [0, 0, 1, 0], [], []>} : vector<8x32xbf16>, vector<8x32xbf16>, vector<8x8xf32> -> vector<8x8xf32>
    %268 = vector.broadcast %3 : vector<1x8xf32> to vector<8x8xf32>
    %269 = arith.addf %267, %268 : vector<8x8xf32>
    %cst_86 = arith.constant dense<0xFF800000> : vector<8xf32>
    %270 = vector.multi_reduction <maximumf>, %269, %cst_86 [1] : vector<8x8xf32> to vector<8xf32>
    %271 = vector.shape_cast %270 : vector<8xf32> to vector<8x1xf32>
    %272 = vector.broadcast %271 : vector<8x1xf32> to vector<8x8xf32>
    %273 = arith.subf %269, %272 : vector<8x8xf32>
    %274 = math.exp %273 : vector<8x8xf32>
    %cst_87 = arith.constant dense<0.000000e+00> : vector<8xf32>
    %275 = vector.multi_reduction <add>, %274, %cst_87 [1] : vector<8x8xf32> to vector<8xf32>
    %276 = vector.shape_cast %275 : vector<8xf32> to vector<8x1xf32>
    %277 = tpu.reciprocal %276 {approx = true} : vector<8x1xf32> -> vector<8x1xf32>
    %278 = vector.broadcast %277 : vector<8x1xf32> to vector<8x8xf32>
    %279 = arith.mulf %274, %278 : vector<8x8xf32>
    %280 = arith.truncf %279 : vector<8x8xf32> to vector<8x8xbf16>
    %cst_88 = arith.constant dense<0.000000e+00> : vector<8x32xf32>
    %281 = tpu.matmul %280, %266, %cst_88 {dimension_numbers = #tpu.dot_dimension_numbers<[1], [0], [0], [1], [0, 0, 1, 1], [], []>} : vector<8x8xbf16>, vector<8x32xbf16>, vector<8x32xf32> -> vector<8x32xf32>
    %282 = vector.extract_strided_slice %7 {offsets = [64, 0], sizes = [32, 128], strides = [1, 1]} : vector<128x128xbf16> to vector<32x128xbf16>
    %283 = arith.truncf %281 : vector<8x32xf32> to vector<8x32xbf16>
    %cst_89 = arith.constant dense<0.000000e+00> : vector<8x128xf32>
    %284 = tpu.matmul %283, %282, %cst_89 {dimension_numbers = #tpu.dot_dimension_numbers<[1], [0], [0], [1], [0, 0, 1, 1], [], []>} : vector<8x32xbf16>, vector<32x128xbf16>, vector<8x128xf32> -> vector<8x128xf32>
    %285 = arith.addf %260, %284 : vector<8x128xf32>
    %286 = vector.extract_strided_slice %207 {offsets = [0, 96], sizes = [8, 32], strides = [1, 1]} : vector<8x128xf32> to vector<8x32xf32>
    %287 = arith.truncf %286 : vector<8x32xf32> to vector<8x32xbf16>
    %288 = vector.extract_strided_slice %208 {offsets = [0, 96], sizes = [8, 32], strides = [1, 1]} : vector<8x128xf32> to vector<8x32xf32>
    %289 = arith.truncf %288 : vector<8x32xf32> to vector<8x32xbf16>
    %290 = vector.extract_strided_slice %209 {offsets = [0, 96], sizes = [8, 32], strides = [1, 1]} : vector<8x128xf32> to vector<8x32xf32>
    %291 = arith.truncf %290 : vector<8x32xf32> to vector<8x32xbf16>
    %cst_90 = arith.constant dense<0.000000e+00> : vector<8x8xf32>
    %292 = tpu.matmul %287, %289, %cst_90 {dimension_numbers = #tpu.dot_dimension_numbers<[1], [1], [0], [0], [0, 0, 1, 0], [], []>} : vector<8x32xbf16>, vector<8x32xbf16>, vector<8x8xf32> -> vector<8x8xf32>
    %293 = vector.broadcast %3 : vector<1x8xf32> to vector<8x8xf32>
    %294 = arith.addf %292, %293 : vector<8x8xf32>
    %cst_91 = arith.constant dense<0xFF800000> : vector<8xf32>
    %295 = vector.multi_reduction <maximumf>, %294, %cst_91 [1] : vector<8x8xf32> to vector<8xf32>
    %296 = vector.shape_cast %295 : vector<8xf32> to vector<8x1xf32>
    %297 = vector.broadcast %296 : vector<8x1xf32> to vector<8x8xf32>
    %298 = arith.subf %294, %297 : vector<8x8xf32>
    %299 = math.exp %298 : vector<8x8xf32>
    %cst_92 = arith.constant dense<0.000000e+00> : vector<8xf32>
    %300 = vector.multi_reduction <add>, %299, %cst_92 [1] : vector<8x8xf32> to vector<8xf32>
    %301 = vector.shape_cast %300 : vector<8xf32> to vector<8x1xf32>
    %302 = tpu.reciprocal %301 {approx = true} : vector<8x1xf32> -> vector<8x1xf32>
    %303 = vector.broadcast %302 : vector<8x1xf32> to vector<8x8xf32>
    %304 = arith.mulf %299, %303 : vector<8x8xf32>
    %305 = arith.truncf %304 : vector<8x8xf32> to vector<8x8xbf16>
    %cst_93 = arith.constant dense<0.000000e+00> : vector<8x32xf32>
    %306 = tpu.matmul %305, %291, %cst_93 {dimension_numbers = #tpu.dot_dimension_numbers<[1], [0], [0], [1], [0, 0, 1, 1], [], []>} : vector<8x8xbf16>, vector<8x32xbf16>, vector<8x32xf32> -> vector<8x32xf32>
    %307 = vector.extract_strided_slice %7 {offsets = [96, 0], sizes = [32, 128], strides = [1, 1]} : vector<128x128xbf16> to vector<32x128xbf16>
    %308 = arith.truncf %306 : vector<8x32xf32> to vector<8x32xbf16>
    %cst_94 = arith.constant dense<0.000000e+00> : vector<8x128xf32>
    %309 = tpu.matmul %308, %307, %cst_94 {dimension_numbers = #tpu.dot_dimension_numbers<[1], [0], [0], [1], [0, 0, 1, 1], [], []>} : vector<8x32xbf16>, vector<32x128xbf16>, vector<8x128xf32> -> vector<8x128xf32>
    %310 = arith.addf %285, %309 : vector<8x128xf32>
    %311 = vector.broadcast %8 : vector<1x128xf32> to vector<8x128xf32>
    %312 = arith.addf %310, %311 : vector<8x128xf32>
    %313 = arith.addf %200, %312 : vector<8x128xf32>
    %cst_95 = arith.constant dense<0.000000e+00> : vector<8xf32>
    %314 = vector.multi_reduction <add>, %313, %cst_95 [1] : vector<8x128xf32> to vector<8xf32>
    %315 = vector.shape_cast %314 : vector<8xf32> to vector<8x1xf32>
    %cst_96 = arith.constant 1.280000e+02 : f32
    %316 = vector.broadcast %cst_96 : f32 to vector<8x1xf32>
    %317 = arith.divf %315, %316 : vector<8x1xf32>
    %318 = vector.broadcast %317 : vector<8x1xf32> to vector<8x128xf32>
    %319 = arith.subf %313, %318 : vector<8x128xf32>
    %320 = arith.mulf %319, %319 : vector<8x128xf32>
    %cst_97 = arith.constant dense<0.000000e+00> : vector<8xf32>
    %321 = vector.multi_reduction <add>, %320, %cst_97 [1] : vector<8x128xf32> to vector<8xf32>
    %322 = vector.shape_cast %321 : vector<8xf32> to vector<8x1xf32>
    %cst_98 = arith.constant 1.280000e+02 : f32
    %323 = vector.broadcast %cst_98 : f32 to vector<8x1xf32>
    %324 = arith.divf %322, %323 : vector<8x1xf32>
    %325 = vector.broadcast %317 : vector<8x1xf32> to vector<8x128xf32>
    %326 = arith.subf %313, %325 : vector<8x128xf32>
    %cst_99 = arith.constant 9.99999996E-13 : f32
    %327 = vector.broadcast %cst_99 : f32 to vector<8x1xf32>
    %328 = arith.addf %324, %327 : vector<8x1xf32>
    %329 = math.rsqrt %328 : vector<8x1xf32>
    %330 = vector.broadcast %329 : vector<8x1xf32> to vector<8x128xf32>
    %331 = arith.mulf %326, %330 : vector<8x128xf32>
    %332 = vector.broadcast %13 : vector<1x128xf32> to vector<8x128xf32>
    %333 = arith.mulf %331, %332 : vector<8x128xf32>
    %334 = vector.broadcast %14 : vector<1x128xf32> to vector<8x128xf32>
    %335 = arith.addf %333, %334 : vector<8x128xf32>
    %336 = arith.truncf %335 : vector<8x128xf32> to vector<8x128xbf16>
    %cst_100 = arith.constant dense<0.000000e+00> : vector<8x256xf32>
    %337 = tpu.matmul %336, %9, %cst_100 {dimension_numbers = #tpu.dot_dimension_numbers<[1], [0], [0], [1], [0, 0, 1, 1], [], []>} : vector<8x128xbf16>, vector<128x256xbf16>, vector<8x256xf32> -> vector<8x256xf32>
    %338 = vector.broadcast %10 : vector<1x256xf32> to vector<8x256xf32>
    %339 = arith.addf %337, %338 : vector<8x256xf32>
    %cst_101 = arith.constant 5.000000e-01 : f32
    %340 = vector.broadcast %cst_101 : f32 to vector<8x256xf32>
    %341 = arith.mulf %340, %339 : vector<8x256xf32>
    %342 = arith.mulf %339, %339 : vector<8x256xf32>
    %343 = arith.mulf %342, %339 : vector<8x256xf32>
    %cst_102 = arith.constant 4.471500e-02 : f32
    %344 = vector.broadcast %cst_102 : f32 to vector<8x256xf32>
    %345 = arith.mulf %344, %343 : vector<8x256xf32>
    %346 = arith.addf %339, %345 : vector<8x256xf32>
    %cst_103 = arith.constant 0.797884583 : f32
    %347 = vector.broadcast %cst_103 : f32 to vector<8x256xf32>
    %348 = arith.mulf %347, %346 : vector<8x256xf32>
    %349 = math.tanh %348 : vector<8x256xf32>
    %cst_104 = arith.constant 1.000000e+00 : f32
    %350 = vector.broadcast %cst_104 : f32 to vector<8x256xf32>
    %351 = arith.addf %350, %349 : vector<8x256xf32>
    %352 = arith.mulf %341, %351 : vector<8x256xf32>
    %353 = arith.truncf %352 : vector<8x256xf32> to vector<8x256xbf16>
    %cst_105 = arith.constant dense<0.000000e+00> : vector<8x128xf32>
    %354 = tpu.matmul %353, %11, %cst_105 {dimension_numbers = #tpu.dot_dimension_numbers<[1], [0], [0], [1], [0, 0, 1, 1], [], []>} : vector<8x256xbf16>, vector<256x128xbf16>, vector<8x128xf32> -> vector<8x128xf32>
    %355 = vector.broadcast %12 : vector<1x128xf32> to vector<8x128xf32>
    %356 = arith.addf %354, %355 : vector<8x128xf32>
    %357 = arith.addf %356, %335 : vector<8x128xf32>
    %cst_106 = arith.constant dense<0.000000e+00> : vector<8xf32>
    %358 = vector.multi_reduction <add>, %357, %cst_106 [1] : vector<8x128xf32> to vector<8xf32>
    %359 = vector.shape_cast %358 : vector<8xf32> to vector<8x1xf32>
    %cst_107 = arith.constant 1.280000e+02 : f32
    %360 = vector.broadcast %cst_107 : f32 to vector<8x1xf32>
    %361 = arith.divf %359, %360 : vector<8x1xf32>
    %362 = vector.broadcast %361 : vector<8x1xf32> to vector<8x128xf32>
    %363 = arith.subf %357, %362 : vector<8x128xf32>
    %364 = arith.mulf %363, %363 : vector<8x128xf32>
    %cst_108 = arith.constant dense<0.000000e+00> : vector<8xf32>
    %365 = vector.multi_reduction <add>, %364, %cst_108 [1] : vector<8x128xf32> to vector<8xf32>
    %366 = vector.shape_cast %365 : vector<8xf32> to vector<8x1xf32>
    %cst_109 = arith.constant 1.280000e+02 : f32
    %367 = vector.broadcast %cst_109 : f32 to vector<8x1xf32>
    %368 = arith.divf %366, %367 : vector<8x1xf32>
    %369 = vector.broadcast %361 : vector<8x1xf32> to vector<8x128xf32>
    %370 = arith.subf %357, %369 : vector<8x128xf32>
    %cst_110 = arith.constant 9.99999996E-13 : f32
    %371 = vector.broadcast %cst_110 : f32 to vector<8x1xf32>
    %372 = arith.addf %368, %371 : vector<8x1xf32>
    %373 = math.rsqrt %372 : vector<8x1xf32>
    %374 = vector.broadcast %373 : vector<8x1xf32> to vector<8x128xf32>
    %375 = arith.mulf %370, %374 : vector<8x128xf32>
    %376 = vector.broadcast %15 : vector<1x128xf32> to vector<8x128xf32>
    %377 = arith.mulf %375, %376 : vector<8x128xf32>
    %378 = vector.broadcast %16 : vector<1x128xf32> to vector<8x128xf32>
    %379 = arith.addf %377, %378 : vector<8x128xf32>
    %c0_111 = arith.constant 0 : index
    %c0_112 = arith.constant 0 : index
    %c0_113 = arith.constant 0 : index
    %380 = vector.load %arg17[%c0_111, %c0_112, %c0_113] : memref<1x8x128xf32, #tpu.memory_space<vmem>>, vector<1x8x128xf32>
    %381 = vector.shape_cast %380 : vector<1x8x128xf32> to vector<8x128xf32>
    %382 = vector.shape_cast %379 : vector<8x128xf32> to vector<1x8x128xf32>
    tpu.vector_store %arg17[%c0_111, %c0_112, %c0_113], %382 {strides = array<i32>} : memref<1x8x128xf32, #tpu.memory_space<vmem>>, vector<1x8x128xf32>,
    return
  }
  func.func @transform_0(%arg0: i32) -> (i32, i32, i32) {
    %c0_i32 = arith.constant 0 : i32
    %c0_i32_0 = arith.constant 0 : i32
    %c0_i32_1 = arith.constant 0 : i32
    return %arg0, %c0_i32, %c0_i32_0 : i32, i32, i32
  }
  func.func @transform_1(%arg0: i32) -> (i32, i32, i32) {
    %c0_i32 = arith.constant 0 : i32
    %c0_i32_0 = arith.constant 0 : i32
    %c0_i32_1 = arith.constant 0 : i32
    return %arg0, %c0_i32, %c0_i32_0 : i32, i32, i32
  }
  func.func @transform_2(%arg0: i32) -> (i32, i32) {
    %c0_i32 = arith.constant 0 : i32
    %c0_i32_0 = arith.constant 0 : i32
    %c0_i32_1 = arith.constant 0 : i32
    return %c0_i32, %c0_i32_0 : i32, i32
  }
  func.func @transform_3(%arg0: i32) -> (i32, i32) {
    %c0_i32 = arith.constant 0 : i32
    %c0_i32_0 = arith.constant 0 : i32
    %c0_i32_1 = arith.constant 0 : i32
    return %c0_i32, %c0_i32_0 : i32, i32
  }
  func.func @transform_4(%arg0: i32) -> (i32, i32) {
    %c0_i32 = arith.constant 0 : i32
    %c0_i32_0 = arith.constant 0 : i32
    %c0_i32_1 = arith.constant 0 : i32
    return %c0_i32, %c0_i32_0 : i32, i32
  }
  func.func @transform_5(%arg0: i32) -> (i32, i32) {
    %c0_i32 = arith.constant 0 : i32
    %c0_i32_0 = arith.constant 0 : i32
    %c0_i32_1 = arith.constant 0 : i32
    return %c0_i32, %c0_i32_0 : i32, i32
  }
  func.func @transform_6(%arg0: i32) -> (i32, i32) {
    %c0_i32 = arith.constant 0 : i32
    %c0_i32_0 = arith.constant 0 : i32
    %c0_i32_1 = arith.constant 0 : i32
    return %c0_i32, %c0_i32_0 : i32, i32
  }
  func.func @transform_7(%arg0: i32) -> (i32, i32) {
    %c0_i32 = arith.constant 0 : i32
    %c0_i32_0 = arith.constant 0 : i32
    %c0_i32_1 = arith.constant 0 : i32
    return %c0_i32, %c0_i32_0 : i32, i32
  }
  func.func @transform_8(%arg0: i32) -> (i32, i32) {
    %c0_i32 = arith.constant 0 : i32
    %c0_i32_0 = arith.constant 0 : i32
    %c0_i32_1 = arith.constant 0 : i32
    return %c0_i32, %c0_i32_0 : i32, i32
  }
  func.func @transform_9(%arg0: i32) -> (i32, i32) {
    %c0_i32 = arith.constant 0 : i32
    %c0_i32_0 = arith.constant 0 : i32
    %c0_i32_1 = arith.constant 0 : i32
    return %c0_i32, %c0_i32_0 : i32, i32
  }
  func.func @transform_10(%arg0: i32) -> (i32, i32) {
    %c0_i32 = arith.constant 0 : i32
    %c0_i32_0 = arith.constant 0 : i32
    %c0_i32_1 = arith.constant 0 : i32
    return %c0_i32, %c0_i32_0 : i32, i32
  }
  func.func @transform_11(%arg0: i32) -> (i32, i32) {
    %c0_i32 = arith.constant 0 : i32
    %c0_i32_0 = arith.constant 0 : i32
    %c0_i32_1 = arith.constant 0 : i32
    return %c0_i32, %c0_i32_0 : i32, i32
  }
  func.func @transform_12(%arg0: i32) -> (i32, i32) {
    %c0_i32 = arith.constant 0 : i32
    %c0_i32_0 = arith.constant 0 : i32
    %c0_i32_1 = arith.constant 0 : i32
    return %c0_i32, %c0_i32_0 : i32, i32
  }
  func.func @transform_13(%arg0: i32) -> (i32, i32) {
    %c0_i32 = arith.constant 0 : i32
    %c0_i32_0 = arith.constant 0 : i32
    %c0_i32_1 = arith.constant 0 : i32
    return %c0_i32, %c0_i32_0 : i32, i32
  }
  func.func @transform_14(%arg0: i32) -> (i32, i32) {
    %c0_i32 = arith.constant 0 : i32
    %c0_i32_0 = arith.constant 0 : i32
    %c0_i32_1 = arith.constant 0 : i32
    return %c0_i32, %c0_i32_0 : i32, i32
  }
  func.func @transform_15(%arg0: i32) -> (i32, i32) {
    %c0_i32 = arith.constant 0 : i32
    %c0_i32_0 = arith.constant 0 : i32
    %c0_i32_1 = arith.constant 0 : i32
    return %c0_i32, %c0_i32_0 : i32, i32
  }
  func.func @transform_16(%arg0: i32) -> (i32, i32, i32) {
    %c0_i32 = arith.constant 0 : i32
    %c0_i32_0 = arith.constant 0 : i32
    %c0_i32_1 = arith.constant 0 : i32
    return %arg0, %c0_i32, %c0_i32_0 : i32, i32, i32
  }
}

</mosaic_0001>

<llo_original>
// kernel: tpu_custom_call.1
$region0: #{tpu_custom_call.1}
  #allocation0 [shape = 'u32[]', space=smem, size = 0x4, offset = 0x4, fixed_abs, tag = 'smem constant byte address 0x4 - core index']
  #allocation1 [shape = 'u32[144,128]{1,0:T(1,128)}', space=vmem, size = 0x12000, scoped, tag = 'internal scratch']
  %s0 = inlined_call_operand.hbm [shape: f32[2,8,64], index: 0, kind: input, shape index: {}]
  %s1 = inlined_call_operand.hbm [shape: f32[2,1,8], index: 1, kind: input, shape index: {}]
  %s2 = inlined_call_operand.hbm [shape: bf16[64,128], index: 2, kind: input, shape index: {}]
  %s3 = inlined_call_operand.hbm [shape: f32[1,128], index: 3, kind: input, shape index: {}]
  %s4 = inlined_call_operand.hbm [shape: bf16[128,384], index: 4, kind: input, shape index: {}]
  %s5 = inlined_call_operand.vmem [shape: f32[1,384], index: 5, kind: input, shape index: {}]
  %s6 = inlined_call_operand.hbm [shape: bf16[128,128], index: 6, kind: input, shape index: {}]
  %s7 = inlined_call_operand.vmem [shape: f32[1,128], index: 7, kind: input, shape index: {}]
  %s8 = inlined_call_operand.vmem [shape: f32[1,128], index: 8, kind: input, shape index: {}]
  %s9 = inlined_call_operand.vmem [shape: f32[1,128], index: 9, kind: input, shape index: {}]
  %s10 = inlined_call_operand.hbm [shape: bf16[128,256], index: 10, kind: input, shape index: {}]
  %s11 = inlined_call_operand.vmem [shape: f32[1,256], index: 11, kind: input, shape index: {}]
  %s12 = inlined_call_operand.hbm [shape: bf16[256,128], index: 12, kind: input, shape index: {}]
  %s13 = inlined_call_operand.vmem [shape: f32[1,128], index: 13, kind: input, shape index: {}]
  %s14 = inlined_call_operand.vmem [shape: f32[1,128], index: 14, kind: input, shape index: {}]
  %s15 = inlined_call_operand.vmem [shape: f32[1,128], index: 15, kind: input, shape index: {}]
  %s16 = inlined_call_operand.hbm [shape: f32[2,8,128], index: 16, kind: output, shape index: {}]
  %s17 = sld [smem:[#allocation0]]
  $region129: #{tpu_custom_call.1} parent=0
    _
  %s19 = ssub.s32 1, %s17
  %s20 = scalar_select 0, %s19, %s17
  $region1: #{tpu_custom_call.1} parent=0
    #allocation2 [shape = 'u8[8192]{0}', space=vmem, size = 0x2000, scoped, tag = 'input window, operand 0']
    #allocation3 [shape = 's32[2]{0}', space=sflag, size = 0x8, scoped, tag = 'scoped memory for tpu_custom_call.1']
    #allocation4 [shape = 's32[2]{0}', space=sflag, size = 0x8, scoped, tag = 'scoped memory for tpu_custom_call.1']
    #allocation5 [shape = 'u8[1024]{0}', space=vmem, size = 0x400, scoped, tag = 'input window, operand 1']
    #allocation6 [shape = 's32[2]{0}', space=sflag, size = 0x8, scoped, tag = 'scoped memory for tpu_custom_call.1']
    #allocation7 [shape = 'u8[16384]{0}', space=vmem, size = 0x4000, scoped, tag = 'input window, operand 2, single buffered']
    #allocation8 [shape = 'u8[512]{0}', space=vmem, size = 0x400, scoped, tag = 'input window, operand 3, single buffered']
    #allocation9 [shape = 's32[1]{0}', space=sflag, size = 0x4, scoped, tag = 'scoped memory for tpu_custom_call.1']
    #allocation10 [shape = 'u8[98304]{0}', space=vmem, size = 0x18000, scoped, tag = 'input window, operand 4, single buffered']
    #allocation11 [shape = 'u8[32768]{0}', space=vmem, size = 0x8000, scoped, tag = 'input window, operand 6, single buffered']
    #allocation12 [shape = 's32[1]{0}', space=sflag, size = 0x4, scoped, tag = 'scoped memory for tpu_custom_call.1']
    #allocation13 [shape = 'u8[65536]{0}', space=vmem, size = 0x10000, scoped, tag = 'input window, operand 10, single buffered']
    #allocation14 [shape = 'u8[65536]{0}', space=vmem, size = 0x10000, scoped, tag = 'input window, operand 12, single buffered']
    #allocation15 [shape = 's32[1]{0}', space=sflag, size = 0x4, scoped, tag = 'scoped memory for tpu_custom_call.1']
    #allocation16 [shape = 'u8[8192]{0}', space=vmem, size = 0x2000, scoped, tag = 'output window, operand 0']
    %21 = vsyncpa [#allocation3], 0
    %s22 = scalar_lea.sflag [#allocation3], 1
    %23 = vsyncpa %s22, 0
    %24 = vsyncpa [#allocation6], 0
    %s25 = scalar_lea.sflag [#allocation6], 1
    %26 = vsyncpa %s25, 0
    %27 = vsyncpa [#allocation9], 0
    %28 = vsyncpa [#allocation12], 0
    %29 = vsyncpa [#allocation15], 0
    %30 = vsyncpa [#allocation4], 0
    %s31 = scalar_lea.sflag [#allocation4], 1
    %32 = vsyncpa %s31, 0
    loop: start=0, step=1, limit=4
    $region2: #{tpu_custom_call.1} parent=1 // loop_pre_header
      _
    $region3: #{tpu_custom_call.1} parent=1 // loop_header
      %s34 = sphi 0, %s38
      %p35 = scmp.ge.s32.totalorder %s34, 4
      %s44 = sphi 0, %s46
      %s47 = sphi 0, %s44
      %s48 = sphi 0, %s47
      %s64 = sphi 0, %s48
      %s70 = sphi 0, %s72
      %s73 = sphi 0, %s70
      %s74 = sphi 0, %s73
      %s90 = sphi 0, %s74
      %s94 = sphi 0, %s94
      %s96 = sphi 0, %s94
      %s97 = sphi 0, %s96
      %s111 = sphi 0, %s97
      %s115 = sphi 0, %s115
      %s117 = sphi 0, %s115
      %s118 = sphi 0, %s117
      %s132 = sphi 0, %s118
      %s136 = sphi 0, %s136
      %s138 = sphi 0, %s136
      %s139 = sphi 0, %s138
      %s153 = sphi 0, %s139
      %s157 = sphi 0, %s157
      %s159 = sphi 0, %s157
      %s160 = sphi 0, %s159
      %s174 = sphi 0, %s160
      %s178 = sphi 0, %s178
      %s180 = sphi 0, %s178
      %s181 = sphi 0, %s180
      %s195 = sphi 0, %s181
      %s199 = sphi 0, %s199
      %s201 = sphi 0, %s199
      %s202 = sphi 0, %s201
      %s216 = sphi 0, %s202
      %s220 = sphi 0, %s220
      %s222 = sphi 0, %s220
      %s223 = sphi 0, %s222
      %s237 = sphi 0, %s223
      %s241 = sphi 0, %s241
      %s243 = sphi 0, %s241
      %s244 = sphi 0, %s243
      %s258 = sphi 0, %s244
      %s262 = sphi 0, %s262
      %s264 = sphi 0, %s262
      %s265 = sphi 0, %s264
      %s279 = sphi 0, %s265
      %s283 = sphi 0, %s283
      %s285 = sphi 0, %s283
      %s286 = sphi 0, %s285
      %s300 = sphi 0, %s286
      %s304 = sphi 0, %s304
      %s306 = sphi 0, %s304
      %s307 = sphi 0, %s306
      %s321 = sphi 0, %s307
      %s325 = sphi 0, %s325
      %s327 = sphi 0, %s325
      %s328 = sphi 0, %s327
      %s342 = sphi 0, %s328
      %s346 = sphi 0, %s346
      %s348 = sphi 0, %s346
      %s349 = sphi 0, %s348
      %s363 = sphi 0, %s349
      %s367 = sphi 0, %s367
      %s369 = sphi 0, %s367
      %s370 = sphi 0, %s369
      %s384 = sphi 0, %s370
      %s390 = sphi 0, %s392
      %s393 = sphi 0, %s390
      %s394 = sphi 0, %s393
      %s410 = sphi 0, %s394
    $region4: #{tpu_custom_call.1} parent=1 // loop_header_branch
      %37 = sbr.rel (%p35) target = $region8
    $region5: #{tpu_custom_call.1} parent=1 // loop_body
      %s39 = ssub.s32 %s34, 1
      %s40 = ssub.s32 %s34, 2
      %s41 = sadd.s32 %s34, 1
      %s42 = ssub.s32 %s34, %s41
      %p43 = scmp.eq.s32.totalorder %s42, 0
      %s45 = sadd.s32 %s44, 1
      %s46 = scalar_select %p43, %s44, %s45
      %p49 = pneg %p43
      %p50 = scmp.eq.s32.totalorder %s34, 1
      %p51 = por %p49, %p50
      %p52 = scmp.ne.s32.totalorder %s44, %s47
      %p53 = scmp.eq.s32.totalorder %s34, 0
      %p54 = por %p52, %p53
      %p55 = scmp.ne.s32.totalorder %s44, %s47
      %p56 = scmp.eq.s32.totalorder %s39, 1
      %p57 = por %p55, %p56
      %p58 = scmp.ne.s32.totalorder %s47, %s48
      %p59 = scmp.eq.s32.totalorder %s39, 0
      %p60 = por %p58, %p59
      %p61 = scmp.ne.s32.totalorder %s47, %s48
      %p62 = scmp.eq.s32.totalorder %s40, 1
      %p63 = por %p61, %p62
      %p65 = scmp.ne.s32.totalorder %s48, %s64
      %p66 = scmp.eq.s32.totalorder %s40, 0
      %p67 = por %p65, %p66
      %s68 = ssub.s32 %s34, %s41
      %p69 = scmp.eq.s32.totalorder %s68, 0
      %s71 = sadd.s32 %s70, 1
      %s72 = scalar_select %p69, %s70, %s71
      %p75 = pneg %p69
      %p76 = scmp.eq.s32.totalorder %s34, 1
      %p77 = por %p75, %p76
      %p78 = scmp.ne.s32.totalorder %s70, %s73
      %p79 = scmp.eq.s32.totalorder %s34, 0
      %p80 = por %p78, %p79
      %p81 = scmp.ne.s32.totalorder %s70, %s73
      %p82 = scmp.eq.s32.totalorder %s39, 1
      %p83 = por %p81, %p82
      %p84 = scmp.ne.s32.totalorder %s73, %s74
      %p85 = scmp.eq.s32.totalorder %s39, 0
      %p86 = por %p84, %p85
      %p87 = scmp.ne.s32.totalorder %s73, %s74
      %p88 = scmp.eq.s32.totalorder %s40, 1
      %p89 = por %p87, %p88
      %p91 = scmp.ne.s32.totalorder %s74, %s90
      %p92 = scmp.eq.s32.totalorder %s40, 0
      %p93 = por %p91, %p92
      %s95 = sadd.s32 %s94, 1
      %p98 = scmp.eq.s32.totalorder %s34, 1
      %p99 = scmp.ne.s32.totalorder %s94, %s96
      %p100 = scmp.eq.s32.totalorder %s34, 0
      %p101 = por %p99, %p100
      %p102 = scmp.ne.s32.totalorder %s94, %s96
      %p103 = scmp.eq.s32.totalorder %s39, 1
      %p104 = por %p102, %p103
      %p105 = scmp.ne.s32.totalorder %s96, %s97
      %p106 = scmp.eq.s32.totalorder %s39, 0
      %p107 = por %p105, %p106
      %p108 = scmp.ne.s32.totalorder %s96, %s97
      %p109 = scmp.eq.s32.totalorder %s40, 1
      %p110 = por %p108, %p109
      %p112 = scmp.ne.s32.totalorder %s97, %s111
      %p113 = scmp.eq.s32.totalorder %s40, 0
      %p114 = por %p112, %p113
      %s116 = sadd.s32 %s115, 1
      %p119 = scmp.eq.s32.totalorder %s34, 1
      %p120 = scmp.ne.s32.totalorder %s115, %s117
      %p121 = scmp.eq.s32.totalorder %s34, 0
      %p122 = por %p120, %p121
      %p123 = scmp.ne.s32.totalorder %s115, %s117
      %p124 = scmp.eq.s32.totalorder %s39, 1
      %p125 = por %p123, %p124
      %p126 = scmp.ne.s32.totalorder %s117, %s118
      %p127 = scmp.eq.s32.totalorder %s39, 0
      %p128 = por %p126, %p127
      %p129 = scmp.ne.s32.totalorder %s117, %s118
      %p130 = scmp.eq.s32.totalorder %s40, 1
      %p131 = por %p129, %p130
      %p133 = scmp.ne.s32.totalorder %s118, %s132
      %p134 = scmp.eq.s32.totalorder %s40, 0
      %p135 = por %p133, %p134
      %s137 = sadd.s32 %s136, 1
      %p140 = scmp.eq.s32.totalorder %s34, 1
      %p141 = scmp.ne.s32.totalorder %s136, %s138
      %p142 = scmp.eq.s32.totalorder %s34, 0
      %p143 = por %p141, %p142
      %p144 = scmp.ne.s32.totalorder %s136, %s138
      %p145 = scmp.eq.s32.totalorder %s39, 1
      %p146 = por %p144, %p145
      %p147 = scmp.ne.s32.totalorder %s138, %s139
      %p148 = scmp.eq.s32.totalorder %s39, 0
      %p149 = por %p147, %p148
      %p150 = scmp.ne.s32.totalorder %s138, %s139
      %p151 = scmp.eq.s32.totalorder %s40, 1
      %p152 = por %p150, %p151
      %p154 = scmp.ne.s32.totalorder %s139, %s153
      %p155 = scmp.eq.s32.totalorder %s40, 0
      %p156 = por %p154, %p155
      %s158 = sadd.s32 %s157, 1
      %p161 = scmp.eq.s32.totalorder %s34, 1
      %p162 = scmp.ne.s32.totalorder %s157, %s159
      %p163 = scmp.eq.s32.totalorder %s34, 0
      %p164 = por %p162, %p163
      %p165 = scmp.ne.s32.totalorder %s157, %s159
      %p166 = scmp.eq.s32.totalorder %s39, 1
      %p167 = por %p165, %p166
      %p168 = scmp.ne.s32.totalorder %s159, %s160
      %p169 = scmp.eq.s32.totalorder %s39, 0
      %p170 = por %p168, %p169
      %p171 = scmp.ne.s32.totalorder %s159, %s160
      %p172 = scmp.eq.s32.totalorder %s40, 1
      %p173 = por %p171, %p172
      %p175 = scmp.ne.s32.totalorder %s160, %s174
      %p176 = scmp.eq.s32.totalorder %s40, 0
      %p177 = por %p175, %p176
      %s179 = sadd.s32 %s178, 1
      %p182 = scmp.eq.s32.totalorder %s34, 1
      %p183 = scmp.ne.s32.totalorder %s178, %s180
      %p184 = scmp.eq.s32.totalorder %s34, 0
      %p185 = por %p183, %p184
      %p186 = scmp.ne.s32.totalorder %s178, %s180
      %p187 = scmp.eq.s32.totalorder %s39, 1
      %p188 = por %p186, %p187
      %p189 = scmp.ne.s32.totalorder %s180, %s181
      %p190 = scmp.eq.s32.totalorder %s39, 0
      %p191 = por %p189, %p190
      %p192 = scmp.ne.s32.totalorder %s180, %s181
      %p193 = scmp.eq.s32.totalorder %s40, 1
      %p194 = por %p192, %p193
      %p196 = scmp.ne.s32.totalorder %s181, %s195
      %p197 = scmp.eq.s32.totalorder %s40, 0
      %p198 = por %p196, %p197
      %s200 = sadd.s32 %s199, 1
      %p203 = scmp.eq.s32.totalorder %s34, 1
      %p204 = scmp.ne.s32.totalorder %s199, %s201
      %p205 = scmp.eq.s32.totalorder %s34, 0
      %p206 = por %p204, %p205
      %p207 = scmp.ne.s32.totalorder %s199, %s201
      %p208 = scmp.eq.s32.totalorder %s39, 1
      %p209 = por %p207, %p208
      %p210 = scmp.ne.s32.totalorder %s201, %s202
      %p211 = scmp.eq.s32.totalorder %s39, 0
      %p212 = por %p210, %p211
      %p213 = scmp.ne.s32.totalorder %s201, %s202
      %p214 = scmp.eq.s32.totalorder %s40, 1
      %p215 = por %p213, %p214
      %p217 = scmp.ne.s32.totalorder %s202, %s216
      %p218 = scmp.eq.s32.totalorder %s40, 0
      %p219 = por %p217, %p218
      %s221 = sadd.s32 %s220, 1
      %p224 = scmp.eq.s32.totalorder %s34, 1
      %p225 = scmp.ne.s32.totalorder %s220, %s222
      %p226 = scmp.eq.s32.totalorder %s34, 0
      %p227 = por %p225, %p226
      %p228 = scmp.ne.s32.totalorder %s220, %s222
      %p229 = scmp.eq.s32.totalorder %s39, 1
      %p230 = por %p228, %p229
      %p231 = scmp.ne.s32.totalorder %s222, %s223
      %p232 = scmp.eq.s32.totalorder %s39, 0
      %p233 = por %p231, %p232
      %p234 = scmp.ne.s32.totalorder %s222, %s223
      %p235 = scmp.eq.s32.totalorder %s40, 1
      %p236 = por %p234, %p235
      %p238 = scmp.ne.s32.totalorder %s223, %s237
      %p239 = scmp.eq.s32.totalorder %s40, 0
      %p240 = por %p238, %p239
      %s242 = sadd.s32 %s241, 1
      %p245 = scmp.eq.s32.totalorder %s34, 1
      %p246 = scmp.ne.s32.totalorder %s241, %s243
      %p247 = scmp.eq.s32.totalorder %s34, 0
      %p248 = por %p246, %p247
      %p249 = scmp.ne.s32.totalorder %s241, %s243
      %p250 = scmp.eq.s32.totalorder %s39, 1
      %p251 = por %p249, %p250
      %p252 = scmp.ne.s32.totalorder %s243, %s244
      %p253 = scmp.eq.s32.totalorder %s39, 0
      %p254 = por %p252, %p253
      %p255 = scmp.ne.s32.totalorder %s243, %s244
      %p256 = scmp.eq.s32.totalorder %s40, 1
      %p257 = por %p255, %p256
      %p259 = scmp.ne.s32.totalorder %s244, %s258
      %p260 = scmp.eq.s32.totalorder %s40, 0
      %p261 = por %p259, %p260
      %s263 = sadd.s32 %s262, 1
      %p266 = scmp.eq.s32.totalorder %s34, 1
      %p267 = scmp.ne.s32.totalorder %s262, %s264
      %p268 = scmp.eq.s32.totalorder %s34, 0
      %p269 = por %p267, %p268
      %p270 = scmp.ne.s32.totalorder %s262, %s264
      %p271 = scmp.eq.s32.totalorder %s39, 1
      %p272 = por %p270, %p271
      %p273 = scmp.ne.s32.totalorder %s264, %s265
      %p274 = scmp.eq.s32.totalorder %s39, 0
      %p275 = por %p273, %p274
      %p276 = scmp.ne.s32.totalorder %s264, %s265
      %p277 = scmp.eq.s32.totalorder %s40, 1
      %p278 = por %p276, %p277
      %p280 = scmp.ne.s32.totalorder %s265, %s279
      %p281 = scmp.eq.s32.totalorder %s40, 0
      %p282 = por %p280, %p281
      %s284 = sadd.s32 %s283, 1
      %p287 = scmp.eq.s32.totalorder %s34, 1
      %p288 = scmp.ne.s32.totalorder %s283, %s285
      %p289 = scmp.eq.s32.totalorder %s34, 0
      %p290 = por %p288, %p289
      %p291 = scmp.ne.s32.totalorder %s283, %s285
      %p292 = scmp.eq.s32.totalorder %s39, 1
      %p293 = por %p291, %p292
      %p294 = scmp.ne.s32.totalorder %s285, %s286
      %p295 = scmp.eq.s32.totalorder %s39, 0
      %p296 = por %p294, %p295
      %p297 = scmp.ne.s32.totalorder %s285, %s286
      %p298 = scmp.eq.s32.totalorder %s40, 1
      %p299 = por %p297, %p298
      %p301 = scmp.ne.s32.totalorder %s286, %s300
      %p302 = scmp.eq.s32.totalorder %s40, 0
      %p303 = por %p301, %p302
      %s305 = sadd.s32 %s304, 1
      %p308 = scmp.eq.s32.totalorder %s34, 1
      %p309 = scmp.ne.s32.totalorder %s304, %s306
      %p310 = scmp.eq.s32.totalorder %s34, 0
      %p311 = por %p309, %p310
      %p312 = scmp.ne.s32.totalorder %s304, %s306
      %p313 = scmp.eq.s32.totalorder %s39, 1
      %p314 = por %p312, %p313
      %p315 = scmp.ne.s32.totalorder %s306, %s307
      %p316 = scmp.eq.s32.totalorder %s39, 0
      %p317 = por %p315, %p316
      %p318 = scmp.ne.s32.totalorder %s306, %s307
      %p319 = scmp.eq.s32.totalorder %s40, 1
      %p320 = por %p318, %p319
      %p322 = scmp.ne.s32.totalorder %s307, %s321
      %p323 = scmp.eq.s32.totalorder %s40, 0
      %p324 = por %p322, %p323
      %s326 = sadd.s32 %s325, 1
      %p329 = scmp.eq.s32.totalorder %s34, 1
      %p330 = scmp.ne.s32.totalorder %s325, %s327
      %p331 = scmp.eq.s32.totalorder %s34, 0
      %p332 = por %p330, %p331
      %p333 = scmp.ne.s32.totalorder %s325, %s327
      %p334 = scmp.eq.s32.totalorder %s39, 1
      %p335 = por %p333, %p334
      %p336 = scmp.ne.s32.totalorder %s327, %s328
      %p337 = scmp.eq.s32.totalorder %s39, 0
      %p338 = por %p336, %p337
      %p339 = scmp.ne.s32.totalorder %s327, %s328
      %p340 = scmp.eq.s32.totalorder %s40, 1
      %p341 = por %p339, %p340
      %p343 = scmp.ne.s32.totalorder %s328, %s342
      %p344 = scmp.eq.s32.totalorder %s40, 0
      %p345 = por %p343, %p344
      %s347 = sadd.s32 %s346, 1
      %p350 = scmp.eq.s32.totalorder %s34, 1
      %p351 = scmp.ne.s32.totalorder %s346, %s348
      %p352 = scmp.eq.s32.totalorder %s34, 0
      %p353 = por %p351, %p352
      %p354 = scmp.ne.s32.totalorder %s346, %s348
      %p355 = scmp.eq.s32.totalorder %s39, 1
      %p356 = por %p354, %p355
      %p357 = scmp.ne.s32.totalorder %s348, %s349
      %p358 = scmp.eq.s32.totalorder %s39, 0
      %p359 = por %p357, %p358
      %p360 = scmp.ne.s32.totalorder %s348, %s349
      %p361 = scmp.eq.s32.totalorder %s40, 1
      %p362 = por %p360, %p361
      %p364 = scmp.ne.s32.totalorder %s349, %s363
      %p365 = scmp.eq.s32.totalorder %s40, 0
      %p366 = por %p364, %p365
      %s368 = sadd.s32 %s367, 1
      %p371 = scmp.eq.s32.totalorder %s34, 1
      %p372 = scmp.ne.s32.totalorder %s367, %s369
      %p373 = scmp.eq.s32.totalorder %s34, 0
      %p374 = por %p372, %p373
      %p375 = scmp.ne.s32.totalorder %s367, %s369
      %p376 = scmp.eq.s32.totalorder %s39, 1
      %p377 = por %p375, %p376
      %p378 = scmp.ne.s32.totalorder %s369, %s370
      %p379 = scmp.eq.s32.totalorder %s39, 0
      %p380 = por %p378, %p379
      %p381 = scmp.ne.s32.totalorder %s369, %s370
      %p382 = scmp.eq.s32.totalorder %s40, 1
      %p383 = por %p381, %p382
      %p385 = scmp.ne.s32.totalorder %s370, %s384
      %p386 = scmp.eq.s32.totalorder %s40, 0
      %p387 = por %p385, %p386
      %s388 = ssub.s32 %s34, %s41
      %p389 = scmp.eq.s32.totalorder %s388, 0
      %s391 = sadd.s32 %s390, 1
      %s392 = scalar_select %p389, %s390, %s391
      %p395 = pneg %p389
      %p396 = scmp.eq.s32.totalorder %s34, 1
      %p397 = por %p395, %p396
      %p398 = scmp.ne.s32.totalorder %s390, %s393
      %p399 = scmp.eq.s32.totalorder %s34, 0
      %p400 = por %p398, %p399
      %p401 = scmp.ne.s32.totalorder %s390, %s393
      %p402 = scmp.eq.s32.totalorder %s39, 1
      %p403 = por %p401, %p402
      %p404 = scmp.ne.s32.totalorder %s393, %s394
      %p405 = scmp.eq.s32.totalorder %s39, 0
      %p406 = por %p404, %p405
      %p407 = scmp.ne.s32.totalorder %s393, %s394
      %p408 = scmp.eq.s32.totalorder %s40, 1
      %p409 = por %p407, %p408
      %p411 = scmp.ne.s32.totalorder %s394, %s410
      %p412 = scmp.eq.s32.totalorder %s40, 0
      %p413 = por %p411, %p412
      %p414 = scmp.le.s32.totalorder 1, %s34
      %p415 = scmp.lt.s32.totalorder %s34, 3
      %p416 = pnand %p414, %p415
      %p417 = pneg %p416
      // Predicated region
      $region9: #{tpu_custom_call.1} parent=5 // pred_check
        _
      $region10: #{tpu_custom_call.1} parent=5 // pred_check_branch
        %419 = sbr.rel (%p416) target = $region12
      $region11: #{tpu_custom_call.1} parent=5 // pred_region
        %s420 = ssub.s32 %s34, 1
        // Predicated region
        $region13: #{tpu_custom_call.1} parent=11 // pred_check
          %p421 = pneg %p107
        $region14: #{tpu_custom_call.1} parent=11 // pred_check_branch
          %423 = sbr.rel (%p421) target = $region16
        $region15: #{tpu_custom_call.1} parent=11 // pred_region
          %s425 = ssub.s32 512, 512
          %426 = vsyncadd [#allocation6], %s425
          %s427 = sshll.u32 [#allocation7], 4
          %s428 = int_to_ptr.vmem [resolvable:$true] %s427
          %433 = dma.hbm_to_vmem [thread:$0]  %s2, 512, %s428, [#allocation6], 64, 64, 4
        $region16: #{tpu_custom_call.1} parent=11 // pred_fallthru
          _
        // Predicated region
        $region17: #{tpu_custom_call.1} parent=11 // pred_check
          %p434 = pneg %p128
        $region18: #{tpu_custom_call.1} parent=11 // pred_check_branch
          %436 = sbr.rel (%p434) target = $region20
        $region19: #{tpu_custom_call.1} parent=11 // pred_region
          %s438 = ssub.s32 16, 16
          %439 = vsyncadd [#allocation9], %s438
          %s441 = sshll.u32 [#allocation8], 4
          %s442 = int_to_ptr.vmem [resolvable:$true] %s441
          %444 = dma.hbm_to_vmem [thread:$0]  %s3, 16, %s442, [#allocation9]
        $region20: #{tpu_custom_call.1} parent=11 // pred_fallthru
          _
        // Predicated region
        $region21: #{tpu_custom_call.1} parent=11 // pred_check
          %p445 = pneg %p149
        $region22: #{tpu_custom_call.1} parent=11 // pred_check_branch
          %447 = sbr.rel (%p445) target = $region24
        $region23: #{tpu_custom_call.1} parent=11 // pred_region
          %s449 = ssub.s32 3072, 3072
          %450 = vsyncadd [#allocation9], %s449
          %s451 = sshll.u32 [#allocation10], 4
          %s452 = int_to_ptr.vmem [resolvable:$true] %s451
          %457 = dma.hbm_to_vmem [thread:$0]  %s4, 3072, %s452, [#allocation9], 192, 192, 12
        $region24: #{tpu_custom_call.1} parent=11 // pred_fallthru
          _
        // Predicated region
        $region25: #{tpu_custom_call.1} parent=11 // pred_check
          %p458 = pneg %p170
        $region26: #{tpu_custom_call.1} parent=11 // pred_check_branch
          %460 = sbr.rel (%p458) target = $region28
        $region27: #{tpu_custom_call.1} parent=11 // pred_region
          _
        $region28: #{tpu_custom_call.1} parent=11 // pred_fallthru
          _
        // Predicated region
        $region29: #{tpu_custom_call.1} parent=11 // pred_check
          %p461 = pneg %p191
        $region30: #{tpu_custom_call.1} parent=11 // pred_check_branch
          %463 = sbr.rel (%p461) target = $region32
        $region31: #{tpu_custom_call.1} parent=11 // pred_region
          %s465 = ssub.s32 1024, 1024
          %466 = vsyncadd [#allocation12], %s465
          %s467 = sshll.u32 [#allocation11], 4
          %s468 = int_to_ptr.vmem [resolvable:$true] %s467
          %473 = dma.hbm_to_vmem [thread:$0]  %s6, 1024, %s468, [#allocation12], 64, 64, 4
        $region32: #{tpu_custom_call.1} parent=11 // pred_fallthru
          _
        // Predicated region
        $region33: #{tpu_custom_call.1} parent=11 // pred_check
          %p474 = pneg %p212
        $region34: #{tpu_custom_call.1} parent=11 // pred_check_branch
          %476 = sbr.rel (%p474) target = $region36
        $region35: #{tpu_custom_call.1} parent=11 // pred_region
          _
        $region36: #{tpu_custom_call.1} parent=11 // pred_fallthru
          _
        // Predicated region
        $region37: #{tpu_custom_call.1} parent=11 // pred_check
          %p477 = pneg %p233
        $region38: #{tpu_custom_call.1} parent=11 // pred_check_branch
          %479 = sbr.rel (%p477) target = $region40
        $region39: #{tpu_custom_call.1} parent=11 // pred_region
          _
        $region40: #{tpu_custom_call.1} parent=11 // pred_fallthru
          _
        // Predicated region
        $region41: #{tpu_custom_call.1} parent=11 // pred_check
          %p480 = pneg %p254
        $region42: #{tpu_custom_call.1} parent=11 // pred_check_branch
          %482 = sbr.rel (%p480) target = $region44
        $region43: #{tpu_custom_call.1} parent=11 // pred_region
          _
        $region44: #{tpu_custom_call.1} parent=11 // pred_fallthru
          _
        // Predicated region
        $region45: #{tpu_custom_call.1} parent=11 // pred_check
          %p483 = pneg %p275
        $region46: #{tpu_custom_call.1} parent=11 // pred_check_branch
          %485 = sbr.rel (%p483) target = $region48
        $region47: #{tpu_custom_call.1} parent=11 // pred_region
          %s487 = ssub.s32 2048, 2048
          %488 = vsyncadd [#allocation12], %s487
          %s489 = sshll.u32 [#allocation13], 4
          %s490 = int_to_ptr.vmem [resolvable:$true] %s489
          %495 = dma.hbm_to_vmem [thread:$0]  %s10, 2048, %s490, [#allocation12], 128, 128, 8
        $region48: #{tpu_custom_call.1} parent=11 // pred_fallthru
          _
        // Predicated region
        $region49: #{tpu_custom_call.1} parent=11 // pred_check
          %p496 = pneg %p296
        $region50: #{tpu_custom_call.1} parent=11 // pred_check_branch
          %498 = sbr.rel (%p496) target = $region52
        $region51: #{tpu_custom_call.1} parent=11 // pred_region
          _
        $region52: #{tpu_custom_call.1} parent=11 // pred_fallthru
          _
        // Predicated region
        $region53: #{tpu_custom_call.1} parent=11 // pred_check
          %p499 = pneg %p317
        $region54: #{tpu_custom_call.1} parent=11 // pred_check_branch
          %501 = sbr.rel (%p499) target = $region56
        $region55: #{tpu_custom_call.1} parent=11 // pred_region
          %s503 = ssub.s32 2048, 2048
          %504 = vsyncadd [#allocation15], %s503
          %s505 = sshll.u32 [#allocation14], 4
          %s506 = int_to_ptr.vmem [resolvable:$true] %s505
          %511 = dma.hbm_to_vmem [thread:$0]  %s12, 2048, %s506, [#allocation15], 64, 64, 4
        $region56: #{tpu_custom_call.1} parent=11 // pred_fallthru
          _
        // Predicated region
        $region57: #{tpu_custom_call.1} parent=11 // pred_check
          %p512 = pneg %p338
        $region58: #{tpu_custom_call.1} parent=11 // pred_check_branch
          %514 = sbr.rel (%p512) target = $region60
        $region59: #{tpu_custom_call.1} parent=11 // pred_region
          _
        $region60: #{tpu_custom_call.1} parent=11 // pred_fallthru
          _
        // Predicated region
        $region61: #{tpu_custom_call.1} parent=11 // pred_check
          %p515 = pneg %p359
        $region62: #{tpu_custom_call.1} parent=11 // pred_check_branch
          %517 = sbr.rel (%p515) target = $region64
        $region63: #{tpu_custom_call.1} parent=11 // pred_region
          _
        $region64: #{tpu_custom_call.1} parent=11 // pred_fallthru
          _
        // Predicated region
        $region65: #{tpu_custom_call.1} parent=11 // pred_check
          %p518 = pneg %p380
        $region66: #{tpu_custom_call.1} parent=11 // pred_check_branch
          %520 = sbr.rel (%p518) target = $region68
        $region67: #{tpu_custom_call.1} parent=11 // pred_region
          _
        $region68: #{tpu_custom_call.1} parent=11 // pred_fallthru
          _
      $region12: #{tpu_custom_call.1} parent=5 // pred_fallthru
        _
      %p521 = scmp.lt.s32.totalorder %s34, 2
      // Predicated region
      $region69: #{tpu_custom_call.1} parent=5 // pred_check
        %p522 = pneg %p521
      $region70: #{tpu_custom_call.1} parent=5 // pred_check_branch
        %524 = sbr.rel (%p522) target = $region72
      $region71: #{tpu_custom_call.1} parent=5 // pred_region
        // Predicated region
        $region73: #{tpu_custom_call.1} parent=71 // pred_check
          %p525 = pneg %p54
        $region74: #{tpu_custom_call.1} parent=71 // pred_check_branch
          %527 = sbr.rel (%p525) target = $region76
        $region75: #{tpu_custom_call.1} parent=71 // pred_region
          %s528 = sand.u32 %s44, 1
          %s529 = scalar_lea.sflag [#allocation3], %s528
          %s530 = sand.u32 %s44, 1
          %s531 = smul.addr %s530, 8
          %s532 = scalar_lea.vmem [#allocation2], %s531
          %s534 = ssub.s32 128, 128
          %535 = vsyncadd %s529, %s534
          %s536 = smul.addr %s34, 128
          %s537 = scalar_lea.hbm %s0, %s536
          %s539 = sshll.u32 %s532, 4
          %s540 = int_to_ptr.vmem [resolvable:$true] %s539
          %542 = dma.hbm_to_vmem [thread:$0]  %s537, 128, %s540, %s529
        $region76: #{tpu_custom_call.1} parent=71 // pred_fallthru
          _
        // Predicated region
        $region77: #{tpu_custom_call.1} parent=71 // pred_check
          %p543 = pneg %p80
        $region78: #{tpu_custom_call.1} parent=71 // pred_check_branch
          %545 = sbr.rel (%p543) target = $region80
        $region79: #{tpu_custom_call.1} parent=71 // pred_region
          %s546 = sand.u32 %s34, 1
          %s547 = scalar_lea.sflag [#allocation6], %s546
          %s548 = sand.u32 %s70, 1
          %s549 = scalar_lea.vmem [#allocation5], %s548
          %s551 = ssub.s32 16, 16
          %552 = vsyncadd %s547, %s551
          %s553 = smul.addr %s34, 16
          %s554 = scalar_lea.hbm %s1, %s553
          %s556 = sshll.u32 %s549, 4
          %s557 = int_to_ptr.vmem [resolvable:$true] %s556
          %559 = dma.hbm_to_vmem [thread:$0]  %s554, 16, %s557, %s547
        $region80: #{tpu_custom_call.1} parent=71 // pred_fallthru
          _
      $region72: #{tpu_custom_call.1} parent=5 // pred_fallthru
        _
      %p560 = scmp.le.s32.totalorder 1, %s34
      %p561 = scmp.lt.s32.totalorder %s34, 3
      %p562 = pnand %p560, %p561
      %p563 = pneg %p562
      // Predicated region
      $region81: #{tpu_custom_call.1} parent=5 // pred_check
        _
      $region82: #{tpu_custom_call.1} parent=5 // pred_check_branch
        %565 = sbr.rel (%p562) target = $region84
      $region83: #{tpu_custom_call.1} parent=5 // pred_region
        %s566 = ssub.s32 %s34, 1
        %s567 = sand.u32 %s47, 1
        %s568 = scalar_lea.sflag [#allocation3], %s567
        %s569 = sand.u32 %s47, 1
        %s570 = smul.addr %s569, 8
        %s571 = scalar_lea.vmem [#allocation2], %s570
        // Predicated region
        $region85: #{tpu_custom_call.1} parent=83 // pred_check
          %p572 = pneg %p60
        $region86: #{tpu_custom_call.1} parent=83 // pred_check_branch
          %574 = sbr.rel (%p572) target = $region88
        $region87: #{tpu_custom_call.1} parent=83 // pred_region
          %575 = dma.done %s568, 128
        $region88: #{tpu_custom_call.1} parent=83 // pred_fallthru
          _
        %s576 = sand.u32 %s39, 1
        %s577 = scalar_lea.sflag [#allocation6], %s576
        %s578 = sand.u32 %s73, 1
        %s579 = scalar_lea.vmem [#allocation5], %s578
        // Predicated region
        $region89: #{tpu_custom_call.1} parent=83 // pred_check
          %p580 = pneg %p86
        $region90: #{tpu_custom_call.1} parent=83 // pred_check_branch
          %582 = sbr.rel (%p580) target = $region92
        $region91: #{tpu_custom_call.1} parent=83 // pred_region
          %583 = dma.done %s577, 16
        $region92: #{tpu_custom_call.1} parent=83 // pred_fallthru
          _
        // Predicated region
        $region93: #{tpu_custom_call.1} parent=83 // pred_check
          %p584 = pneg %p107
        $region94: #{tpu_custom_call.1} parent=83 // pred_check_branch
          %586 = sbr.rel (%p584) target = $region96
        $region95: #{tpu_custom_call.1} parent=83 // pred_region
          %587 = dma.done [#allocation6], 512
        $region96: #{tpu_custom_call.1} parent=83 // pred_fallthru
          _
        // Predicated region
        $region97: #{tpu_custom_call.1} parent=83 // pred_check
          %p588 = pneg %p128
        $region98: #{tpu_custom_call.1} parent=83 // pred_check_branch
          %590 = sbr.rel (%p588) target = $region100
        $region99: #{tpu_custom_call.1} parent=83 // pred_region
          %591 = dma.done [#allocation9], 16
        $region100: #{tpu_custom_call.1} parent=83 // pred_fallthru
          _
        // Predicated region
        $region101: #{tpu_custom_call.1} parent=83 // pred_check
          %p592 = pneg %p149
        $region102: #{tpu_custom_call.1} parent=83 // pred_check_branch
          %594 = sbr.rel (%p592) target = $region104
        $region103: #{tpu_custom_call.1} parent=83 // pred_region
          %595 = dma.done [#allocation9], 3072
        $region104: #{tpu_custom_call.1} parent=83 // pred_fallthru
          _
        // Predicated region
        $region105: #{tpu_custom_call.1} parent=83 // pred_check
          %p596 = pneg %p191
        $region106: #{tpu_custom_call.1} parent=83 // pred_check_branch
          %598 = sbr.rel (%p596) target = $region108
        $region107: #{tpu_custom_call.1} parent=83 // pred_region
          %599 = dma.done [#allocation12], 1024
        $region108: #{tpu_custom_call.1} parent=83 // pred_fallthru
          _
        // Predicated region
        $region109: #{tpu_custom_call.1} parent=83 // pred_check
          %p600 = pneg %p275
        $region110: #{tpu_custom_call.1} parent=83 // pred_check_branch
          %602 = sbr.rel (%p600) target = $region112
        $region111: #{tpu_custom_call.1} parent=83 // pred_region
          %603 = dma.done [#allocation12], 2048
        $region112: #{tpu_custom_call.1} parent=83 // pred_fallthru
          _
        // Predicated region
        $region113: #{tpu_custom_call.1} parent=83 // pred_check
          %p604 = pneg %p317
        $region114: #{tpu_custom_call.1} parent=83 // pred_check_branch
          %606 = sbr.rel (%p604) target = $region116
        $region115: #{tpu_custom_call.1} parent=83 // pred_region
          %607 = dma.done [#allocation15], 2048
        $region116: #{tpu_custom_call.1} parent=83 // pred_fallthru
          _
        %s608 = sand.u32 %s47, 1
        %s609 = scalar_lea.sflag [#allocation3], %s608
        %s610 = sand.u32 %s47, 1
        %s611 = smul.addr %s610, 8
        %s612 = scalar_lea.vmem [#allocation2], %s611
        %p613 = pneg %p60
        %p614 = pneg %p57
        %s615 = sand.u32 %s39, 1
        %s616 = scalar_lea.sflag [#allocation6], %s615
        %s617 = sand.u32 %s73, 1
        %s618 = scalar_lea.vmem [#allocation5], %s617
        %p619 = pneg %p86
        %p620 = pneg %p83
        %p621 = pneg %p107
        %p622 = pneg %p104
        %p623 = pneg %p128
        %p624 = pneg %p125
        %p625 = pneg %p149
        %p626 = pneg %p146
        %p627 = pneg %p170
        %p628 = pneg %p167
        %p629 = pneg %p191
        %p630 = pneg %p188
        %p631 = pneg %p212
        %p632 = pneg %p209
        %p633 = pneg %p233
        %p634 = pneg %p230
        %p635 = pneg %p254
        %p636 = pneg %p251
        %p637 = pneg %p275
        %p638 = pneg %p272
        %p639 = pneg %p296
        %p640 = pneg %p293
        %p641 = pneg %p317
        %p642 = pneg %p314
        %p643 = pneg %p338
        %p644 = pneg %p335
        %p645 = pneg %p359
        %p646 = pneg %p356
        %p647 = pneg %p380
        %p648 = pneg %p377
        %p649 = pneg %p406
        %p650 = pneg %p403
        %s651 = sand.u32 %s393, 1
        %s652 = scalar_lea.sflag [#allocation4], %s651
        %s653 = sand.u32 %s393, 1
        %s654 = smul.addr %s653, 8
        %s655 = scalar_lea.vmem [#allocation16], %s654
        %v657 = vld [vmem:[%s571] sm:$0xff]
        %v658 = vld [vmem:[%s579] sm:$0x1]
        %v659 = vld [vmem:[#allocation7] sm:$0xf]
        %v660 = vld [vmem:[#allocation7 + $0x4] sm:$0xf]
        %v661 = vld [vmem:[#allocation7 + $0x8] sm:$0xf]
        %v662 = vld [vmem:[#allocation7 + $0xc] sm:$0xf]
        %v663 = vld [vmem:[#allocation7 + $0x10] sm:$0xf]
        %v664 = vld [vmem:[#allocation7 + $0x14] sm:$0xf]
        %v665 = vld [vmem:[#allocation7 + $0x18] sm:$0xf]
        %v666 = vld [vmem:[#allocation7 + $0x1c] sm:$0xf]
        %v667 = vld [vmem:[#allocation10] sm:$0xff]
        %v668 = vld [vmem:[#allocation10 + $0x8] sm:$0xf]
        %v669 = vld [vmem:[#allocation10 + $0xc] sm:$0xff]
        %v670 = vld [vmem:[#allocation10 + $0x14] sm:$0xf]
        %v671 = vld [vmem:[#allocation10 + $0x18] sm:$0xff]
        %v672 = vld [vmem:[#allocation10 + $0x20] sm:$0xf]
        %v673 = vld [vmem:[#allocation10 + $0x24] sm:$0xff]
        %v674 = vld [vmem:[#allocation10 + $0x2c] sm:$0xf]
        %v675 = vld [vmem:[#allocation10 + $0x30] sm:$0xff]
        %v676 = vld [vmem:[#allocation10 + $0x38] sm:$0xf]
        %v677 = vld [vmem:[#allocation10 + $0x3c] sm:$0xff]
        %v678 = vld [vmem:[#allocation10 + $0x44] sm:$0xf]
        %v679 = vld [vmem:[#allocation10 + $0x48] sm:$0xff]
        %v680 = vld [vmem:[#allocation10 + $0x50] sm:$0xf]
        %v681 = vld [vmem:[#allocation10 + $0x54] sm:$0xff]
        %v682 = vld [vmem:[#allocation10 + $0x5c] sm:$0xf]
        %v683 = vld [vmem:[#allocation10 + $0x60] sm:$0xff]
        %v684 = vld [vmem:[#allocation10 + $0x68] sm:$0xf]
        %v685 = vld [vmem:[#allocation10 + $0x6c] sm:$0xff]
        %v686 = vld [vmem:[#allocation10 + $0x74] sm:$0xf]
        %v687 = vld [vmem:[#allocation10 + $0x78] sm:$0xff]
        %v688 = vld [vmem:[#allocation10 + $0x80] sm:$0xf]
        %v689 = vld [vmem:[#allocation10 + $0x84] sm:$0xff]
        %v690 = vld [vmem:[#allocation10 + $0x8c] sm:$0xf]
        %v691 = vld [vmem:[#allocation10 + $0x90] sm:$0xff]
        %v692 = vld [vmem:[#allocation10 + $0x98] sm:$0xf]
        %v693 = vld [vmem:[#allocation10 + $0x9c] sm:$0xff]
        %v694 = vld [vmem:[#allocation10 + $0xa4] sm:$0xf]
        %v695 = vld [vmem:[#allocation10 + $0xa8] sm:$0xff]
        %v696 = vld [vmem:[#allocation10 + $0xb0] sm:$0xf]
        %v697 = vld [vmem:[#allocation10 + $0xb4] sm:$0xff]
        %v698 = vld [vmem:[#allocation10 + $0xbc] sm:$0xf]
        %v699 = vld [vmem:[%s5] sm:$0x7]
        %v700 = vld [vmem:[#allocation11] sm:$0xf]
        %v701 = vld [vmem:[#allocation11 + $0x4] sm:$0xf]
        %v702 = vld [vmem:[#allocation11 + $0x8] sm:$0xf]
        %v703 = vld [vmem:[#allocation11 + $0xc] sm:$0xf]
        %v704 = vld [vmem:[#allocation11 + $0x10] sm:$0xf]
        %v705 = vld [vmem:[#allocation11 + $0x14] sm:$0xf]
        %v706 = vld [vmem:[#allocation11 + $0x18] sm:$0xf]
        %v707 = vld [vmem:[#allocation11 + $0x1c] sm:$0xf]
        %v708 = vld [vmem:[#allocation11 + $0x20] sm:$0xf]
        %v709 = vld [vmem:[#allocation11 + $0x24] sm:$0xf]
        %v710 = vld [vmem:[#allocation11 + $0x28] sm:$0xf]
        %v711 = vld [vmem:[#allocation11 + $0x2c] sm:$0xf]
        %v712 = vld [vmem:[#allocation11 + $0x30] sm:$0xf]
        %v713 = vld [vmem:[#allocation11 + $0x34] sm:$0xf]
        %v714 = vld [vmem:[#allocation11 + $0x38] sm:$0xf]
        %v715 = vld [vmem:[#allocation11 + $0x3c] sm:$0xf]
        %v716 = vld [vmem:[%s7] sm:$0x1]
        %v717 = vld [vmem:[#allocation13] sm:$0xff]
        %v718 = vld [vmem:[#allocation13 + $0x8] sm:$0xff]
        %v719 = vld [vmem:[#allocation13 + $0x10] sm:$0xff]
        %v720 = vld [vmem:[#allocation13 + $0x18] sm:$0xff]
        %v721 = vld [vmem:[#allocation13 + $0x20] sm:$0xff]
        %v722 = vld [vmem:[#allocation13 + $0x28] sm:$0xff]
        %v723 = vld [vmem:[#allocation13 + $0x30] sm:$0xff]
        %v724 = vld [vmem:[#allocation13 + $0x38] sm:$0xff]
        %v725 = vld [vmem:[#allocation13 + $0x40] sm:$0xff]
        %v726 = vld [vmem:[#allocation13 + $0x48] sm:$0xff]
        %v727 = vld [vmem:[#allocation13 + $0x50] sm:$0xff]
        %v728 = vld [vmem:[#allocation13 + $0x58] sm:$0xff]
        %v729 = vld [vmem:[#allocation13 + $0x60] sm:$0xff]
        %v730 = vld [vmem:[#allocation13 + $0x68] sm:$0xff]
        %v731 = vld [vmem:[#allocation13 + $0x70] sm:$0xff]
        %v732 = vld [vmem:[#allocation13 + $0x78] sm:$0xff]
        %v733 = vld [vmem:[%s11] sm:$0x3]
        %v734 = vld [vmem:[#allocation14] sm:$0xf]
        %v735 = vld [vmem:[#allocation14 + $0x4] sm:$0xf]
        %v736 = vld [vmem:[#allocation14 + $0x8] sm:$0xf]
        %v737 = vld [vmem:[#allocation14 + $0xc] sm:$0xf]
        %v738 = vld [vmem:[#allocation14 + $0x10] sm:$0xf]
        %v739 = vld [vmem:[#allocation14 + $0x14] sm:$0xf]
        %v740 = vld [vmem:[#allocation14 + $0x18] sm:$0xf]
        %v741 = vld [vmem:[#allocation14 + $0x1c] sm:$0xf]
        %v742 = vld [vmem:[#allocation14 + $0x20] sm:$0xf]
        %v743 = vld [vmem:[#allocation14 + $0x24] sm:$0xf]
        %v744 = vld [vmem:[#allocation14 + $0x28] sm:$0xf]
        %v745 = vld [vmem:[#allocation14 + $0x2c] sm:$0xf]
        %v746 = vld [vmem:[#allocation14 + $0x30] sm:$0xf]
        %v747 = vld [vmem:[#allocation14 + $0x34] sm:$0xf]
        %v748 = vld [vmem:[#allocation14 + $0x38] sm:$0xf]
        %v749 = vld [vmem:[#allocation14 + $0x3c] sm:$0xf]
        %v750 = vld [vmem:[#allocation14 + $0x40] sm:$0xf]
        %v751 = vld [vmem:[#allocation14 + $0x44] sm:$0xf]
        %v752 = vld [vmem:[#allocation14 + $0x48] sm:$0xf]
        %v753 = vld [vmem:[#allocation14 + $0x4c] sm:$0xf]
        %v754 = vld [vmem:[#allocation14 + $0x50] sm:$0xf]
        %v755 = vld [vmem:[#allocation14 + $0x54] sm:$0xf]
        %v756 = vld [vmem:[#allocation14 + $0x58] sm:$0xf]
        %v757 = vld [vmem:[#allocation14 + $0x5c] sm:$0xf]
        %v758 = vld [vmem:[#allocation14 + $0x60] sm:$0xf]
        %v759 = vld [vmem:[#allocation14 + $0x64] sm:$0xf]
        %v760 = vld [vmem:[#allocation14 + $0x68] sm:$0xf]
        %v761 = vld [vmem:[#allocation14 + $0x6c] sm:$0xf]
        %v762 = vld [vmem:[#allocation14 + $0x70] sm:$0xf]
        %v763 = vld [vmem:[#allocation14 + $0x74] sm:$0xf]
        %v764 = vld [vmem:[#allocation14 + $0x78] sm:$0xf]
        %v765 = vld [vmem:[#allocation14 + $0x7c] sm:$0xf]
        %v766 = vld [vmem:[%s13] sm:$0x1]
        %v767 = vld [vmem:[%s8] sm:$0x1]
        %v768 = vld [vmem:[%s9] sm:$0x1]
        %v769 = vld [vmem:[%s14] sm:$0x1]
        %v770 = vld [vmem:[%s15] sm:$0x1]
        %v771 = vld [vmem:[#allocation8] sm:$0x1]
        %v772 = vpack.c.bf16 %v657, %v657
        %v774 = vlaneseq
        %v775 = vshrl.u32 %v774, 7
        %v776 = vsub.s32 0, %v775
        %v777 = vrot.slane %v771, %v776
        %v787 = vunpack.c.l.b16 %v659
        %v788 = vunpack.c.l.b16 %v660
        %v789 = vunpack.c.l.b16 %v661
        %v790 = vunpack.c.l.b16 %v662
        %v791 = vunpack.c.l.b16 %v663
        %v792 = vunpack.c.l.b16 %v664
        %v793 = vunpack.c.l.b16 %v665
        %v794 = vunpack.c.l.b16 %v666
        %v795 = vpack.c.b16 %v788, %v787
        %v796 = vpack.c.b16 %v790, %v789
        %v797 = vpack.c.b16 %v792, %v791
        %v798 = vpack.c.b16 %v794, %v793
        %vm803 = vcmask 523264
        %v805 = vsel %vm803, %v772, 0
        %807 = vmatprep.subr.bf16.mxu0 0
        %808 = vmatpush1.bf16.msra.mxu0 0
        %809 = vmatprep.subr.bf16.mxu0 0
        %810 = vmatpush1.bf16.msra.mxu0 0
        %811 = vmatprep.subr.bf16.mxu0 0
        %812 = vmatpush1.bf16.msra.mxu0 0
        %813 = vmatprep.subr.bf16.mxu0 0
        %814 = vmatpush1.bf16.msra.mxu0 0
        %815 = vmatprep.subr.bf16.mxu0 0
        %816 = vmatpush1.bf16.msra.mxu0 %v798
        %817 = vmatprep.subr.bf16.mxu0 0
        %818 = vmatpush1.bf16.msra.mxu0 %v797
        %819 = vmatprep.subr.bf16.mxu0 0
        %820 = vmatpush1.bf16.msra.mxu0 %v796
        %821 = vmatprep.subr.bf16.mxu0 0
        %822 = vmatpush1.bf16.msra.mxu0 %v795
        %823 = vmatprep.subr.bf16.mxu0 0
        %824 = vmatpush2.bf16.msra.mxu0 0
        %825 = vmatprep.subr.bf16.mxu0 0
        %826 = vmatpush2.bf16.msra.mxu0 0
        %827 = vmatprep.subr.bf16.mxu0 0
        %828 = vmatpush2.bf16.msra.mxu0 0
        %829 = vmatprep.subr.bf16.mxu0 0
        %830 = vmatpush2.bf16.msra.mxu0 0
        %831 = vmatprep.subr.bf16.mxu0 0
        %832 = vmatpush2.bf16.msra.mxu0 0
        %833 = vmatprep.subr.bf16.mxu0 0
        %834 = vmatpush2.bf16.msra.mxu0 0
        %835 = vmatprep.subr.bf16.mxu0 0
        %836 = vmatpush2.bf16.msra.mxu0 0
        %837 = vmatprep.subr.bf16.mxu0 0
        %838 = vmatpush2.bf16.msra.mxu0 0
        %839 = vmatprep.mubr.bf16.mxu0 0
        %840 = vmatmul.mubr.bf16.gmra.mxu0 %v805
        %v841 = vpop.f32.mrf.mxu0
        %v842 = vadd.f32 %v777, %v841
        %v843 = vpop.f32.mrf.mxu0
        %v844 = vpop.f32.mrf.mxu0
        %v845 = vpop.f32.mrf.mxu0
        %846 = vdwg.mxu0
        %v847 = vpack.c.bf16 %v842, %v842
        %v849 = vlaneseq
        %v850 = vshrl.u32 %v849, 7
        %v851 = vsub.s32 0, %v850
        %v852 = vrot.slane %v699, %v851
        %v853 = vlaneseq
        %v854 = vshrl.u32 %v853, 7
        %v855 = vsub.s32 1, %v854
        %v856 = vrot.slane %v699, %v855
        %v857 = vlaneseq
        %v858 = vshrl.u32 %v857, 7
        %v859 = vsub.s32 2, %v858
        %v860 = vrot.slane %v699, %v859
        %v896 = vunpack.c.l.b16 %v667
        %v897 = vunpack.c.h.b16 %v667
        %v898 = vunpack.c.l.b16 %v668
        %v899 = vunpack.c.l.b16 %v669
        %v900 = vunpack.c.h.b16 %v669
        %v901 = vunpack.c.l.b16 %v670
        %v902 = vunpack.c.l.b16 %v671
        %v903 = vunpack.c.h.b16 %v671
        %v904 = vunpack.c.l.b16 %v672
        %v905 = vunpack.c.l.b16 %v673
        %v906 = vunpack.c.h.b16 %v673
        %v907 = vunpack.c.l.b16 %v674
        %v908 = vunpack.c.l.b16 %v675
        %v909 = vunpack.c.h.b16 %v675
        %v910 = vunpack.c.l.b16 %v676
        %v911 = vunpack.c.l.b16 %v677
        %v912 = vunpack.c.h.b16 %v677
        %v913 = vunpack.c.l.b16 %v678
        %v914 = vunpack.c.l.b16 %v679
        %v915 = vunpack.c.h.b16 %v679
        %v916 = vunpack.c.l.b16 %v680
        %v917 = vunpack.c.l.b16 %v681
        %v918 = vunpack.c.h.b16 %v681
        %v919 = vunpack.c.l.b16 %v682
        %v920 = vunpack.c.l.b16 %v683
        %v921 = vunpack.c.h.b16 %v683
        %v922 = vunpack.c.l.b16 %v684
        %v923 = vunpack.c.l.b16 %v685
        %v924 = vunpack.c.h.b16 %v685
        %v925 = vunpack.c.l.b16 %v686
        %v926 = vunpack.c.l.b16 %v687
        %v927 = vunpack.c.h.b16 %v687
        %v928 = vunpack.c.l.b16 %v688
        %v929 = vunpack.c.l.b16 %v689
        %v930 = vunpack.c.h.b16 %v689
        %v931 = vunpack.c.l.b16 %v690
        %v932 = vunpack.c.l.b16 %v691
        %v933 = vunpack.c.h.b16 %v691
        %v934 = vunpack.c.l.b16 %v692
        %v935 = vunpack.c.l.b16 %v693
        %v936 = vunpack.c.h.b16 %v693
        %v937 = vunpack.c.l.b16 %v694
        %v938 = vunpack.c.l.b16 %v695
        %v939 = vunpack.c.h.b16 %v695
        %v940 = vunpack.c.l.b16 %v696
        %v941 = vunpack.c.l.b16 %v697
        %v942 = vunpack.c.h.b16 %v697
        %v943 = vunpack.c.l.b16 %v698
        %v944 = vpack.c.b16 %v899, %v896
        %v945 = vpack.c.b16 %v900, %v897
        %v946 = vpack.c.b16 %v901, %v898
        %v947 = vpack.c.b16 %v905, %v902
        %v948 = vpack.c.b16 %v906, %v903
        %v949 = vpack.c.b16 %v907, %v904
        %v950 = vpack.c.b16 %v911, %v908
        %v951 = vpack.c.b16 %v912, %v909
        %v952 = vpack.c.b16 %v913, %v910
        %v953 = vpack.c.b16 %v917, %v914
        %v954 = vpack.c.b16 %v918, %v915
        %v955 = vpack.c.b16 %v919, %v916
        %v956 = vpack.c.b16 %v923, %v920
        %v957 = vpack.c.b16 %v924, %v921
        %v958 = vpack.c.b16 %v925, %v922
        %v959 = vpack.c.b16 %v929, %v926
        %v960 = vpack.c.b16 %v930, %v927
        %v961 = vpack.c.b16 %v931, %v928
        %v962 = vpack.c.b16 %v935, %v932
        %v963 = vpack.c.b16 %v936, %v933
        %v964 = vpack.c.b16 %v937, %v934
        %v965 = vpack.c.b16 %v941, %v938
        %v966 = vpack.c.b16 %v942, %v939
        %v967 = vpack.c.b16 %v943, %v940
        %992 = vmatprep.subr.bf16.mxu0 %v966
        %993 = vmatpush1.bf16.msra.mxu0 %v965
        %994 = vmatprep.subr.bf16.mxu0 %v963
        %995 = vmatpush1.bf16.msra.mxu0 %v962
        %996 = vmatprep.subr.bf16.mxu0 %v960
        %997 = vmatpush1.bf16.msra.mxu0 %v959
        %998 = vmatprep.subr.bf16.mxu0 %v957
        %999 = vmatpush1.bf16.msra.mxu0 %v956
        %1000 = vmatprep.subr.bf16.mxu0 %v954
        %1001 = vmatpush1.bf16.msra.mxu0 %v953
        %1002 = vmatprep.subr.bf16.mxu0 %v951
        %1003 = vmatpush1.bf16.msra.mxu0 %v950
        %1004 = vmatprep.subr.bf16.mxu0 %v948
        %1005 = vmatpush1.bf16.msra.mxu0 %v947
        %1006 = vmatprep.subr.bf16.mxu0 %v945
        %1007 = vmatpush1.bf16.msra.mxu0 %v944
        %1008 = vmatprep.subr.bf16.mxu0 0
        %1009 = vmatpush2.bf16.msra.mxu0 0
        %1010 = vmatprep.subr.bf16.mxu0 0
        %1011 = vmatpush2.bf16.msra.mxu0 0
        %1012 = vmatprep.subr.bf16.mxu0 0
        %1013 = vmatpush2.bf16.msra.mxu0 0
        %1014 = vmatprep.subr.bf16.mxu0 0
        %1015 = vmatpush2.bf16.msra.mxu0 0
        %1016 = vmatprep.subr.bf16.mxu0 0
        %1017 = vmatpush2.bf16.msra.mxu0 0
        %1018 = vmatprep.subr.bf16.mxu0 0
        %1019 = vmatpush2.bf16.msra.mxu0 0
        %1020 = vmatprep.subr.bf16.mxu0 0
        %1021 = vmatpush2.bf16.msra.mxu0 0
        %1022 = vmatprep.subr.bf16.mxu0 0
        %1023 = vmatpush2.bf16.msra.mxu0 0
        %1024 = vmatprep.mubr.bf16.mxu0 0
        %1025 = vmatmul.mubr.bf16.gmra.mxu0 %v847
        %v1026 = vpop.f32.mrf.mxu0
        %v1027 = vadd.f32 %v852, %v1026
        %v1028 = vpop.f32.mrf.mxu0
        %v1029 = vadd.f32 %v856, %v1028
        %v1030 = vpop.f32.mrf.mxu0
        %v1031 = vpop.f32.mrf.mxu0
        %1032 = vdwg.mxu0
        %1033 = vmatprep.subr.bf16.mxu0 0
        %1034 = vmatpush1.bf16.msra.mxu0 %v967
        %1035 = vmatprep.subr.bf16.mxu0 0
        %1036 = vmatpush1.bf16.msra.mxu0 %v964
        %1037 = vmatprep.subr.bf16.mxu0 0
        %1038 = vmatpush1.bf16.msra.mxu0 %v961
        %1039 = vmatprep.subr.bf16.mxu0 0
        %1040 = vmatpush1.bf16.msra.mxu0 %v958
        %1041 = vmatprep.subr.bf16.mxu0 0
        %1042 = vmatpush1.bf16.msra.mxu0 %v955
        %1043 = vmatprep.subr.bf16.mxu0 0
        %1044 = vmatpush1.bf16.msra.mxu0 %v952
        %1045 = vmatprep.subr.bf16.mxu0 0
        %1046 = vmatpush1.bf16.msra.mxu0 %v949
        %1047 = vmatprep.subr.bf16.mxu0 0
        %1048 = vmatpush1.bf16.msra.mxu0 %v946
        %1049 = vmatprep.subr.bf16.mxu0 0
        %1050 = vmatpush2.bf16.msra.mxu0 0
        %1051 = vmatprep.subr.bf16.mxu0 0
        %1052 = vmatpush2.bf16.msra.mxu0 0
        %1053 = vmatprep.subr.bf16.mxu0 0
        %1054 = vmatpush2.bf16.msra.mxu0 0
        %1055 = vmatprep.subr.bf16.mxu0 0
        %1056 = vmatpush2.bf16.msra.mxu0 0
        %1057 = vmatprep.subr.bf16.mxu0 0
        %1058 = vmatpush2.bf16.msra.mxu0 0
        %1059 = vmatprep.subr.bf16.mxu0 0
        %1060 = vmatpush2.bf16.msra.mxu0 0
        %1061 = vmatprep.subr.bf16.mxu0 0
        %1062 = vmatpush2.bf16.msra.mxu0 0
        %1063 = vmatprep.subr.bf16.mxu0 0
        %1064 = vmatpush2.bf16.msra.mxu0 0
        %1065 = vmatprep.mubr.bf16.mxu0 0
        %1066 = vmatmul.mubr.bf16.gmra.mxu0 %v847
        %v1067 = vpop.f32.mrf.mxu0
        %v1068 = vadd.f32 %v860, %v1067
        %v1069 = vpop.f32.mrf.mxu0
        %v1070 = vpop.f32.mrf.mxu0
        %v1071 = vpop.f32.mrf.mxu0
        %1072 = vdwg.mxu0
        %v1073 = vmul.f32 %v1027, 0.17677669
        %v1074 = vpack.c.bf16 %v1073, %v1073
        %v1075 = vpack.c.bf16 %v1029, %v1029
        %v1076 = vpack.c.bf16 %v1068, %v1068
        %v1078 = vlaneseq
        %v1079 = vshrl.u32 %v1078, 7
        %v1080 = vsub.s32 0, %v1079
        %v1081 = vrot.slane %v658, %v1080
        %vm1083 = vcmask 261120
        %v1085 = vsel %vm1083, %v1074, 0
        %v1088 = vsel %vm1083, %v1075, 0
        %1090 = vmatprep.subr.bf16.mxu0 0
        %1091 = vmatpush1.bf16.xpose.msra.mxu0 0
        %1092 = vmatprep.subr.bf16.mxu0 0
        %1093 = vmatpush1.bf16.xpose.msra.mxu0 0
        %1094 = vmatprep.subr.bf16.mxu0 0
        %1095 = vmatpush1.bf16.xpose.msra.mxu0 0
        %1096 = vmatprep.subr.bf16.mxu0 0
        %1097 = vmatpush1.bf16.xpose.msra.mxu0 0
        %1098 = vmatprep.subr.bf16.mxu0 0
        %1099 = vmatpush1.bf16.xpose.msra.mxu0 0
        %1100 = vmatprep.subr.bf16.mxu0 0
        %1101 = vmatpush1.bf16.xpose.msra.mxu0 0
        %1102 = vmatprep.subr.bf16.mxu0 0
        %1103 = vmatpush1.bf16.xpose.msra.mxu0 0
        %1104 = vmatprep.subr.bf16.mxu0 0
        %1105 = vmatpush1.bf16.xpose.msra.mxu0 %v1088
        %1106 = vmatprep.subr.bf16.mxu0 0
        %1107 = vmatpush2.bf16.xpose.msra.mxu0 0
        %1108 = vmatprep.subr.bf16.mxu0 0
        %1109 = vmatpush2.bf16.xpose.msra.mxu0 0
        %1110 = vmatprep.subr.bf16.mxu0 0
        %1111 = vmatpush2.bf16.xpose.msra.mxu0 0
        %1112 = vmatprep.subr.bf16.mxu0 0
        %1113 = vmatpush2.bf16.xpose.msra.mxu0 0
        %1114 = vmatprep.subr.bf16.mxu0 0
        %1115 = vmatpush2.bf16.xpose.msra.mxu0 0
        %1116 = vmatprep.subr.bf16.mxu0 0
        %1117 = vmatpush2.bf16.xpose.msra.mxu0 0
        %1118 = vmatprep.subr.bf16.mxu0 0
        %1119 = vmatpush2.bf16.xpose.msra.mxu0 0
        %1120 = vmatprep.subr.bf16.mxu0 0
        %1121 = vmatpush2.bf16.xpose.msra.mxu0 0
        %1122 = vmatprep.mubr.bf16.mxu0 0
        %1123 = vmatmul.mubr.bf16.gmra.mxu0 %v1085
        %v1124 = vpop.f32.mrf.mxu0
        %v1125 = vadd.f32 %v1081, %v1124
        %v1126 = vpop.f32.mrf.mxu0
        %v1127 = vpop.f32.mrf.mxu0
        %v1128 = vpop.f32.mrf.mxu0
        %1129 = vdwg.mxu0
        %vm1130 = vcmask 64512
        %v1131 = vsel %vm1130, %v1125, -inf
        %1132 = vmax.xlane.f32.xlu0 %v1131
        %v1133 = vpop.xlane.xlu0 %1132
        %v1134 = vsub.f32 %v1125, %v1133
        %v1135 = vmul.f32 %v1134, 1.442695
        %v1136 = vpow.pop %v1135
        %v1137 = vsel %vm1130, %v1136, 0.0
        %1138 = vadd.xlane.f32.xlu0 %v1137
        %v1139 = vpop.xlane.xlu0 %1138
        %v1140 = vrcp.pop %v1139
        %v1141 = vmul.f32 %v1136, %v1140
        %v1142 = vpack.c.bf16 %v1141, %v1141
        %v1144 = vsel %vm1130, %v1142, 0
        %vm1146 = vcmask 1043456
        %v1148 = vsel %vm1146, %v1076, 0
        %1150 = vmatprep.subr.bf16.mxu0 0
        %1151 = vmatpush1.bf16.msra.mxu0 0
        %1152 = vmatprep.subr.bf16.mxu0 0
        %1153 = vmatpush1.bf16.msra.mxu0 0
        %1154 = vmatprep.subr.bf16.mxu0 0
        %1155 = vmatpush1.bf16.msra.mxu0 0
        %1156 = vmatprep.subr.bf16.mxu0 0
        %1157 = vmatpush1.bf16.msra.mxu0 0
        %1158 = vmatprep.subr.bf16.mxu0 0
        %1159 = vmatpush1.bf16.msra.mxu0 0
        %1160 = vmatprep.subr.bf16.mxu0 0
        %1161 = vmatpush1.bf16.msra.mxu0 0
        %1162 = vmatprep.subr.bf16.mxu0 0
        %1163 = vmatpush1.bf16.msra.mxu0 0
        %1164 = vmatprep.subr.bf16.mxu0 0
        %1165 = vmatpush1.bf16.msra.mxu0 %v1148
        %1166 = vmatprep.subr.bf16.mxu0 0
        %1167 = vmatpush2.bf16.msra.mxu0 0
        %1168 = vmatprep.subr.bf16.mxu0 0
        %1169 = vmatpush2.bf16.msra.mxu0 0
        %1170 = vmatprep.subr.bf16.mxu0 0
        %1171 = vmatpush2.bf16.msra.mxu0 0
        %1172 = vmatprep.subr.bf16.mxu0 0
        %1173 = vmatpush2.bf16.msra.mxu0 0
        %1174 = vmatprep.subr.bf16.mxu0 0
        %1175 = vmatpush2.bf16.msra.mxu0 0
        %1176 = vmatprep.subr.bf16.mxu0 0
        %1177 = vmatpush2.bf16.msra.mxu0 0
        %1178 = vmatprep.subr.bf16.mxu0 0
        %1179 = vmatpush2.bf16.msra.mxu0 0
        %1180 = vmatprep.subr.bf16.mxu0 0
        %1181 = vmatpush2.bf16.msra.mxu0 0
        %1182 = vmatprep.mubr.bf16.mxu0 0
        %1183 = vmatmul.mubr.bf16.gmra.mxu0 %v1144
        %v1184 = vpop.f32.mrf.mxu0
        %v1185 = vadd.f32 0.0, %v1184
        %v1186 = vpop.f32.mrf.mxu0
        %v1187 = vpop.f32.mrf.mxu0
        %v1188 = vpop.f32.mrf.mxu0
        %1189 = vdwg.mxu0
        %v1190 = vpack.c.bf16 %v1185, %v1185
        %1192 = vrot.lane.b32.xlu0 %v1074, 96
        %v1193 = vpop.permute.xlu0 %1192
        %1195 = vrot.lane.b32.xlu0 %v1075, 96
        %v1196 = vpop.permute.xlu0 %1195
        %v1198 = vsel %vm1083, %v1193, 0
        %v1201 = vsel %vm1083, %v1196, 0
        %1203 = vmatprep.subr.bf16.mxu0 0
        %1204 = vmatpush1.bf16.xpose.msra.mxu0 0
        %1205 = vmatprep.subr.bf16.mxu0 0
        %1206 = vmatpush1.bf16.xpose.msra.mxu0 0
        %1207 = vmatprep.subr.bf16.mxu0 0
        %1208 = vmatpush1.bf16.xpose.msra.mxu0 0
        %1209 = vmatprep.subr.bf16.mxu0 0
        %1210 = vmatpush1.bf16.xpose.msra.mxu0 0
        %1211 = vmatprep.subr.bf16.mxu0 0
        %1212 = vmatpush1.bf16.xpose.msra.mxu0 0
        %1213 = vmatprep.subr.bf16.mxu0 0
        %1214 = vmatpush1.bf16.xpose.msra.mxu0 0
        %1215 = vmatprep.subr.bf16.mxu0 0
        %1216 = vmatpush1.bf16.xpose.msra.mxu0 0
        %1217 = vmatprep.subr.bf16.mxu0 0
        %1218 = vmatpush1.bf16.xpose.msra.mxu0 %v1201
        %1219 = vmatprep.subr.bf16.mxu0 0
        %1220 = vmatpush2.bf16.xpose.msra.mxu0 0
        %1221 = vmatprep.subr.bf16.mxu0 0
        %1222 = vmatpush2.bf16.xpose.msra.mxu0 0
        %1223 = vmatprep.subr.bf16.mxu0 0
        %1224 = vmatpush2.bf16.xpose.msra.mxu0 0
        %1225 = vmatprep.subr.bf16.mxu0 0
        %1226 = vmatpush2.bf16.xpose.msra.mxu0 0
        %1227 = vmatprep.subr.bf16.mxu0 0
        %1228 = vmatpush2.bf16.xpose.msra.mxu0 0
        %1229 = vmatprep.subr.bf16.mxu0 0
        %1230 = vmatpush2.bf16.xpose.msra.mxu0 0
        %1231 = vmatprep.subr.bf16.mxu0 0
        %1232 = vmatpush2.bf16.xpose.msra.mxu0 0
        %1233 = vmatprep.subr.bf16.mxu0 0
        %1234 = vmatpush2.bf16.xpose.msra.mxu0 0
        %1235 = vmatprep.mubr.bf16.mxu0 0
        %1236 = vmatmul.mubr.bf16.gmra.mxu0 %v1198
        %v1237 = vpop.f32.mrf.mxu0
        %v1238 = vadd.f32 %v1081, %v1237
        %v1239 = vpop.f32.mrf.mxu0
        %v1240 = vpop.f32.mrf.mxu0
        %v1241 = vpop.f32.mrf.mxu0
        %1242 = vdwg.mxu0
        %v1243 = vsel %vm1130, %v1238, -inf
        %1244 = vmax.xlane.f32.xlu0 %v1243
        %v1245 = vpop.xlane.xlu0 %1244
        %v1246 = vsub.f32 %v1238, %v1245
        %v1247 = vmul.f32 %v1246, 1.442695
        %v1248 = vpow.pop %v1247
        %v1249 = vsel %vm1130, %v1248, 0.0
        %1250 = vadd.xlane.f32.xlu0 %v1249
        %v1251 = vpop.xlane.xlu0 %1250
        %v1252 = vrcp.pop %v1251
        %v1253 = vmul.f32 %v1248, %v1252
        %v1254 = vpack.c.bf16 %v1253, %v1253
        %1256 = vrot.lane.b32.xlu0 %v1076, 96
        %v1257 = vpop.permute.xlu0 %1256
        %v1259 = vsel %vm1130, %v1254, 0
        %v1262 = vsel %vm1146, %v1257, 0
        %1264 = vmatprep.subr.bf16.mxu0 0
        %1265 = vmatpush1.bf16.msra.mxu0 0
        %1266 = vmatprep.subr.bf16.mxu0 0
        %1267 = vmatpush1.bf16.msra.mxu0 0
        %1268 = vmatprep.subr.bf16.mxu0 0
        %1269 = vmatpush1.bf16.msra.mxu0 0
        %1270 = vmatprep.subr.bf16.mxu0 0
        %1271 = vmatpush1.bf16.msra.mxu0 0
        %1272 = vmatprep.subr.bf16.mxu0 0
        %1273 = vmatpush1.bf16.msra.mxu0 0
        %1274 = vmatprep.subr.bf16.mxu0 0
        %1275 = vmatpush1.bf16.msra.mxu0 0
        %1276 = vmatprep.subr.bf16.mxu0 0
        %1277 = vmatpush1.bf16.msra.mxu0 0
        %1278 = vmatprep.subr.bf16.mxu0 0
        %1279 = vmatpush1.bf16.msra.mxu0 %v1262
        %1280 = vmatprep.subr.bf16.mxu0 0
        %1281 = vmatpush2.bf16.msra.mxu0 0
        %1282 = vmatprep.subr.bf16.mxu0 0
        %1283 = vmatpush2.bf16.msra.mxu0 0
        %1284 = vmatprep.subr.bf16.mxu0 0
        %1285 = vmatpush2.bf16.msra.mxu0 0
        %1286 = vmatprep.subr.bf16.mxu0 0
        %1287 = vmatpush2.bf16.msra.mxu0 0
        %1288 = vmatprep.subr.bf16.mxu0 0
        %1289 = vmatpush2.bf16.msra.mxu0 0
        %1290 = vmatprep.subr.bf16.mxu0 0
        %1291 = vmatpush2.bf16.msra.mxu0 0
        %1292 = vmatprep.subr.bf16.mxu0 0
        %1293 = vmatpush2.bf16.msra.mxu0 0
        %1294 = vmatprep.subr.bf16.mxu0 0
        %1295 = vmatpush2.bf16.msra.mxu0 0
        %1296 = vmatprep.mubr.bf16.mxu0 0
        %1297 = vmatmul.mubr.bf16.gmra.mxu0 %v1259
        %v1298 = vpop.f32.mrf.mxu0
        %v1299 = vadd.f32 0.0, %v1298
        %v1300 = vpop.f32.mrf.mxu0
        %v1301 = vpop.f32.mrf.mxu0
        %v1302 = vpop.f32.mrf.mxu0
        %1303 = vdwg.mxu0
        %v1304 = vpack.c.bf16 %v1299, %v1299
        %v1309 = vunpack.c.l.b16 %v704
        %v1310 = vunpack.c.l.b16 %v705
        %v1311 = vunpack.c.l.b16 %v706
        %v1312 = vunpack.c.l.b16 %v707
        %v1313 = vpack.c.b16 %v1310, %v1309
        %v1314 = vpack.c.b16 %v1312, %v1311
        %v1318 = vsel %vm1083, %v1304, 0
        %1320 = vmatprep.subr.bf16.mxu0 0
        %1321 = vmatpush1.bf16.msra.mxu0 0
        %1322 = vmatprep.subr.bf16.mxu0 0
        %1323 = vmatpush1.bf16.msra.mxu0 0
        %1324 = vmatprep.subr.bf16.mxu0 0
        %1325 = vmatpush1.bf16.msra.mxu0 0
        %1326 = vmatprep.subr.bf16.mxu0 0
        %1327 = vmatpush1.bf16.msra.mxu0 0
        %1328 = vmatprep.subr.bf16.mxu0 0
        %1329 = vmatpush1.bf16.msra.mxu0 0
        %1330 = vmatprep.subr.bf16.mxu0 0
        %1331 = vmatpush1.bf16.msra.mxu0 0
        %1332 = vmatprep.subr.bf16.mxu0 0
        %1333 = vmatpush1.bf16.msra.mxu0 %v1314
        %1334 = vmatprep.subr.bf16.mxu0 0
        %1335 = vmatpush1.bf16.msra.mxu0 %v1313
        %1336 = vmatprep.subr.bf16.mxu0 0
        %1337 = vmatpush2.bf16.msra.mxu0 0
        %1338 = vmatprep.subr.bf16.mxu0 0
        %1339 = vmatpush2.bf16.msra.mxu0 0
        %1340 = vmatprep.subr.bf16.mxu0 0
        %1341 = vmatpush2.bf16.msra.mxu0 0
        %1342 = vmatprep.subr.bf16.mxu0 0
        %1343 = vmatpush2.bf16.msra.mxu0 0
        %1344 = vmatprep.subr.bf16.mxu0 0
        %1345 = vmatpush2.bf16.msra.mxu0 0
        %1346 = vmatprep.subr.bf16.mxu0 0
        %1347 = vmatpush2.bf16.msra.mxu0 0
        %1348 = vmatprep.subr.bf16.mxu0 0
        %1349 = vmatpush2.bf16.msra.mxu0 0
        %1350 = vmatprep.subr.bf16.mxu0 0
        %1351 = vmatpush2.bf16.msra.mxu0 0
        %1352 = vmatprep.mubr.bf16.mxu0 0
        %1353 = vmatmul.mubr.bf16.gmra.mxu0 %v1318
        %v1354 = vpop.f32.mrf.mxu0
        %v1355 = vadd.f32 0.0, %v1354
        %v1356 = vpop.f32.mrf.mxu0
        %v1357 = vpop.f32.mrf.mxu0
        %v1358 = vpop.f32.mrf.mxu0
        %1359 = vdwg.mxu0
        %v1364 = vunpack.c.l.b16 %v700
        %v1365 = vunpack.c.l.b16 %v701
        %v1366 = vunpack.c.l.b16 %v702
        %v1367 = vunpack.c.l.b16 %v703
        %v1368 = vpack.c.b16 %v1365, %v1364
        %v1369 = vpack.c.b16 %v1367, %v1366
        %v1373 = vsel %vm1083, %v1190, 0
        %1375 = vmatprep.subr.bf16.mxu0 0
        %1376 = vmatpush1.bf16.msra.mxu0 0
        %1377 = vmatprep.subr.bf16.mxu0 0
        %1378 = vmatpush1.bf16.msra.mxu0 0
        %1379 = vmatprep.subr.bf16.mxu0 0
        %1380 = vmatpush1.bf16.msra.mxu0 0
        %1381 = vmatprep.subr.bf16.mxu0 0
        %1382 = vmatpush1.bf16.msra.mxu0 0
        %1383 = vmatprep.subr.bf16.mxu0 0
        %1384 = vmatpush1.bf16.msra.mxu0 0
        %1385 = vmatprep.subr.bf16.mxu0 0
        %1386 = vmatpush1.bf16.msra.mxu0 0
        %1387 = vmatprep.subr.bf16.mxu0 0
        %1388 = vmatpush1.bf16.msra.mxu0 %v1369
        %1389 = vmatprep.subr.bf16.mxu0 0
        %1390 = vmatpush1.bf16.msra.mxu0 %v1368
        %1391 = vmatprep.subr.bf16.mxu0 0
        %1392 = vmatpush2.bf16.msra.mxu0 0
        %1393 = vmatprep.subr.bf16.mxu0 0
        %1394 = vmatpush2.bf16.msra.mxu0 0
        %1395 = vmatprep.subr.bf16.mxu0 0
        %1396 = vmatpush2.bf16.msra.mxu0 0
        %1397 = vmatprep.subr.bf16.mxu0 0
        %1398 = vmatpush2.bf16.msra.mxu0 0
        %1399 = vmatprep.subr.bf16.mxu0 0
        %1400 = vmatpush2.bf16.msra.mxu0 0
        %1401 = vmatprep.subr.bf16.mxu0 0
        %1402 = vmatpush2.bf16.msra.mxu0 0
        %1403 = vmatprep.subr.bf16.mxu0 0
        %1404 = vmatpush2.bf16.msra.mxu0 0
        %1405 = vmatprep.subr.bf16.mxu0 0
        %1406 = vmatpush2.bf16.msra.mxu0 0
        %1407 = vmatprep.mubr.bf16.mxu0 0
        %1408 = vmatmul.mubr.bf16.gmra.mxu0 %v1373
        %v1409 = vpop.f32.mrf.mxu0
        %v1410 = vadd.f32 %v1355, %v1409
        %v1411 = vpop.f32.mrf.mxu0
        %v1412 = vpop.f32.mrf.mxu0
        %v1413 = vpop.f32.mrf.mxu0
        %1414 = vdwg.mxu0
        %1415 = vrot.lane.b32.xlu0 %v1074, 64
        %v1416 = vpop.permute.xlu0 %1415
        %1417 = vrot.lane.b32.xlu0 %v1075, 64
        %v1418 = vpop.permute.xlu0 %1417
        %v1420 = vsel %vm1083, %v1416, 0
        %v1423 = vsel %vm1083, %v1418, 0
        %1425 = vmatprep.subr.bf16.mxu0 0
        %1426 = vmatpush1.bf16.xpose.msra.mxu0 0
        %1427 = vmatprep.subr.bf16.mxu0 0
        %1428 = vmatpush1.bf16.xpose.msra.mxu0 0
        %1429 = vmatprep.subr.bf16.mxu0 0
        %1430 = vmatpush1.bf16.xpose.msra.mxu0 0
        %1431 = vmatprep.subr.bf16.mxu0 0
        %1432 = vmatpush1.bf16.xpose.msra.mxu0 0
        %1433 = vmatprep.subr.bf16.mxu0 0
        %1434 = vmatpush1.bf16.xpose.msra.mxu0 0
        %1435 = vmatprep.subr.bf16.mxu0 0
        %1436 = vmatpush1.bf16.xpose.msra.mxu0 0
        %1437 = vmatprep.subr.bf16.mxu0 0
        %1438 = vmatpush1.bf16.xpose.msra.mxu0 0
        %1439 = vmatprep.subr.bf16.mxu0 0
        %1440 = vmatpush1.bf16.xpose.msra.mxu0 %v1423
        %1441 = vmatprep.subr.bf16.mxu0 0
        %1442 = vmatpush2.bf16.xpose.msra.mxu0 0
        %1443 = vmatprep.subr.bf16.mxu0 0
        %1444 = vmatpush2.bf16.xpose.msra.mxu0 0
        %1445 = vmatprep.subr.bf16.mxu0 0
        %1446 = vmatpush2.bf16.xpose.msra.mxu0 0
        %1447 = vmatprep.subr.bf16.mxu0 0
        %1448 = vmatpush2.bf16.xpose.msra.mxu0 0
        %1449 = vmatprep.subr.bf16.mxu0 0
        %1450 = vmatpush2.bf16.xpose.msra.mxu0 0
        %1451 = vmatprep.subr.bf16.mxu0 0
        %1452 = vmatpush2.bf16.xpose.msra.mxu0 0
        %1453 = vmatprep.subr.bf16.mxu0 0
        %1454 = vmatpush2.bf16.xpose.msra.mxu0 0
        %1455 = vmatprep.subr.bf16.mxu0 0
        %1456 = vmatpush2.bf16.xpose.msra.mxu0 0
        %1457 = vmatprep.mubr.bf16.mxu0 0
        %1458 = vmatmul.mubr.bf16.gmra.mxu0 %v1420
        %v1459 = vpop.f32.mrf.mxu0
        %v1460 = vadd.f32 %v1081, %v1459
        %v1461 = vpop.f32.mrf.mxu0
        %v1462 = vpop.f32.mrf.mxu0
        %v1463 = vpop.f32.mrf.mxu0
        %1464 = vdwg.mxu0
        %v1465 = vsel %vm1130, %v1460, -inf
        %1466 = vmax.xlane.f32.xlu0 %v1465
        %v1467 = vpop.xlane.xlu0 %1466
        %v1468 = vsub.f32 %v1460, %v1467
        %v1469 = vmul.f32 %v1468, 1.442695
        %v1470 = vpow.pop %v1469
        %v1471 = vsel %vm1130, %v1470, 0.0
        %1472 = vadd.xlane.f32.xlu0 %v1471
        %v1473 = vpop.xlane.xlu0 %1472
        %v1474 = vrcp.pop %v1473
        %v1475 = vmul.f32 %v1470, %v1474
        %v1476 = vpack.c.bf16 %v1475, %v1475
        %1477 = vrot.lane.b32.xlu0 %v1076, 64
        %v1478 = vpop.permute.xlu0 %1477
        %v1480 = vsel %vm1130, %v1476, 0
        %v1483 = vsel %vm1146, %v1478, 0
        %1485 = vmatprep.subr.bf16.mxu0 0
        %1486 = vmatpush1.bf16.msra.mxu0 0
        %1487 = vmatprep.subr.bf16.mxu0 0
        %1488 = vmatpush1.bf16.msra.mxu0 0
        %1489 = vmatprep.subr.bf16.mxu0 0
        %1490 = vmatpush1.bf16.msra.mxu0 0
        %1491 = vmatprep.subr.bf16.mxu0 0
        %1492 = vmatpush1.bf16.msra.mxu0 0
        %1493 = vmatprep.subr.bf16.mxu0 0
        %1494 = vmatpush1.bf16.msra.mxu0 0
        %1495 = vmatprep.subr.bf16.mxu0 0
        %1496 = vmatpush1.bf16.msra.mxu0 0
        %1497 = vmatprep.subr.bf16.mxu0 0
        %1498 = vmatpush1.bf16.msra.mxu0 0
        %1499 = vmatprep.subr.bf16.mxu0 0
        %1500 = vmatpush1.bf16.msra.mxu0 %v1483
        %1501 = vmatprep.subr.bf16.mxu0 0
        %1502 = vmatpush2.bf16.msra.mxu0 0
        %1503 = vmatprep.subr.bf16.mxu0 0
        %1504 = vmatpush2.bf16.msra.mxu0 0
        %1505 = vmatprep.subr.bf16.mxu0 0
        %1506 = vmatpush2.bf16.msra.mxu0 0
        %1507 = vmatprep.subr.bf16.mxu0 0
        %1508 = vmatpush2.bf16.msra.mxu0 0
        %1509 = vmatprep.subr.bf16.mxu0 0
        %1510 = vmatpush2.bf16.msra.mxu0 0
        %1511 = vmatprep.subr.bf16.mxu0 0
        %1512 = vmatpush2.bf16.msra.mxu0 0
        %1513 = vmatprep.subr.bf16.mxu0 0
        %1514 = vmatpush2.bf16.msra.mxu0 0
        %1515 = vmatprep.subr.bf16.mxu0 0
        %1516 = vmatpush2.bf16.msra.mxu0 0
        %1517 = vmatprep.mubr.bf16.mxu0 0
        %1518 = vmatmul.mubr.bf16.gmra.mxu0 %v1480
        %v1519 = vpop.f32.mrf.mxu0
        %v1520 = vadd.f32 0.0, %v1519
        %v1521 = vpop.f32.mrf.mxu0
        %v1522 = vpop.f32.mrf.mxu0
        %v1523 = vpop.f32.mrf.mxu0
        %1524 = vdwg.mxu0
        %v1525 = vpack.c.bf16 %v1520, %v1520
        %v1530 = vunpack.c.l.b16 %v708
        %v1531 = vunpack.c.l.b16 %v709
        %v1532 = vunpack.c.l.b16 %v710
        %v1533 = vunpack.c.l.b16 %v711
        %v1534 = vpack.c.b16 %v1531, %v1530
        %v1535 = vpack.c.b16 %v1533, %v1532
        %v1539 = vsel %vm1083, %v1525, 0
        %1541 = vmatprep.subr.bf16.mxu0 0
        %1542 = vmatpush1.bf16.msra.mxu0 0
        %1543 = vmatprep.subr.bf16.mxu0 0
        %1544 = vmatpush1.bf16.msra.mxu0 0
        %1545 = vmatprep.subr.bf16.mxu0 0
        %1546 = vmatpush1.bf16.msra.mxu0 0
        %1547 = vmatprep.subr.bf16.mxu0 0
        %1548 = vmatpush1.bf16.msra.mxu0 0
        %1549 = vmatprep.subr.bf16.mxu0 0
        %1550 = vmatpush1.bf16.msra.mxu0 0
        %1551 = vmatprep.subr.bf16.mxu0 0
        %1552 = vmatpush1.bf16.msra.mxu0 0
        %1553 = vmatprep.subr.bf16.mxu0 0
        %1554 = vmatpush1.bf16.msra.mxu0 %v1535
        %1555 = vmatprep.subr.bf16.mxu0 0
        %1556 = vmatpush1.bf16.msra.mxu0 %v1534
        %1557 = vmatprep.subr.bf16.mxu0 0
        %1558 = vmatpush2.bf16.msra.mxu0 0
        %1559 = vmatprep.subr.bf16.mxu0 0
        %1560 = vmatpush2.bf16.msra.mxu0 0
        %1561 = vmatprep.subr.bf16.mxu0 0
        %1562 = vmatpush2.bf16.msra.mxu0 0
        %1563 = vmatprep.subr.bf16.mxu0 0
        %1564 = vmatpush2.bf16.msra.mxu0 0
        %1565 = vmatprep.subr.bf16.mxu0 0
        %1566 = vmatpush2.bf16.msra.mxu0 0
        %1567 = vmatprep.subr.bf16.mxu0 0
        %1568 = vmatpush2.bf16.msra.mxu0 0
        %1569 = vmatprep.subr.bf16.mxu0 0
        %1570 = vmatpush2.bf16.msra.mxu0 0
        %1571 = vmatprep.subr.bf16.mxu0 0
        %1572 = vmatpush2.bf16.msra.mxu0 0
        %1573 = vmatprep.mubr.bf16.mxu0 0
        %1574 = vmatmul.mubr.bf16.gmra.mxu0 %v1539
        %v1575 = vpop.f32.mrf.mxu0
        %v1576 = vadd.f32 0.0, %v1575
        %v1577 = vpop.f32.mrf.mxu0
        %v1578 = vpop.f32.mrf.mxu0
        %v1579 = vpop.f32.mrf.mxu0
        %1580 = vdwg.mxu0
        %v1581 = vadd.f32 %v1410, %v1576
        %1582 = vrot.lane.b32.xlu0 %v1074, 32
        %v1583 = vpop.permute.xlu0 %1582
        %1584 = vrot.lane.b32.xlu0 %v1075, 32
        %v1585 = vpop.permute.xlu0 %1584
        %v1587 = vsel %vm1083, %v1583, 0
        %v1590 = vsel %vm1083, %v1585, 0
        %1592 = vmatprep.subr.bf16.mxu0 0
        %1593 = vmatpush1.bf16.xpose.msra.mxu0 0
        %1594 = vmatprep.subr.bf16.mxu0 0
        %1595 = vmatpush1.bf16.xpose.msra.mxu0 0
        %1596 = vmatprep.subr.bf16.mxu0 0
        %1597 = vmatpush1.bf16.xpose.msra.mxu0 0
        %1598 = vmatprep.subr.bf16.mxu0 0
        %1599 = vmatpush1.bf16.xpose.msra.mxu0 0
        %1600 = vmatprep.subr.bf16.mxu0 0
        %1601 = vmatpush1.bf16.xpose.msra.mxu0 0
        %1602 = vmatprep.subr.bf16.mxu0 0
        %1603 = vmatpush1.bf16.xpose.msra.mxu0 0
        %1604 = vmatprep.subr.bf16.mxu0 0
        %1605 = vmatpush1.bf16.xpose.msra.mxu0 0
        %1606 = vmatprep.subr.bf16.mxu0 0
        %1607 = vmatpush1.bf16.xpose.msra.mxu0 %v1590
        %1608 = vmatprep.subr.bf16.mxu0 0
        %1609 = vmatpush2.bf16.xpose.msra.mxu0 0
        %1610 = vmatprep.subr.bf16.mxu0 0
        %1611 = vmatpush2.bf16.xpose.msra.mxu0 0
        %1612 = vmatprep.subr.bf16.mxu0 0
        %1613 = vmatpush2.bf16.xpose.msra.mxu0 0
        %1614 = vmatprep.subr.bf16.mxu0 0
        %1615 = vmatpush2.bf16.xpose.msra.mxu0 0
        %1616 = vmatprep.subr.bf16.mxu0 0
        %1617 = vmatpush2.bf16.xpose.msra.mxu0 0
        %1618 = vmatprep.subr.bf16.mxu0 0
        %1619 = vmatpush2.bf16.xpose.msra.mxu0 0
        %1620 = vmatprep.subr.bf16.mxu0 0
        %1621 = vmatpush2.bf16.xpose.msra.mxu0 0
        %1622 = vmatprep.subr.bf16.mxu0 0
        %1623 = vmatpush2.bf16.xpose.msra.mxu0 0
        %1624 = vmatprep.mubr.bf16.mxu0 0
        %1625 = vmatmul.mubr.bf16.gmra.mxu0 %v1587
        %v1626 = vpop.f32.mrf.mxu0
        %v1627 = vadd.f32 %v1081, %v1626
        %v1628 = vpop.f32.mrf.mxu0
        %v1629 = vpop.f32.mrf.mxu0
        %v1630 = vpop.f32.mrf.mxu0
        %1631 = vdwg.mxu0
        %v1632 = vsel %vm1130, %v1627, -inf
        %1633 = vmax.xlane.f32.xlu0 %v1632
        %v1634 = vpop.xlane.xlu0 %1633
        %v1635 = vsub.f32 %v1627, %v1634
        %v1636 = vmul.f32 %v1635, 1.442695
        %v1637 = vpow.pop %v1636
        %v1638 = vsel %vm1130, %v1637, 0.0
        %1639 = vadd.xlane.f32.xlu0 %v1638
        %v1640 = vpop.xlane.xlu0 %1639
        %v1641 = vrcp.pop %v1640
        %v1642 = vmul.f32 %v1637, %v1641
        %v1643 = vpack.c.bf16 %v1642, %v1642
        %1644 = vrot.lane.b32.xlu0 %v1076, 32
        %v1645 = vpop.permute.xlu0 %1644
        %v1647 = vsel %vm1130, %v1643, 0
        %v1650 = vsel %vm1146, %v1645, 0
        %1652 = vmatprep.subr.bf16.mxu0 0
        %1653 = vmatpush1.bf16.msra.mxu0 0
        %1654 = vmatprep.subr.bf16.mxu0 0
        %1655 = vmatpush1.bf16.msra.mxu0 0
        %1656 = vmatprep.subr.bf16.mxu0 0
        %1657 = vmatpush1.bf16.msra.mxu0 0
        %1658 = vmatprep.subr.bf16.mxu0 0
        %1659 = vmatpush1.bf16.msra.mxu0 0
        %1660 = vmatprep.subr.bf16.mxu0 0
        %1661 = vmatpush1.bf16.msra.mxu0 0
        %1662 = vmatprep.subr.bf16.mxu0 0
        %1663 = vmatpush1.bf16.msra.mxu0 0
        %1664 = vmatprep.subr.bf16.mxu0 0
        %1665 = vmatpush1.bf16.msra.mxu0 0
        %1666 = vmatprep.subr.bf16.mxu0 0
        %1667 = vmatpush1.bf16.msra.mxu0 %v1650
        %1668 = vmatprep.subr.bf16.mxu0 0
        %1669 = vmatpush2.bf16.msra.mxu0 0
        %1670 = vmatprep.subr.bf16.mxu0 0
        %1671 = vmatpush2.bf16.msra.mxu0 0
        %1672 = vmatprep.subr.bf16.mxu0 0
        %1673 = vmatpush2.bf16.msra.mxu0 0
        %1674 = vmatprep.subr.bf16.mxu0 0
        %1675 = vmatpush2.bf16.msra.mxu0 0
        %1676 = vmatprep.subr.bf16.mxu0 0
        %1677 = vmatpush2.bf16.msra.mxu0 0
        %1678 = vmatprep.subr.bf16.mxu0 0
        %1679 = vmatpush2.bf16.msra.mxu0 0
        %1680 = vmatprep.subr.bf16.mxu0 0
        %1681 = vmatpush2.bf16.msra.mxu0 0
        %1682 = vmatprep.subr.bf16.mxu0 0
        %1683 = vmatpush2.bf16.msra.mxu0 0
        %1684 = vmatprep.mubr.bf16.mxu0 0
        %1685 = vmatmul.mubr.bf16.gmra.mxu0 %v1647
        %v1686 = vpop.f32.mrf.mxu0
        %v1687 = vadd.f32 0.0, %v1686
        %v1688 = vpop.f32.mrf.mxu0
        %v1689 = vpop.f32.mrf.mxu0
        %v1690 = vpop.f32.mrf.mxu0
        %1691 = vdwg.mxu0
        %v1692 = vpack.c.bf16 %v1687, %v1687
        %v1697 = vunpack.c.l.b16 %v712
        %v1698 = vunpack.c.l.b16 %v713
        %v1699 = vunpack.c.l.b16 %v714
        %v1700 = vunpack.c.l.b16 %v715
        %v1701 = vpack.c.b16 %v1698, %v1697
        %v1702 = vpack.c.b16 %v1700, %v1699
        %v1706 = vsel %vm1083, %v1692, 0
        %1708 = vmatprep.subr.bf16.mxu0 0
        %1709 = vmatpush1.bf16.msra.mxu0 0
        %1710 = vmatprep.subr.bf16.mxu0 0
        %1711 = vmatpush1.bf16.msra.mxu0 0
        %1712 = vmatprep.subr.bf16.mxu0 0
        %1713 = vmatpush1.bf16.msra.mxu0 0
        %1714 = vmatprep.subr.bf16.mxu0 0
        %1715 = vmatpush1.bf16.msra.mxu0 0
        %1716 = vmatprep.subr.bf16.mxu0 0
        %1717 = vmatpush1.bf16.msra.mxu0 0
        %1718 = vmatprep.subr.bf16.mxu0 0
        %1719 = vmatpush1.bf16.msra.mxu0 0
        %1720 = vmatprep.subr.bf16.mxu0 0
        %1721 = vmatpush1.bf16.msra.mxu0 %v1702
        %1722 = vmatprep.subr.bf16.mxu0 0
        %1723 = vmatpush1.bf16.msra.mxu0 %v1701
        %1724 = vmatprep.subr.bf16.mxu0 0
        %1725 = vmatpush2.bf16.msra.mxu0 0
        %1726 = vmatprep.subr.bf16.mxu0 0
        %1727 = vmatpush2.bf16.msra.mxu0 0
        %1728 = vmatprep.subr.bf16.mxu0 0
        %1729 = vmatpush2.bf16.msra.mxu0 0
        %1730 = vmatprep.subr.bf16.mxu0 0
        %1731 = vmatpush2.bf16.msra.mxu0 0
        %1732 = vmatprep.subr.bf16.mxu0 0
        %1733 = vmatpush2.bf16.msra.mxu0 0
        %1734 = vmatprep.subr.bf16.mxu0 0
        %1735 = vmatpush2.bf16.msra.mxu0 0
        %1736 = vmatprep.subr.bf16.mxu0 0
        %1737 = vmatpush2.bf16.msra.mxu0 0
        %1738 = vmatprep.subr.bf16.mxu0 0
        %1739 = vmatpush2.bf16.msra.mxu0 0
        %1740 = vmatprep.mubr.bf16.mxu0 0
        %1741 = vmatmul.mubr.bf16.gmra.mxu0 %v1706
        %v1742 = vpop.f32.mrf.mxu0
        %v1743 = vadd.f32 0.0, %v1742
        %v1744 = vpop.f32.mrf.mxu0
        %v1745 = vpop.f32.mrf.mxu0
        %v1746 = vpop.f32.mrf.mxu0
        %1747 = vdwg.mxu0
        %v1748 = vadd.f32 %v1581, %v1743
        %v1750 = vlaneseq
        %v1751 = vshrl.u32 %v1750, 7
        %v1752 = vsub.s32 0, %v1751
        %v1753 = vrot.slane %v716, %v1752
        %v1755 = vadd.f32 %v1748, %v1753
        %v1756 = vadd.f32 %v842, %v1755
        %1757 = vadd.xlane.f32.xlu0 %v1756
        %v1758 = vpop.xlane.xlu0 %1757
        %v1759 = vrcp.pop 128.0
        %v1760 = vmul.f32 %v1758, %v1759
        %v1761 = vsub.f32 %v1756, %v1760
        %v1762 = vmul.f32 %v1761, %v1761
        %1763 = vadd.xlane.f32.xlu0 %v1762
        %v1764 = vpop.xlane.xlu0 %1763
        %v1765 = vmul.f32 %v1764, %v1759
        %v1766 = vadd.f32 %v1765, 1e-12
        %v1767 = vrsqrt.pop %v1766
        %v1768 = vmul.f32 %v1761, %v1767
        %v1770 = vlaneseq
        %v1771 = vshrl.u32 %v1770, 7
        %v1772 = vsub.s32 0, %v1771
        %v1773 = vrot.slane %v767, %v1772
        %v1775 = vmul.f32 %v1768, %v1773
        %v1777 = vlaneseq
        %v1778 = vshrl.u32 %v1777, 7
        %v1779 = vsub.s32 0, %v1778
        %v1780 = vrot.slane %v768, %v1779
        %v1782 = vadd.f32 %v1775, %v1780
        %v1783 = vpack.c.bf16 %v1782, %v1782
        %v1785 = vlaneseq
        %v1786 = vshrl.u32 %v1785, 7
        %v1787 = vsub.s32 0, %v1786
        %v1788 = vrot.slane %v733, %v1787
        %v1789 = vlaneseq
        %v1790 = vshrl.u32 %v1789, 7
        %v1791 = vsub.s32 1, %v1790
        %v1792 = vrot.slane %v733, %v1791
        %v1811 = vunpack.c.l.b16 %v717
        %v1812 = vunpack.c.h.b16 %v717
        %v1813 = vunpack.c.l.b16 %v718
        %v1814 = vunpack.c.h.b16 %v718
        %v1815 = vunpack.c.l.b16 %v719
        %v1816 = vunpack.c.h.b16 %v719
        %v1817 = vunpack.c.l.b16 %v720
        %v1818 = vunpack.c.h.b16 %v720
        %v1819 = vunpack.c.l.b16 %v721
        %v1820 = vunpack.c.h.b16 %v721
        %v1821 = vunpack.c.l.b16 %v722
        %v1822 = vunpack.c.h.b16 %v722
        %v1823 = vunpack.c.l.b16 %v723
        %v1824 = vunpack.c.h.b16 %v723
        %v1825 = vunpack.c.l.b16 %v724
        %v1826 = vunpack.c.h.b16 %v724
        %v1827 = vunpack.c.l.b16 %v725
        %v1828 = vunpack.c.h.b16 %v725
        %v1829 = vunpack.c.l.b16 %v726
        %v1830 = vunpack.c.h.b16 %v726
        %v1831 = vunpack.c.l.b16 %v727
        %v1832 = vunpack.c.h.b16 %v727
        %v1833 = vunpack.c.l.b16 %v728
        %v1834 = vunpack.c.h.b16 %v728
        %v1835 = vunpack.c.l.b16 %v729
        %v1836 = vunpack.c.h.b16 %v729
        %v1837 = vunpack.c.l.b16 %v730
        %v1838 = vunpack.c.h.b16 %v730
        %v1839 = vunpack.c.l.b16 %v731
        %v1840 = vunpack.c.h.b16 %v731
        %v1841 = vunpack.c.l.b16 %v732
        %v1842 = vunpack.c.h.b16 %v732
        %v1843 = vpack.c.b16 %v1813, %v1811
        %v1844 = vpack.c.b16 %v1814, %v1812
        %v1845 = vpack.c.b16 %v1817, %v1815
        %v1846 = vpack.c.b16 %v1818, %v1816
        %v1847 = vpack.c.b16 %v1821, %v1819
        %v1848 = vpack.c.b16 %v1822, %v1820
        %v1849 = vpack.c.b16 %v1825, %v1823
        %v1850 = vpack.c.b16 %v1826, %v1824
        %v1851 = vpack.c.b16 %v1829, %v1827
        %v1852 = vpack.c.b16 %v1830, %v1828
        %v1853 = vpack.c.b16 %v1833, %v1831
        %v1854 = vpack.c.b16 %v1834, %v1832
        %v1855 = vpack.c.b16 %v1837, %v1835
        %v1856 = vpack.c.b16 %v1838, %v1836
        %v1857 = vpack.c.b16 %v1841, %v1839
        %v1858 = vpack.c.b16 %v1842, %v1840
        %1875 = vmatprep.subr.bf16.mxu0 %v1858
        %1876 = vmatpush1.bf16.msra.mxu0 %v1857
        %1877 = vmatprep.subr.bf16.mxu0 %v1856
        %1878 = vmatpush1.bf16.msra.mxu0 %v1855
        %1879 = vmatprep.subr.bf16.mxu0 %v1854
        %1880 = vmatpush1.bf16.msra.mxu0 %v1853
        %1881 = vmatprep.subr.bf16.mxu0 %v1852
        %1882 = vmatpush1.bf16.msra.mxu0 %v1851
        %1883 = vmatprep.subr.bf16.mxu0 %v1850
        %1884 = vmatpush1.bf16.msra.mxu0 %v1849
        %1885 = vmatprep.subr.bf16.mxu0 %v1848
        %1886 = vmatpush1.bf16.msra.mxu0 %v1847
        %1887 = vmatprep.subr.bf16.mxu0 %v1846
        %1888 = vmatpush1.bf16.msra.mxu0 %v1845
        %1889 = vmatprep.subr.bf16.mxu0 %v1844
        %1890 = vmatpush1.bf16.msra.mxu0 %v1843
        %1891 = vmatprep.subr.bf16.mxu0 0
        %1892 = vmatpush2.bf16.msra.mxu0 0
        %1893 = vmatprep.subr.bf16.mxu0 0
        %1894 = vmatpush2.bf16.msra.mxu0 0
        %1895 = vmatprep.subr.bf16.mxu0 0
        %1896 = vmatpush2.bf16.msra.mxu0 0
        %1897 = vmatprep.subr.bf16.mxu0 0
        %1898 = vmatpush2.bf16.msra.mxu0 0
        %1899 = vmatprep.subr.bf16.mxu0 0
        %1900 = vmatpush2.bf16.msra.mxu0 0
        %1901 = vmatprep.subr.bf16.mxu0 0
        %1902 = vmatpush2.bf16.msra.mxu0 0
        %1903 = vmatprep.subr.bf16.mxu0 0
        %1904 = vmatpush2.bf16.msra.mxu0 0
        %1905 = vmatprep.subr.bf16.mxu0 0
        %1906 = vmatpush2.bf16.msra.mxu0 0
        %1907 = vmatprep.mubr.bf16.mxu0 0
        %1908 = vmatmul.mubr.bf16.gmra.mxu0 %v1783
        %v1909 = vpop.f32.mrf.mxu0
        %v1910 = vadd.f32 %v1788, %v1909
        %v1911 = vpop.f32.mrf.mxu0
        %v1912 = vadd.f32 %v1792, %v1911
        %v1913 = vpop.f32.mrf.mxu0
        %v1914 = vpop.f32.mrf.mxu0
        %1915 = vdwg.mxu0
        %v1916 = vmul.f32 %v1910, 0.5
        %v1917 = vmul.f32 %v1912, 0.5
        %v1918 = vmul.f32 %v1910, %v1910
        %v1919 = vmul.f32 %v1912, %v1912
        %v1920 = vmul.f32 %v1918, %v1910
        %v1921 = vmul.f32 %v1919, %v1912
        %v1922 = vmul.f32 %v1920, 0.044715
        %v1923 = vmul.f32 %v1921, 0.044715
        %v1924 = vadd.f32 %v1910, %v1922
        %v1925 = vadd.f32 %v1912, %v1923
        %v1926 = vmul.f32 %v1924, 0.7978846
        %v1927 = vmul.f32 %v1925, 0.7978846
        %v1928 = vtanh.pop %v1926
        %v1929 = vtanh.pop %v1927
        %v1930 = vadd.f32 %v1928, 1.0
        %v1931 = vadd.f32 %v1929, 1.0
        %v1932 = vmul.f32 %v1916, %v1930
        %v1933 = vmul.f32 %v1917, %v1931
        %v1934 = vpack.c.bf16 %v1932, %v1932
        %v1935 = vpack.c.bf16 %v1933, %v1933
        %v1937 = vlaneseq
        %v1938 = vshrl.u32 %v1937, 7
        %v1939 = vsub.s32 0, %v1938
        %v1940 = vrot.slane %v766, %v1939
        %v1974 = vunpack.c.l.b16 %v734
        %v1975 = vunpack.c.l.b16 %v735
        %v1976 = vunpack.c.l.b16 %v736
        %v1977 = vunpack.c.l.b16 %v737
        %v1978 = vunpack.c.l.b16 %v738
        %v1979 = vunpack.c.l.b16 %v739
        %v1980 = vunpack.c.l.b16 %v740
        %v1981 = vunpack.c.l.b16 %v741
        %v1982 = vunpack.c.l.b16 %v742
        %v1983 = vunpack.c.l.b16 %v743
        %v1984 = vunpack.c.l.b16 %v744
        %v1985 = vunpack.c.l.b16 %v745
        %v1986 = vunpack.c.l.b16 %v746
        %v1987 = vunpack.c.l.b16 %v747
        %v1988 = vunpack.c.l.b16 %v748
        %v1989 = vunpack.c.l.b16 %v749
        %v1990 = vunpack.c.l.b16 %v750
        %v1991 = vunpack.c.l.b16 %v751
        %v1992 = vunpack.c.l.b16 %v752
        %v1993 = vunpack.c.l.b16 %v753
        %v1994 = vunpack.c.l.b16 %v754
        %v1995 = vunpack.c.l.b16 %v755
        %v1996 = vunpack.c.l.b16 %v756
        %v1997 = vunpack.c.l.b16 %v757
        %v1998 = vunpack.c.l.b16 %v758
        %v1999 = vunpack.c.l.b16 %v759
        %v2000 = vunpack.c.l.b16 %v760
        %v2001 = vunpack.c.l.b16 %v761
        %v2002 = vunpack.c.l.b16 %v762
        %v2003 = vunpack.c.l.b16 %v763
        %v2004 = vunpack.c.l.b16 %v764
        %v2005 = vunpack.c.l.b16 %v765
        %v2006 = vpack.c.b16 %v1975, %v1974
        %v2007 = vpack.c.b16 %v1977, %v1976
        %v2008 = vpack.c.b16 %v1979, %v1978
        %v2009 = vpack.c.b16 %v1981, %v1980
        %v2010 = vpack.c.b16 %v1983, %v1982
        %v2011 = vpack.c.b16 %v1985, %v1984
        %v2012 = vpack.c.b16 %v1987, %v1986
        %v2013 = vpack.c.b16 %v1989, %v1988
        %v2014 = vpack.c.b16 %v1991, %v1990
        %v2015 = vpack.c.b16 %v1993, %v1992
        %v2016 = vpack.c.b16 %v1995, %v1994
        %v2017 = vpack.c.b16 %v1997, %v1996
        %v2018 = vpack.c.b16 %v1999, %v1998
        %v2019 = vpack.c.b16 %v2001, %v2000
        %v2020 = vpack.c.b16 %v2003, %v2002
        %v2021 = vpack.c.b16 %v2005, %v2004
        %2038 = vmatprep.subr.bf16.mxu0 0
        %2039 = vmatpush1.bf16.msra.mxu0 %v2013
        %2040 = vmatprep.subr.bf16.mxu0 0
        %2041 = vmatpush1.bf16.msra.mxu0 %v2012
        %2042 = vmatprep.subr.bf16.mxu0 0
        %2043 = vmatpush1.bf16.msra.mxu0 %v2011
        %2044 = vmatprep.subr.bf16.mxu0 0
        %2045 = vmatpush1.bf16.msra.mxu0 %v2010
        %2046 = vmatprep.subr.bf16.mxu0 0
        %2047 = vmatpush1.bf16.msra.mxu0 %v2009
        %2048 = vmatprep.subr.bf16.mxu0 0
        %2049 = vmatpush1.bf16.msra.mxu0 %v2008
        %2050 = vmatprep.subr.bf16.mxu0 0
        %2051 = vmatpush1.bf16.msra.mxu0 %v2007
        %2052 = vmatprep.subr.bf16.mxu0 0
        %2053 = vmatpush1.bf16.msra.mxu0 %v2006
        %2054 = vmatprep.subr.bf16.mxu0 0
        %2055 = vmatpush2.bf16.msra.mxu0 %v2021
        %2056 = vmatprep.subr.bf16.mxu0 0
        %2057 = vmatpush2.bf16.msra.mxu0 %v2020
        %2058 = vmatprep.subr.bf16.mxu0 0
        %2059 = vmatpush2.bf16.msra.mxu0 %v2019
        %2060 = vmatprep.subr.bf16.mxu0 0
        %2061 = vmatpush2.bf16.msra.mxu0 %v2018
        %2062 = vmatprep.subr.bf16.mxu0 0
        %2063 = vmatpush2.bf16.msra.mxu0 %v2017
        %2064 = vmatprep.subr.bf16.mxu0 0
        %2065 = vmatpush2.bf16.msra.mxu0 %v2016
        %2066 = vmatprep.subr.bf16.mxu0 0
        %2067 = vmatpush2.bf16.msra.mxu0 %v2015
        %2068 = vmatprep.subr.bf16.mxu0 0
        %2069 = vmatpush2.bf16.msra.mxu0 %v2014
        %2070 = vmatprep.mubr.bf16.mxu0 %v1935
        %2071 = vmatmul.mubr.bf16.gmra.mxu0 %v1934
        %v2072 = vpop.f32.mrf.mxu0
        %v2073 = vadd.f32 %v1940, %v2072
        %v2074 = vpop.f32.mrf.mxu0
        %v2075 = vpop.f32.mrf.mxu0
        %v2076 = vpop.f32.mrf.mxu0
        %2077 = vdwg.mxu0
        %v2078 = vadd.f32 %v2073, %v1782
        %2079 = vadd.xlane.f32.xlu0 %v2078
        %v2080 = vpop.xlane.xlu0 %2079
        %v2081 = vmul.f32 %v2080, %v1759
        %v2082 = vsub.f32 %v2078, %v2081
        %v2083 = vmul.f32 %v2082, %v2082
        %2084 = vadd.xlane.f32.xlu0 %v2083
        %v2085 = vpop.xlane.xlu0 %2084
        %v2086 = vmul.f32 %v2085, %v1759
        %v2087 = vadd.f32 %v2086, 1e-12
        %v2088 = vrsqrt.pop %v2087
        %v2089 = vmul.f32 %v2082, %v2088
        %v2091 = vlaneseq
        %v2092 = vshrl.u32 %v2091, 7
        %v2093 = vsub.s32 0, %v2092
        %v2094 = vrot.slane %v769, %v2093
        %v2096 = vmul.f32 %v2089, %v2094
        %v2098 = vlaneseq
        %v2099 = vshrl.u32 %v2098, 7
        %v2100 = vsub.s32 0, %v2099
        %v2101 = vrot.slane %v770, %v2100
        %v2103 = vadd.f32 %v2096, %v2101
        %v2104 = vpack.c.bf16 %v2103, %v2103
        %2105 = vmatprep.subr.bf16.mxu0 %v966
        %2106 = vmatpush1.bf16.msra.mxu0 %v965
        %2107 = vmatprep.subr.bf16.mxu0 %v963
        %2108 = vmatpush1.bf16.msra.mxu0 %v962
        %2109 = vmatprep.subr.bf16.mxu0 %v960
        %2110 = vmatpush1.bf16.msra.mxu0 %v959
        %2111 = vmatprep.subr.bf16.mxu0 %v957
        %2112 = vmatpush1.bf16.msra.mxu0 %v956
        %2113 = vmatprep.subr.bf16.mxu0 %v954
        %2114 = vmatpush1.bf16.msra.mxu0 %v953
        %2115 = vmatprep.subr.bf16.mxu0 %v951
        %2116 = vmatpush1.bf16.msra.mxu0 %v950
        %2117 = vmatprep.subr.bf16.mxu0 %v948
        %2118 = vmatpush1.bf16.msra.mxu0 %v947
        %2119 = vmatprep.subr.bf16.mxu0 %v945
        %2120 = vmatpush1.bf16.msra.mxu0 %v944
        %2121 = vmatprep.subr.bf16.mxu0 0
        %2122 = vmatpush2.bf16.msra.mxu0 0
        %2123 = vmatprep.subr.bf16.mxu0 0
        %2124 = vmatpush2.bf16.msra.mxu0 0
        %2125 = vmatprep.subr.bf16.mxu0 0
        %2126 = vmatpush2.bf16.msra.mxu0 0
        %2127 = vmatprep.subr.bf16.mxu0 0
        %2128 = vmatpush2.bf16.msra.mxu0 0
        %2129 = vmatprep.subr.bf16.mxu0 0
        %2130 = vmatpush2.bf16.msra.mxu0 0
        %2131 = vmatprep.subr.bf16.mxu0 0
        %2132 = vmatpush2.bf16.msra.mxu0 0
        %2133 = vmatprep.subr.bf16.mxu0 0
        %2134 = vmatpush2.bf16.msra.mxu0 0
        %2135 = vmatprep.subr.bf16.mxu0 0
        %2136 = vmatpush2.bf16.msra.mxu0 0
        %2137 = vmatprep.mubr.bf16.mxu0 0
        %2138 = vmatmul.mubr.bf16.gmra.mxu0 %v2104
        %v2139 = vpop.f32.mrf.mxu0
        %v2140 = vadd.f32 %v852, %v2139
        %v2141 = vpop.f32.mrf.mxu0
        %v2142 = vadd.f32 %v856, %v2141
        %v2143 = vpop.f32.mrf.mxu0
        %v2144 = vpop.f32.mrf.mxu0
        %2145 = vdwg.mxu0
        %2146 = vmatprep.subr.bf16.mxu0 0
        %2147 = vmatpush1.bf16.msra.mxu0 %v967
        %2148 = vmatprep.subr.bf16.mxu0 0
        %2149 = vmatpush1.bf16.msra.mxu0 %v964
        %2150 = vmatprep.subr.bf16.mxu0 0
        %2151 = vmatpush1.bf16.msra.mxu0 %v961
        %2152 = vmatprep.subr.bf16.mxu0 0
        %2153 = vmatpush1.bf16.msra.mxu0 %v958
        %2154 = vmatprep.subr.bf16.mxu0 0
        %2155 = vmatpush1.bf16.msra.mxu0 %v955
        %2156 = vmatprep.subr.bf16.mxu0 0
        %2157 = vmatpush1.bf16.msra.mxu0 %v952
        %2158 = vmatprep.subr.bf16.mxu0 0
        %2159 = vmatpush1.bf16.msra.mxu0 %v949
        %2160 = vmatprep.subr.bf16.mxu0 0
        %2161 = vmatpush1.bf16.msra.mxu0 %v946
        %2162 = vmatprep.subr.bf16.mxu0 0
        %2163 = vmatpush2.bf16.msra.mxu0 0
        %2164 = vmatprep.subr.bf16.mxu0 0
        %2165 = vmatpush2.bf16.msra.mxu0 0
        %2166 = vmatprep.subr.bf16.mxu0 0
        %2167 = vmatpush2.bf16.msra.mxu0 0
        %2168 = vmatprep.subr.bf16.mxu0 0
        %2169 = vmatpush2.bf16.msra.mxu0 0
        %2170 = vmatprep.subr.bf16.mxu0 0
        %2171 = vmatpush2.bf16.msra.mxu0 0
        %2172 = vmatprep.subr.bf16.mxu0 0
        %2173 = vmatpush2.bf16.msra.mxu0 0
        %2174 = vmatprep.subr.bf16.mxu0 0
        %2175 = vmatpush2.bf16.msra.mxu0 0
        %2176 = vmatprep.subr.bf16.mxu0 0
        %2177 = vmatpush2.bf16.msra.mxu0 0
        %2178 = vmatprep.mubr.bf16.mxu0 0
        %2179 = vmatmul.mubr.bf16.gmra.mxu0 %v2104
        %v2180 = vpop.f32.mrf.mxu0
        %v2181 = vadd.f32 %v860, %v2180
        %v2182 = vpop.f32.mrf.mxu0
        %v2183 = vpop.f32.mrf.mxu0
        %v2184 = vpop.f32.mrf.mxu0
        %2185 = vdwg.mxu0
        %v2186 = vmul.f32 %v2140, 0.17677669
        %v2187 = vpack.c.bf16 %v2186, %v2186
        %v2188 = vpack.c.bf16 %v2142, %v2142
        %v2189 = vpack.c.bf16 %v2181, %v2181
        %v2191 = vsel %vm1083, %v2187, 0
        %v2194 = vsel %vm1083, %v2188, 0
        %2196 = vmatprep.subr.bf16.mxu0 0
        %2197 = vmatpush1.bf16.xpose.msra.mxu0 0
        %2198 = vmatprep.subr.bf16.mxu0 0
        %2199 = vmatpush1.bf16.xpose.msra.mxu0 0
        %2200 = vmatprep.subr.bf16.mxu0 0
        %2201 = vmatpush1.bf16.xpose.msra.mxu0 0
        %2202 = vmatprep.subr.bf16.mxu0 0
        %2203 = vmatpush1.bf16.xpose.msra.mxu0 0
        %2204 = vmatprep.subr.bf16.mxu0 0
        %2205 = vmatpush1.bf16.xpose.msra.mxu0 0
        %2206 = vmatprep.subr.bf16.mxu0 0
        %2207 = vmatpush1.bf16.xpose.msra.mxu0 0
        %2208 = vmatprep.subr.bf16.mxu0 0
        %2209 = vmatpush1.bf16.xpose.msra.mxu0 0
        %2210 = vmatprep.subr.bf16.mxu0 0
        %2211 = vmatpush1.bf16.xpose.msra.mxu0 %v2194
        %2212 = vmatprep.subr.bf16.mxu0 0
        %2213 = vmatpush2.bf16.xpose.msra.mxu0 0
        %2214 = vmatprep.subr.bf16.mxu0 0
        %2215 = vmatpush2.bf16.xpose.msra.mxu0 0
        %2216 = vmatprep.subr.bf16.mxu0 0
        %2217 = vmatpush2.bf16.xpose.msra.mxu0 0
        %2218 = vmatprep.subr.bf16.mxu0 0
        %2219 = vmatpush2.bf16.xpose.msra.mxu0 0
        %2220 = vmatprep.subr.bf16.mxu0 0
        %2221 = vmatpush2.bf16.xpose.msra.mxu0 0
        %2222 = vmatprep.subr.bf16.mxu0 0
        %2223 = vmatpush2.bf16.xpose.msra.mxu0 0
        %2224 = vmatprep.subr.bf16.mxu0 0
        %2225 = vmatpush2.bf16.xpose.msra.mxu0 0
        %2226 = vmatprep.subr.bf16.mxu0 0
        %2227 = vmatpush2.bf16.xpose.msra.mxu0 0
        %2228 = vmatprep.mubr.bf16.mxu0 0
        %2229 = vmatmul.mubr.bf16.gmra.mxu0 %v2191
        %v2230 = vpop.f32.mrf.mxu0
        %v2231 = vadd.f32 %v1081, %v2230
        %v2232 = vpop.f32.mrf.mxu0
        %v2233 = vpop.f32.mrf.mxu0
        %v2234 = vpop.f32.mrf.mxu0
        %2235 = vdwg.mxu0
        %v2236 = vsel %vm1130, %v2231, -inf
        %2237 = vmax.xlane.f32.xlu0 %v2236
        %v2238 = vpop.xlane.xlu0 %2237
        %v2239 = vsub.f32 %v2231, %v2238
        %v2240 = vmul.f32 %v2239, 1.442695
        %v2241 = vpow.pop %v2240
        %v2242 = vsel %vm1130, %v2241, 0.0
        %2243 = vadd.xlane.f32.xlu0 %v2242
        %v2244 = vpop.xlane.xlu0 %2243
        %v2245 = vrcp.pop %v2244
        %v2246 = vmul.f32 %v2241, %v2245
        %v2247 = vpack.c.bf16 %v2246, %v2246
        %v2249 = vsel %vm1130, %v2247, 0
        %v2252 = vsel %vm1146, %v2189, 0
        %2254 = vmatprep.subr.bf16.mxu0 0
        %2255 = vmatpush1.bf16.msra.mxu0 0
        %2256 = vmatprep.subr.bf16.mxu0 0
        %2257 = vmatpush1.bf16.msra.mxu0 0
        %2258 = vmatprep.subr.bf16.mxu0 0
        %2259 = vmatpush1.bf16.msra.mxu0 0
        %2260 = vmatprep.subr.bf16.mxu0 0
        %2261 = vmatpush1.bf16.msra.mxu0 0
        %2262 = vmatprep.subr.bf16.mxu0 0
        %2263 = vmatpush1.bf16.msra.mxu0 0
        %2264 = vmatprep.subr.bf16.mxu0 0
        %2265 = vmatpush1.bf16.msra.mxu0 0
        %2266 = vmatprep.subr.bf16.mxu0 0
        %2267 = vmatpush1.bf16.msra.mxu0 0
        %2268 = vmatprep.subr.bf16.mxu0 0
        %2269 = vmatpush1.bf16.msra.mxu0 %v2252
        %2270 = vmatprep.subr.bf16.mxu0 0
        %2271 = vmatpush2.bf16.msra.mxu0 0
        %2272 = vmatprep.subr.bf16.mxu0 0
        %2273 = vmatpush2.bf16.msra.mxu0 0
        %2274 = vmatprep.subr.bf16.mxu0 0
        %2275 = vmatpush2.bf16.msra.mxu0 0
        %2276 = vmatprep.subr.bf16.mxu0 0
        %2277 = vmatpush2.bf16.msra.mxu0 0
        %2278 = vmatprep.subr.bf16.mxu0 0
        %2279 = vmatpush2.bf16.msra.mxu0 0
        %2280 = vmatprep.subr.bf16.mxu0 0
        %2281 = vmatpush2.bf16.msra.mxu0 0
        %2282 = vmatprep.subr.bf16.mxu0 0
        %2283 = vmatpush2.bf16.msra.mxu0 0
        %2284 = vmatprep.subr.bf16.mxu0 0
        %2285 = vmatpush2.bf16.msra.mxu0 0
        %2286 = vmatprep.mubr.bf16.mxu0 0
        %2287 = vmatmul.mubr.bf16.gmra.mxu0 %v2249
        %v2288 = vpop.f32.mrf.mxu0
        %v2289 = vadd.f32 0.0, %v2288
        %v2290 = vpop.f32.mrf.mxu0
        %v2291 = vpop.f32.mrf.mxu0
        %v2292 = vpop.f32.mrf.mxu0
        %2293 = vdwg.mxu0
        %v2294 = vpack.c.bf16 %v2289, %v2289
        %2296 = vrot.lane.b32.xlu0 %v2187, 96
        %v2297 = vpop.permute.xlu0 %2296
        %2299 = vrot.lane.b32.xlu0 %v2188, 96
        %v2300 = vpop.permute.xlu0 %2299
        %v2302 = vsel %vm1083, %v2297, 0
        %v2305 = vsel %vm1083, %v2300, 0
        %2307 = vmatprep.subr.bf16.mxu0 0
        %2308 = vmatpush1.bf16.xpose.msra.mxu0 0
        %2309 = vmatprep.subr.bf16.mxu0 0
        %2310 = vmatpush1.bf16.xpose.msra.mxu0 0
        %2311 = vmatprep.subr.bf16.mxu0 0
        %2312 = vmatpush1.bf16.xpose.msra.mxu0 0
        %2313 = vmatprep.subr.bf16.mxu0 0
        %2314 = vmatpush1.bf16.xpose.msra.mxu0 0
        %2315 = vmatprep.subr.bf16.mxu0 0
        %2316 = vmatpush1.bf16.xpose.msra.mxu0 0
        %2317 = vmatprep.subr.bf16.mxu0 0
        %2318 = vmatpush1.bf16.xpose.msra.mxu0 0
        %2319 = vmatprep.subr.bf16.mxu0 0
        %2320 = vmatpush1.bf16.xpose.msra.mxu0 0
        %2321 = vmatprep.subr.bf16.mxu0 0
        %2322 = vmatpush1.bf16.xpose.msra.mxu0 %v2305
        %2323 = vmatprep.subr.bf16.mxu0 0
        %2324 = vmatpush2.bf16.xpose.msra.mxu0 0
        %2325 = vmatprep.subr.bf16.mxu0 0
        %2326 = vmatpush2.bf16.xpose.msra.mxu0 0
        %2327 = vmatprep.subr.bf16.mxu0 0
        %2328 = vmatpush2.bf16.xpose.msra.mxu0 0
        %2329 = vmatprep.subr.bf16.mxu0 0
        %2330 = vmatpush2.bf16.xpose.msra.mxu0 0
        %2331 = vmatprep.subr.bf16.mxu0 0
        %2332 = vmatpush2.bf16.xpose.msra.mxu0 0
        %2333 = vmatprep.subr.bf16.mxu0 0
        %2334 = vmatpush2.bf16.xpose.msra.mxu0 0
        %2335 = vmatprep.subr.bf16.mxu0 0
        %2336 = vmatpush2.bf16.xpose.msra.mxu0 0
        %2337 = vmatprep.subr.bf16.mxu0 0
        %2338 = vmatpush2.bf16.xpose.msra.mxu0 0
        %2339 = vmatprep.mubr.bf16.mxu0 0
        %2340 = vmatmul.mubr.bf16.gmra.mxu0 %v2302
        %v2341 = vpop.f32.mrf.mxu0
        %v2342 = vadd.f32 %v1081, %v2341
        %v2343 = vpop.f32.mrf.mxu0
        %v2344 = vpop.f32.mrf.mxu0
        %v2345 = vpop.f32.mrf.mxu0
        %2346 = vdwg.mxu0
        %v2347 = vsel %vm1130, %v2342, -inf
        %2348 = vmax.xlane.f32.xlu0 %v2347
        %v2349 = vpop.xlane.xlu0 %2348
        %v2350 = vsub.f32 %v2342, %v2349
        %v2351 = vmul.f32 %v2350, 1.442695
        %v2352 = vpow.pop %v2351
        %v2353 = vsel %vm1130, %v2352, 0.0
        %2354 = vadd.xlane.f32.xlu0 %v2353
        %v2355 = vpop.xlane.xlu0 %2354
        %v2356 = vrcp.pop %v2355
        %v2357 = vmul.f32 %v2352, %v2356
        %v2358 = vpack.c.bf16 %v2357, %v2357
        %2360 = vrot.lane.b32.xlu0 %v2189, 96
        %v2361 = vpop.permute.xlu0 %2360
        %v2363 = vsel %vm1130, %v2358, 0
        %v2366 = vsel %vm1146, %v2361, 0
        %2368 = vmatprep.subr.bf16.mxu0 0
        %2369 = vmatpush1.bf16.msra.mxu0 0
        %2370 = vmatprep.subr.bf16.mxu0 0
        %2371 = vmatpush1.bf16.msra.mxu0 0
        %2372 = vmatprep.subr.bf16.mxu0 0
        %2373 = vmatpush1.bf16.msra.mxu0 0
        %2374 = vmatprep.subr.bf16.mxu0 0
        %2375 = vmatpush1.bf16.msra.mxu0 0
        %2376 = vmatprep.subr.bf16.mxu0 0
        %2377 = vmatpush1.bf16.msra.mxu0 0
        %2378 = vmatprep.subr.bf16.mxu0 0
        %2379 = vmatpush1.bf16.msra.mxu0 0
        %2380 = vmatprep.subr.bf16.mxu0 0
        %2381 = vmatpush1.bf16.msra.mxu0 0
        %2382 = vmatprep.subr.bf16.mxu0 0
        %2383 = vmatpush1.bf16.msra.mxu0 %v2366
        %2384 = vmatprep.subr.bf16.mxu0 0
        %2385 = vmatpush2.bf16.msra.mxu0 0
        %2386 = vmatprep.subr.bf16.mxu0 0
        %2387 = vmatpush2.bf16.msra.mxu0 0
        %2388 = vmatprep.subr.bf16.mxu0 0
        %2389 = vmatpush2.bf16.msra.mxu0 0
        %2390 = vmatprep.subr.bf16.mxu0 0
        %2391 = vmatpush2.bf16.msra.mxu0 0
        %2392 = vmatprep.subr.bf16.mxu0 0
        %2393 = vmatpush2.bf16.msra.mxu0 0
        %2394 = vmatprep.subr.bf16.mxu0 0
        %2395 = vmatpush2.bf16.msra.mxu0 0
        %2396 = vmatprep.subr.bf16.mxu0 0
        %2397 = vmatpush2.bf16.msra.mxu0 0
        %2398 = vmatprep.subr.bf16.mxu0 0
        %2399 = vmatpush2.bf16.msra.mxu0 0
        %2400 = vmatprep.mubr.bf16.mxu0 0
        %2401 = vmatmul.mubr.bf16.gmra.mxu0 %v2363
        %v2402 = vpop.f32.mrf.mxu0
        %v2403 = vadd.f32 0.0, %v2402
        %v2404 = vpop.f32.mrf.mxu0
        %v2405 = vpop.f32.mrf.mxu0
        %v2406 = vpop.f32.mrf.mxu0
        %2407 = vdwg.mxu0
        %v2408 = vpack.c.bf16 %v2403, %v2403
        %v2410 = vsel %vm1083, %v2408, 0
        %2412 = vmatprep.subr.bf16.mxu0 0
        %2413 = vmatpush1.bf16.msra.mxu0 0
        %2414 = vmatprep.subr.bf16.mxu0 0
        %2415 = vmatpush1.bf16.msra.mxu0 0
        %2416 = vmatprep.subr.bf16.mxu0 0
        %2417 = vmatpush1.bf16.msra.mxu0 0
        %2418 = vmatprep.subr.bf16.mxu0 0
        %2419 = vmatpush1.bf16.msra.mxu0 0
        %2420 = vmatprep.subr.bf16.mxu0 0
        %2421 = vmatpush1.bf16.msra.mxu0 0
        %2422 = vmatprep.subr.bf16.mxu0 0
        %2423 = vmatpush1.bf16.msra.mxu0 0
        %2424 = vmatprep.subr.bf16.mxu0 0
        %2425 = vmatpush1.bf16.msra.mxu0 %v1314
        %2426 = vmatprep.subr.bf16.mxu0 0
        %2427 = vmatpush1.bf16.msra.mxu0 %v1313
        %2428 = vmatprep.subr.bf16.mxu0 0
        %2429 = vmatpush2.bf16.msra.mxu0 0
        %2430 = vmatprep.subr.bf16.mxu0 0
        %2431 = vmatpush2.bf16.msra.mxu0 0
        %2432 = vmatprep.subr.bf16.mxu0 0
        %2433 = vmatpush2.bf16.msra.mxu0 0
        %2434 = vmatprep.subr.bf16.mxu0 0
        %2435 = vmatpush2.bf16.msra.mxu0 0
        %2436 = vmatprep.subr.bf16.mxu0 0
        %2437 = vmatpush2.bf16.msra.mxu0 0
        %2438 = vmatprep.subr.bf16.mxu0 0
        %2439 = vmatpush2.bf16.msra.mxu0 0
        %2440 = vmatprep.subr.bf16.mxu0 0
        %2441 = vmatpush2.bf16.msra.mxu0 0
        %2442 = vmatprep.subr.bf16.mxu0 0
        %2443 = vmatpush2.bf16.msra.mxu0 0
        %2444 = vmatprep.mubr.bf16.mxu0 0
        %2445 = vmatmul.mubr.bf16.gmra.mxu0 %v2410
        %v2446 = vpop.f32.mrf.mxu0
        %v2447 = vadd.f32 0.0, %v2446
        %v2448 = vpop.f32.mrf.mxu0
        %v2449 = vpop.f32.mrf.mxu0
        %v2450 = vpop.f32.mrf.mxu0
        %2451 = vdwg.mxu0
        %v2453 = vsel %vm1083, %v2294, 0
        %2455 = vmatprep.subr.bf16.mxu0 0
        %2456 = vmatpush1.bf16.msra.mxu0 0
        %2457 = vmatprep.subr.bf16.mxu0 0
        %2458 = vmatpush1.bf16.msra.mxu0 0
        %2459 = vmatprep.subr.bf16.mxu0 0
        %2460 = vmatpush1.bf16.msra.mxu0 0
        %2461 = vmatprep.subr.bf16.mxu0 0
        %2462 = vmatpush1.bf16.msra.mxu0 0
        %2463 = vmatprep.subr.bf16.mxu0 0
        %2464 = vmatpush1.bf16.msra.mxu0 0
        %2465 = vmatprep.subr.bf16.mxu0 0
        %2466 = vmatpush1.bf16.msra.mxu0 0
        %2467 = vmatprep.subr.bf16.mxu0 0
        %2468 = vmatpush1.bf16.msra.mxu0 %v1369
        %2469 = vmatprep.subr.bf16.mxu0 0
        %2470 = vmatpush1.bf16.msra.mxu0 %v1368
        %2471 = vmatprep.subr.bf16.mxu0 0
        %2472 = vmatpush2.bf16.msra.mxu0 0
        %2473 = vmatprep.subr.bf16.mxu0 0
        %2474 = vmatpush2.bf16.msra.mxu0 0
        %2475 = vmatprep.subr.bf16.mxu0 0
        %2476 = vmatpush2.bf16.msra.mxu0 0
        %2477 = vmatprep.subr.bf16.mxu0 0
        %2478 = vmatpush2.bf16.msra.mxu0 0
        %2479 = vmatprep.subr.bf16.mxu0 0
        %2480 = vmatpush2.bf16.msra.mxu0 0
        %2481 = vmatprep.subr.bf16.mxu0 0
        %2482 = vmatpush2.bf16.msra.mxu0 0
        %2483 = vmatprep.subr.bf16.mxu0 0
        %2484 = vmatpush2.bf16.msra.mxu0 0
        %2485 = vmatprep.subr.bf16.mxu0 0
        %2486 = vmatpush2.bf16.msra.mxu0 0
        %2487 = vmatprep.mubr.bf16.mxu0 0
        %2488 = vmatmul.mubr.bf16.gmra.mxu0 %v2453
        %v2489 = vpop.f32.mrf.mxu0
        %v2490 = vadd.f32 %v2447, %v2489
        %v2491 = vpop.f32.mrf.mxu0
        %v2492 = vpop.f32.mrf.mxu0
        %v2493 = vpop.f32.mrf.mxu0
        %2494 = vdwg.mxu0
        %2495 = vrot.lane.b32.xlu0 %v2187, 64
        %v2496 = vpop.permute.xlu0 %2495
        %2497 = vrot.lane.b32.xlu0 %v2188, 64
        %v2498 = vpop.permute.xlu0 %2497
        %v2500 = vsel %vm1083, %v2496, 0
        %v2503 = vsel %vm1083, %v2498, 0
        %2505 = vmatprep.subr.bf16.mxu0 0
        %2506 = vmatpush1.bf16.xpose.msra.mxu0 0
        %2507 = vmatprep.subr.bf16.mxu0 0
        %2508 = vmatpush1.bf16.xpose.msra.mxu0 0
        %2509 = vmatprep.subr.bf16.mxu0 0
        %2510 = vmatpush1.bf16.xpose.msra.mxu0 0
        %2511 = vmatprep.subr.bf16.mxu0 0
        %2512 = vmatpush1.bf16.xpose.msra.mxu0 0
        %2513 = vmatprep.subr.bf16.mxu0 0
        %2514 = vmatpush1.bf16.xpose.msra.mxu0 0
        %2515 = vmatprep.subr.bf16.mxu0 0
        %2516 = vmatpush1.bf16.xpose.msra.mxu0 0
        %2517 = vmatprep.subr.bf16.mxu0 0
        %2518 = vmatpush1.bf16.xpose.msra.mxu0 0
        %2519 = vmatprep.subr.bf16.mxu0 0
        %2520 = vmatpush1.bf16.xpose.msra.mxu0 %v2503
        %2521 = vmatprep.subr.bf16.mxu0 0
        %2522 = vmatpush2.bf16.xpose.msra.mxu0 0
        %2523 = vmatprep.subr.bf16.mxu0 0
        %2524 = vmatpush2.bf16.xpose.msra.mxu0 0
        %2525 = vmatprep.subr.bf16.mxu0 0
        %2526 = vmatpush2.bf16.xpose.msra.mxu0 0
        %2527 = vmatprep.subr.bf16.mxu0 0
        %2528 = vmatpush2.bf16.xpose.msra.mxu0 0
        %2529 = vmatprep.subr.bf16.mxu0 0
        %2530 = vmatpush2.bf16.xpose.msra.mxu0 0
        %2531 = vmatprep.subr.bf16.mxu0 0
        %2532 = vmatpush2.bf16.xpose.msra.mxu0 0
        %2533 = vmatprep.subr.bf16.mxu0 0
        %2534 = vmatpush2.bf16.xpose.msra.mxu0 0
        %2535 = vmatprep.subr.bf16.mxu0 0
        %2536 = vmatpush2.bf16.xpose.msra.mxu0 0
        %2537 = vmatprep.mubr.bf16.mxu0 0
        %2538 = vmatmul.mubr.bf16.gmra.mxu0 %v2500
        %v2539 = vpop.f32.mrf.mxu0
        %v2540 = vadd.f32 %v1081, %v2539
        %v2541 = vpop.f32.mrf.mxu0
        %v2542 = vpop.f32.mrf.mxu0
        %v2543 = vpop.f32.mrf.mxu0
        %2544 = vdwg.mxu0
        %v2545 = vsel %vm1130, %v2540, -inf
        %2546 = vmax.xlane.f32.xlu0 %v2545
        %v2547 = vpop.xlane.xlu0 %2546
        %v2548 = vsub.f32 %v2540, %v2547
        %v2549 = vmul.f32 %v2548, 1.442695
        %v2550 = vpow.pop %v2549
        %v2551 = vsel %vm1130, %v2550, 0.0
        %2552 = vadd.xlane.f32.xlu0 %v2551
        %v2553 = vpop.xlane.xlu0 %2552
        %v2554 = vrcp.pop %v2553
        %v2555 = vmul.f32 %v2550, %v2554
        %v2556 = vpack.c.bf16 %v2555, %v2555
        %2557 = vrot.lane.b32.xlu0 %v2189, 64
        %v2558 = vpop.permute.xlu0 %2557
        %v2560 = vsel %vm1130, %v2556, 0
        %v2563 = vsel %vm1146, %v2558, 0
        %2565 = vmatprep.subr.bf16.mxu0 0
        %2566 = vmatpush1.bf16.msra.mxu0 0
        %2567 = vmatprep.subr.bf16.mxu0 0
        %2568 = vmatpush1.bf16.msra.mxu0 0
        %2569 = vmatprep.subr.bf16.mxu0 0
        %2570 = vmatpush1.bf16.msra.mxu0 0
        %2571 = vmatprep.subr.bf16.mxu0 0
        %2572 = vmatpush1.bf16.msra.mxu0 0
        %2573 = vmatprep.subr.bf16.mxu0 0
        %2574 = vmatpush1.bf16.msra.mxu0 0
        %2575 = vmatprep.subr.bf16.mxu0 0
        %2576 = vmatpush1.bf16.msra.mxu0 0
        %2577 = vmatprep.subr.bf16.mxu0 0
        %2578 = vmatpush1.bf16.msra.mxu0 0
        %2579 = vmatprep.subr.bf16.mxu0 0
        %2580 = vmatpush1.bf16.msra.mxu0 %v2563
        %2581 = vmatprep.subr.bf16.mxu0 0
        %2582 = vmatpush2.bf16.msra.mxu0 0
        %2583 = vmatprep.subr.bf16.mxu0 0
        %2584 = vmatpush2.bf16.msra.mxu0 0
        %2585 = vmatprep.subr.bf16.mxu0 0
        %2586 = vmatpush2.bf16.msra.mxu0 0
        %2587 = vmatprep.subr.bf16.mxu0 0
        %2588 = vmatpush2.bf16.msra.mxu0 0
        %2589 = vmatprep.subr.bf16.mxu0 0
        %2590 = vmatpush2.bf16.msra.mxu0 0
        %2591 = vmatprep.subr.bf16.mxu0 0
        %2592 = vmatpush2.bf16.msra.mxu0 0
        %2593 = vmatprep.subr.bf16.mxu0 0
        %2594 = vmatpush2.bf16.msra.mxu0 0
        %2595 = vmatprep.subr.bf16.mxu0 0
        %2596 = vmatpush2.bf16.msra.mxu0 0
        %2597 = vmatprep.mubr.bf16.mxu0 0
        %2598 = vmatmul.mubr.bf16.gmra.mxu0 %v2560
        %v2599 = vpop.f32.mrf.mxu0
        %v2600 = vadd.f32 0.0, %v2599
        %v2601 = vpop.f32.mrf.mxu0
        %v2602 = vpop.f32.mrf.mxu0
        %v2603 = vpop.f32.mrf.mxu0
        %2604 = vdwg.mxu0
        %v2605 = vpack.c.bf16 %v2600, %v2600
        %v2607 = vsel %vm1083, %v2605, 0
        %2609 = vmatprep.subr.bf16.mxu0 0
        %2610 = vmatpush1.bf16.msra.mxu0 0
        %2611 = vmatprep.subr.bf16.mxu0 0
        %2612 = vmatpush1.bf16.msra.mxu0 0
        %2613 = vmatprep.subr.bf16.mxu0 0
        %2614 = vmatpush1.bf16.msra.mxu0 0
        %2615 = vmatprep.subr.bf16.mxu0 0
        %2616 = vmatpush1.bf16.msra.mxu0 0
        %2617 = vmatprep.subr.bf16.mxu0 0
        %2618 = vmatpush1.bf16.msra.mxu0 0
        %2619 = vmatprep.subr.bf16.mxu0 0
        %2620 = vmatpush1.bf16.msra.mxu0 0
        %2621 = vmatprep.subr.bf16.mxu0 0
        %2622 = vmatpush1.bf16.msra.mxu0 %v1535
        %2623 = vmatprep.subr.bf16.mxu0 0
        %2624 = vmatpush1.bf16.msra.mxu0 %v1534
        %2625 = vmatprep.subr.bf16.mxu0 0
        %2626 = vmatpush2.bf16.msra.mxu0 0
        %2627 = vmatprep.subr.bf16.mxu0 0
        %2628 = vmatpush2.bf16.msra.mxu0 0
        %2629 = vmatprep.subr.bf16.mxu0 0
        %2630 = vmatpush2.bf16.msra.mxu0 0
        %2631 = vmatprep.subr.bf16.mxu0 0
        %2632 = vmatpush2.bf16.msra.mxu0 0
        %2633 = vmatprep.subr.bf16.mxu0 0
        %2634 = vmatpush2.bf16.msra.mxu0 0
        %2635 = vmatprep.subr.bf16.mxu0 0
        %2636 = vmatpush2.bf16.msra.mxu0 0
        %2637 = vmatprep.subr.bf16.mxu0 0
        %2638 = vmatpush2.bf16.msra.mxu0 0
        %2639 = vmatprep.subr.bf16.mxu0 0
        %2640 = vmatpush2.bf16.msra.mxu0 0
        %2641 = vmatprep.mubr.bf16.mxu0 0
        %2642 = vmatmul.mubr.bf16.gmra.mxu0 %v2607
        %v2643 = vpop.f32.mrf.mxu0
        %v2644 = vadd.f32 0.0, %v2643
        %v2645 = vpop.f32.mrf.mxu0
        %v2646 = vpop.f32.mrf.mxu0
        %v2647 = vpop.f32.mrf.mxu0
        %2648 = vdwg.mxu0
        %v2649 = vadd.f32 %v2490, %v2644
        %2650 = vrot.lane.b32.xlu0 %v2187, 32
        %v2651 = vpop.permute.xlu0 %2650
        %2652 = vrot.lane.b32.xlu0 %v2188, 32
        %v2653 = vpop.permute.xlu0 %2652
        %v2655 = vsel %vm1083, %v2651, 0
        %v2658 = vsel %vm1083, %v2653, 0
        %2660 = vmatprep.subr.bf16.mxu0 0
        %2661 = vmatpush1.bf16.xpose.msra.mxu0 0
        %2662 = vmatprep.subr.bf16.mxu0 0
        %2663 = vmatpush1.bf16.xpose.msra.mxu0 0
        %2664 = vmatprep.subr.bf16.mxu0 0
        %2665 = vmatpush1.bf16.xpose.msra.mxu0 0
        %2666 = vmatprep.subr.bf16.mxu0 0
        %2667 = vmatpush1.bf16.xpose.msra.mxu0 0
        %2668 = vmatprep.subr.bf16.mxu0 0
        %2669 = vmatpush1.bf16.xpose.msra.mxu0 0
        %2670 = vmatprep.subr.bf16.mxu0 0
        %2671 = vmatpush1.bf16.xpose.msra.mxu0 0
        %2672 = vmatprep.subr.bf16.mxu0 0
        %2673 = vmatpush1.bf16.xpose.msra.mxu0 0
        %2674 = vmatprep.subr.bf16.mxu0 0
        %2675 = vmatpush1.bf16.xpose.msra.mxu0 %v2658
        %2676 = vmatprep.subr.bf16.mxu0 0
        %2677 = vmatpush2.bf16.xpose.msra.mxu0 0
        %2678 = vmatprep.subr.bf16.mxu0 0
        %2679 = vmatpush2.bf16.xpose.msra.mxu0 0
        %2680 = vmatprep.subr.bf16.mxu0 0
        %2681 = vmatpush2.bf16.xpose.msra.mxu0 0
        %2682 = vmatprep.subr.bf16.mxu0 0
        %2683 = vmatpush2.bf16.xpose.msra.mxu0 0
        %2684 = vmatprep.subr.bf16.mxu0 0
        %2685 = vmatpush2.bf16.xpose.msra.mxu0 0
        %2686 = vmatprep.subr.bf16.mxu0 0
        %2687 = vmatpush2.bf16.xpose.msra.mxu0 0
        %2688 = vmatprep.subr.bf16.mxu0 0
        %2689 = vmatpush2.bf16.xpose.msra.mxu0 0
        %2690 = vmatprep.subr.bf16.mxu0 0
        %2691 = vmatpush2.bf16.xpose.msra.mxu0 0
        %2692 = vmatprep.mubr.bf16.mxu0 0
        %2693 = vmatmul.mubr.bf16.gmra.mxu0 %v2655
        %v2694 = vpop.f32.mrf.mxu0
        %v2695 = vadd.f32 %v1081, %v2694
        %v2696 = vpop.f32.mrf.mxu0
        %v2697 = vpop.f32.mrf.mxu0
        %v2698 = vpop.f32.mrf.mxu0
        %2699 = vdwg.mxu0
        %v2700 = vsel %vm1130, %v2695, -inf
        %2701 = vmax.xlane.f32.xlu0 %v2700
        %v2702 = vpop.xlane.xlu0 %2701
        %v2703 = vsub.f32 %v2695, %v2702
        %v2704 = vmul.f32 %v2703, 1.442695
        %v2705 = vpow.pop %v2704
        %v2706 = vsel %vm1130, %v2705, 0.0
        %2707 = vadd.xlane.f32.xlu0 %v2706
        %v2708 = vpop.xlane.xlu0 %2707
        %v2709 = vrcp.pop %v2708
        %v2710 = vmul.f32 %v2705, %v2709
        %v2711 = vpack.c.bf16 %v2710, %v2710
        %2712 = vrot.lane.b32.xlu0 %v2189, 32
        %v2713 = vpop.permute.xlu0 %2712
        %v2715 = vsel %vm1130, %v2711, 0
        %v2718 = vsel %vm1146, %v2713, 0
        %2720 = vmatprep.subr.bf16.mxu0 0
        %2721 = vmatpush1.bf16.msra.mxu0 0
        %2722 = vmatprep.subr.bf16.mxu0 0
        %2723 = vmatpush1.bf16.msra.mxu0 0
        %2724 = vmatprep.subr.bf16.mxu0 0
        %2725 = vmatpush1.bf16.msra.mxu0 0
        %2726 = vmatprep.subr.bf16.mxu0 0
        %2727 = vmatpush1.bf16.msra.mxu0 0
        %2728 = vmatprep.subr.bf16.mxu0 0
        %2729 = vmatpush1.bf16.msra.mxu0 0
        %2730 = vmatprep.subr.bf16.mxu0 0
        %2731 = vmatpush1.bf16.msra.mxu0 0
        %2732 = vmatprep.subr.bf16.mxu0 0
        %2733 = vmatpush1.bf16.msra.mxu0 0
        %2734 = vmatprep.subr.bf16.mxu0 0
        %2735 = vmatpush1.bf16.msra.mxu0 %v2718
        %2736 = vmatprep.subr.bf16.mxu0 0
        %2737 = vmatpush2.bf16.msra.mxu0 0
        %2738 = vmatprep.subr.bf16.mxu0 0
        %2739 = vmatpush2.bf16.msra.mxu0 0
        %2740 = vmatprep.subr.bf16.mxu0 0
        %2741 = vmatpush2.bf16.msra.mxu0 0
        %2742 = vmatprep.subr.bf16.mxu0 0
        %2743 = vmatpush2.bf16.msra.mxu0 0
        %2744 = vmatprep.subr.bf16.mxu0 0
        %2745 = vmatpush2.bf16.msra.mxu0 0
        %2746 = vmatprep.subr.bf16.mxu0 0
        %2747 = vmatpush2.bf16.msra.mxu0 0
        %2748 = vmatprep.subr.bf16.mxu0 0
        %2749 = vmatpush2.bf16.msra.mxu0 0
        %2750 = vmatprep.subr.bf16.mxu0 0
        %2751 = vmatpush2.bf16.msra.mxu0 0
        %2752 = vmatprep.mubr.bf16.mxu0 0
        %2753 = vmatmul.mubr.bf16.gmra.mxu0 %v2715
        %v2754 = vpop.f32.mrf.mxu0
        %v2755 = vadd.f32 0.0, %v2754
        %v2756 = vpop.f32.mrf.mxu0
        %v2757 = vpop.f32.mrf.mxu0
        %v2758 = vpop.f32.mrf.mxu0
        %2759 = vdwg.mxu0
        %v2760 = vpack.c.bf16 %v2755, %v2755
        %v2762 = vsel %vm1083, %v2760, 0
        %2764 = vmatprep.subr.bf16.mxu0 0
        %2765 = vmatpush1.bf16.msra.mxu0 0
        %2766 = vmatprep.subr.bf16.mxu0 0
        %2767 = vmatpush1.bf16.msra.mxu0 0
        %2768 = vmatprep.subr.bf16.mxu0 0
        %2769 = vmatpush1.bf16.msra.mxu0 0
        %2770 = vmatprep.subr.bf16.mxu0 0
        %2771 = vmatpush1.bf16.msra.mxu0 0
        %2772 = vmatprep.subr.bf16.mxu0 0
        %2773 = vmatpush1.bf16.msra.mxu0 0
        %2774 = vmatprep.subr.bf16.mxu0 0
        %2775 = vmatpush1.bf16.msra.mxu0 0
        %2776 = vmatprep.subr.bf16.mxu0 0
        %2777 = vmatpush1.bf16.msra.mxu0 %v1702
        %2778 = vmatprep.subr.bf16.mxu0 0
        %2779 = vmatpush1.bf16.msra.mxu0 %v1701
        %2780 = vmatprep.subr.bf16.mxu0 0
        %2781 = vmatpush2.bf16.msra.mxu0 0
        %2782 = vmatprep.subr.bf16.mxu0 0
        %2783 = vmatpush2.bf16.msra.mxu0 0
        %2784 = vmatprep.subr.bf16.mxu0 0
        %2785 = vmatpush2.bf16.msra.mxu0 0
        %2786 = vmatprep.subr.bf16.mxu0 0
        %2787 = vmatpush2.bf16.msra.mxu0 0
        %2788 = vmatprep.subr.bf16.mxu0 0
        %2789 = vmatpush2.bf16.msra.mxu0 0
        %2790 = vmatprep.subr.bf16.mxu0 0
        %2791 = vmatpush2.bf16.msra.mxu0 0
        %2792 = vmatprep.subr.bf16.mxu0 0
        %2793 = vmatpush2.bf16.msra.mxu0 0
        %2794 = vmatprep.subr.bf16.mxu0 0
        %2795 = vmatpush2.bf16.msra.mxu0 0
        %2796 = vmatprep.mubr.bf16.mxu0 0
        %2797 = vmatmul.mubr.bf16.gmra.mxu0 %v2762
        %v2798 = vpop.f32.mrf.mxu0
        %v2799 = vadd.f32 0.0, %v2798
        %v2800 = vpop.f32.mrf.mxu0
        %v2801 = vpop.f32.mrf.mxu0
        %v2802 = vpop.f32.mrf.mxu0
        %2803 = vdwg.mxu0
        %v2804 = vadd.f32 %v2649, %v2799
        %v2805 = vadd.f32 %v2804, %v1753
        %v2806 = vadd.f32 %v2103, %v2805
        %2807 = vadd.xlane.f32.xlu0 %v2806
        %v2808 = vpop.xlane.xlu0 %2807
        %v2809 = vmul.f32 %v2808, %v1759
        %v2810 = vsub.f32 %v2806, %v2809
        %v2811 = vmul.f32 %v2810, %v2810
        %2812 = vadd.xlane.f32.xlu0 %v2811
        %v2813 = vpop.xlane.xlu0 %2812
        %v2814 = vmul.f32 %v2813, %v1759
        %v2815 = vadd.f32 %v2814, 1e-12
        %v2816 = vrsqrt.pop %v2815
        %v2817 = vmul.f32 %v2810, %v2816
        %v2818 = vmul.f32 %v2817, %v1773
        %v2819 = vadd.f32 %v2818, %v1780
        %v2820 = vpack.c.bf16 %v2819, %v2819
        %2821 = vmatprep.subr.bf16.mxu0 %v1858
        %2822 = vmatpush1.bf16.msra.mxu0 %v1857
        %2823 = vmatprep.subr.bf16.mxu0 %v1856
        %2824 = vmatpush1.bf16.msra.mxu0 %v1855
        %2825 = vmatprep.subr.bf16.mxu0 %v1854
        %2826 = vmatpush1.bf16.msra.mxu0 %v1853
        %2827 = vmatprep.subr.bf16.mxu0 %v1852
        %2828 = vmatpush1.bf16.msra.mxu0 %v1851
        %2829 = vmatprep.subr.bf16.mxu0 %v1850
        %2830 = vmatpush1.bf16.msra.mxu0 %v1849
        %2831 = vmatprep.subr.bf16.mxu0 %v1848
        %2832 = vmatpush1.bf16.msra.mxu0 %v1847
        %2833 = vmatprep.subr.bf16.mxu0 %v1846
        %2834 = vmatpush1.bf16.msra.mxu0 %v1845
        %2835 = vmatprep.subr.bf16.mxu0 %v1844
        %2836 = vmatpush1.bf16.msra.mxu0 %v1843
        %2837 = vmatprep.subr.bf16.mxu0 0
        %2838 = vmatpush2.bf16.msra.mxu0 0
        %2839 = vmatprep.subr.bf16.mxu0 0
        %2840 = vmatpush2.bf16.msra.mxu0 0
        %2841 = vmatprep.subr.bf16.mxu0 0
        %2842 = vmatpush2.bf16.msra.mxu0 0
        %2843 = vmatprep.subr.bf16.mxu0 0
        %2844 = vmatpush2.bf16.msra.mxu0 0
        %2845 = vmatprep.subr.bf16.mxu0 0
        %2846 = vmatpush2.bf16.msra.mxu0 0
        %2847 = vmatprep.subr.bf16.mxu0 0
        %2848 = vmatpush2.bf16.msra.mxu0 0
        %2849 = vmatprep.subr.bf16.mxu0 0
        %2850 = vmatpush2.bf16.msra.mxu0 0
        %2851 = vmatprep.subr.bf16.mxu0 0
        %2852 = vmatpush2.bf16.msra.mxu0 0
        %2853 = vmatprep.mubr.bf16.mxu0 0
        %2854 = vmatmul.mubr.bf16.gmra.mxu0 %v2820
        %v2855 = vpop.f32.mrf.mxu0
        %v2856 = vadd.f32 %v1788, %v2855
        %v2857 = vpop.f32.mrf.mxu0
        %v2858 = vadd.f32 %v1792, %v2857
        %v2859 = vpop.f32.mrf.mxu0
        %v2860 = vpop.f32.mrf.mxu0
        %2861 = vdwg.mxu0
        %v2862 = vmul.f32 %v2856, 0.5
        %v2863 = vmul.f32 %v2858, 0.5
        %v2864 = vmul.f32 %v2856, %v2856
        %v2865 = vmul.f32 %v2858, %v2858
        %v2866 = vmul.f32 %v2864, %v2856
        %v2867 = vmul.f32 %v2865, %v2858
        %v2868 = vmul.f32 %v2866, 0.044715
        %v2869 = vmul.f32 %v2867, 0.044715
        %v2870 = vadd.f32 %v2856, %v2868
        %v2871 = vadd.f32 %v2858, %v2869
        %v2872 = vmul.f32 %v2870, 0.7978846
        %v2873 = vmul.f32 %v2871, 0.7978846
        %v2874 = vtanh.pop %v2872
        %v2875 = vtanh.pop %v2873
        %v2876 = vadd.f32 %v2874, 1.0
        %v2877 = vadd.f32 %v2875, 1.0
        %v2878 = vmul.f32 %v2862, %v2876
        %v2879 = vmul.f32 %v2863, %v2877
        %v2880 = vpack.c.bf16 %v2878, %v2878
        %v2881 = vpack.c.bf16 %v2879, %v2879
        %2882 = vmatprep.subr.bf16.mxu0 0
        %2883 = vmatpush1.bf16.msra.mxu0 %v2013
        %2884 = vmatprep.subr.bf16.mxu0 0
        %2885 = vmatpush1.bf16.msra.mxu0 %v2012
        %2886 = vmatprep.subr.bf16.mxu0 0
        %2887 = vmatpush1.bf16.msra.mxu0 %v2011
        %2888 = vmatprep.subr.bf16.mxu0 0
        %2889 = vmatpush1.bf16.msra.mxu0 %v2010
        %2890 = vmatprep.subr.bf16.mxu0 0
        %2891 = vmatpush1.bf16.msra.mxu0 %v2009
        %2892 = vmatprep.subr.bf16.mxu0 0
        %2893 = vmatpush1.bf16.msra.mxu0 %v2008
        %2894 = vmatprep.subr.bf16.mxu0 0
        %2895 = vmatpush1.bf16.msra.mxu0 %v2007
        %2896 = vmatprep.subr.bf16.mxu0 0
        %2897 = vmatpush1.bf16.msra.mxu0 %v2006
        %2898 = vmatprep.subr.bf16.mxu0 0
        %2899 = vmatpush2.bf16.msra.mxu0 %v2021
        %2900 = vmatprep.subr.bf16.mxu0 0
        %2901 = vmatpush2.bf16.msra.mxu0 %v2020
        %2902 = vmatprep.subr.bf16.mxu0 0
        %2903 = vmatpush2.bf16.msra.mxu0 %v2019
        %2904 = vmatprep.subr.bf16.mxu0 0
        %2905 = vmatpush2.bf16.msra.mxu0 %v2018
        %2906 = vmatprep.subr.bf16.mxu0 0
        %2907 = vmatpush2.bf16.msra.mxu0 %v2017
        %2908 = vmatprep.subr.bf16.mxu0 0
        %2909 = vmatpush2.bf16.msra.mxu0 %v2016
        %2910 = vmatprep.subr.bf16.mxu0 0
        %2911 = vmatpush2.bf16.msra.mxu0 %v2015
        %2912 = vmatprep.subr.bf16.mxu0 0
        %2913 = vmatpush2.bf16.msra.mxu0 %v2014
        %2914 = vmatprep.mubr.bf16.mxu0 %v2881
        %2915 = vmatmul.mubr.bf16.gmra.mxu0 %v2880
        %v2916 = vpop.f32.mrf.mxu0
        %v2917 = vadd.f32 %v1940, %v2916
        %v2918 = vpop.f32.mrf.mxu0
        %v2919 = vpop.f32.mrf.mxu0
        %v2920 = vpop.f32.mrf.mxu0
        %2921 = vdwg.mxu0
        %v2922 = vadd.f32 %v2917, %v2819
        %2923 = vadd.xlane.f32.xlu0 %v2922
        %v2924 = vpop.xlane.xlu0 %2923
        %v2925 = vmul.f32 %v2924, %v1759
        %v2926 = vsub.f32 %v2922, %v2925
        %v2927 = vmul.f32 %v2926, %v2926
        %2928 = vadd.xlane.f32.xlu0 %v2927
        %v2929 = vpop.xlane.xlu0 %2928
        %v2930 = vmul.f32 %v2929, %v1759
        %v2931 = vadd.f32 %v2930, 1e-12
        %v2932 = vrsqrt.pop %v2931
        %v2933 = vmul.f32 %v2926, %v2932
        %v2934 = vmul.f32 %v2933, %v2094
        %v2935 = vadd.f32 %v2934, %v2101
        %2936 = vst [vmem:[%s655] sm:$0xff] %v2935
        %s2937 = sand.u32 %s393, 1
        %s2938 = scalar_lea.sflag [#allocation4], %s2937
        %s2939 = sand.u32 %s393, 1
        %s2940 = smul.addr %s2939, 8
        %s2941 = scalar_lea.vmem [#allocation16], %s2940
        // Predicated region
        $region117: #{tpu_custom_call.1} parent=83 // pred_check
          %p2942 = pneg %p403
        $region118: #{tpu_custom_call.1} parent=83 // pred_check_branch
          %2944 = sbr.rel (%p2942) target = $region120
        $region119: #{tpu_custom_call.1} parent=83 // pred_region
          %s2946 = ssub.s32 128, 128
          %2947 = vsyncadd %s2938, %s2946
          %s2948 = smul.addr %s39, 128
          %s2949 = scalar_lea.hbm %s16, %s2948
          %s2951 = sshll.u32 %s2941, 4
          %s2952 = int_to_ptr.vmem [resolvable:$true] %s2951
          %2954 = dma.vmem_to_hbm [thread:$0]  %s2952, 128, %s2949, %s2938
        $region120: #{tpu_custom_call.1} parent=83 // pred_fallthru
          _
      $region84: #{tpu_custom_call.1} parent=5 // pred_fallthru
        _
      %p2955 = scmp.le.s32.totalorder 2, %s34
      // Predicated region
      $region121: #{tpu_custom_call.1} parent=5 // pred_check
        %p2956 = pneg %p2955
      $region122: #{tpu_custom_call.1} parent=5 // pred_check_branch
        %2958 = sbr.rel (%p2956) target = $region124
      $region123: #{tpu_custom_call.1} parent=5 // pred_region
        %s2959 = ssub.s32 %s34, 2
        // Predicated region
        $region125: #{tpu_custom_call.1} parent=123 // pred_check
          %p2960 = pneg %p409
        $region126: #{tpu_custom_call.1} parent=123 // pred_check_branch
          %2962 = sbr.rel (%p2960) target = $region128
        $region127: #{tpu_custom_call.1} parent=123 // pred_region
          %s2963 = sand.u32 %s394, 1
          %s2964 = scalar_lea.sflag [#allocation4], %s2963
          %s2965 = sand.u32 %s394, 1
          %s2966 = smul.addr %s2965, 8
          %s2967 = scalar_lea.vmem [#allocation16], %s2966
          %2968 = dma.done %s2964, 128
        $region128: #{tpu_custom_call.1} parent=123 // pred_fallthru
          _
      $region124: #{tpu_custom_call.1} parent=5 // pred_fallthru
        _
    $region6: #{tpu_custom_call.1} parent=1 // loop_footer
      %s38 = sadd.s32 1, %s34
    $region7: #{tpu_custom_call.1} parent=1 // loop_footer_branch
      %33 = sbr.rel target = $region3
    $region8: #{tpu_custom_call.1} parent=1 // loop_exit
      _
    %2969 = vsyncpa [#allocation3], 1
    %s2970 = scalar_lea.sflag [#allocation3], 1
    %2971 = vsyncpa %s2970, 1
    %2972 = vsyncpa [#allocation6], 1
    %s2973 = scalar_lea.sflag [#allocation6], 1
    %2974 = vsyncpa %s2973, 1
    %2975 = vsyncpa [#allocation9], 1
    %2976 = vsyncpa [#allocation12], 1
    %2977 = vsyncpa [#allocation15], 1
    %2978 = vsyncpa [#allocation4], 1
    %s2979 = scalar_lea.sflag [#allocation4], 1
    %2980 = vsyncpa %s2979, 1

</llo_original>
